<compile_context>
chip_gen: v7x
topology: tpu7x:2x2x1
jax: 0.10.0
libtpu: 0.0.40
codegen_flags: <defaults>
</compile_context>

<pallas_src>
import functools

import jax
import jax.numpy as jnp
from jax.experimental import pallas as pl
from jax.experimental.pallas import tpu as pltpu

LANE = 128
SUBLANE = 8


def _round_up(v, m):
    return ((v + m - 1) // m) * m


def _cdiv(a, b):
    return -(-a // b)


def _chip_info():
    """Return (vmem_capacity_bytes, native MXU N) for the local TPU generation."""
    try:
        kind = jax.devices()[0].device_kind.lower()
    except Exception:
        kind = ""
    newer = ("v6" in kind) or ("v7" in kind) or ("7x" in kind)
    mxu_n = 256 if newer else 128            # v6e/v7x: 2x256^2 MXU; v5e: 4x128^2
    vmem_cap = (64 if (("v7" in kind) or ("7x" in kind)) else 128) * 1024 * 1024
    try:
        vmem_cap = int(pltpu.get_tpu_info().vmem_capacity_bytes)
    except Exception:
        pass
    return vmem_cap, mxu_n


_VMEM_CAP, _MXU_N = _chip_info()


# ---------------------------------------------------------------------------
# Pallas kernel: 3x3 conv as 9 contiguous-offset MXU matmuls + bias + LeakyReLU.
# ---------------------------------------------------------------------------
def pcb_kernel(x_ref, w_ref, b_ref, o_ref, *, wp, chunk, n_chunks, negative_slope):
    # x_ref: (1, 1, in_flat, Cin_p)  flattened, halo-padded row tile (Wp-wide rows)
    # w_ref: (9, Cin_p, tn)          BN-folded weight tile (tap-major, HWIO flattened)
    # b_ref: (1, tn)                 folded bias (conv bias + BN shift), f32
    # o_ref: (1, 1, out_flat, tn)    flattened output tile (Wp-wide rows)
    tn = o_ref.shape[-1]
    bias = b_ref[0]                                     # (tn,), loaded once

    def compute_chunk(base):
        acc = jnp.zeros((chunk, tn), jnp.float32)
        for t in range(9):
            off = (t // 3) * wp + (t % 3)               # tap (ky, kx) flat offset
            xs = x_ref[0, 0, pl.ds(base + off, chunk), :]   # contiguous offset slice
            acc = acc + jnp.dot(xs, w_ref[t], preferred_element_type=jnp.float32)
        y = acc + bias                                  # fused conv bias + BN shift
        y = jnp.maximum(y, negative_slope * y)          # LeakyReLU (0 <= slope <= 1)
        o_ref[0, 0, pl.ds(base, chunk), :] = y.astype(o_ref.dtype)

    if n_chunks <= 8:
        # static unroll: all slice offsets are compile-time constants.
        for c in range(n_chunks):
            compute_chunk(c * chunk)
    else:
        @pl.loop(0, n_chunks)
        def _(c):
            compute_chunk(pl.multiple_of(c * chunk, SUBLANE))


# ---------------------------------------------------------------------------
# Host wrapper.
# ---------------------------------------------------------------------------
@functools.partial(
    jax.jit,
    static_argnames=("eps", "negative_slope", "compute_dtype", "row_tile"))
def pcb_forward(x, conv_w, conv_b, gamma, beta, running_mean, running_var, *,
                eps=1e-5, negative_slope=0.1, compute_dtype=jnp.bfloat16,
                row_tile=None):
    """PCB forward.  x: (N, C, H, W); conv_w: (C, C, 3, 3) OIHW; rest: (C,)."""
    assert 0.0 <= negative_slope <= 1.0   # max(y, a*y) LeakyReLU trick requires this
    n, cin, h, w = x.shape
    cout = conv_w.shape[0]
    ho, wo = h, w                          # k=3, s=1, p=1 -> same spatial size
    wp = wo + 2                            # padded row width

    # --- fold BN (inference) + conv bias: scale into weight, single bias vector.
    scale = gamma / jnp.sqrt(running_var + eps)                     # (Cout,)
    w_folded = conv_w * scale[:, None, None, None]                  # OIHW
    bias_folded = scale * (conv_b - running_mean) + beta            # (Cout,)

    # --- lane-dense channel padding and generation-aware Cout tile.
    # TODO(synk): for tiny C (e.g. 4) the 128-lane padding wastes ~97% of MXU MACs
    # and HBM bytes; a dedicated small-channel mapping (in-VMEM im2col with
    # K=9*Cin packed into lanes) would recover most of it.
    itemsize = jnp.dtype(compute_dtype).itemsize
    out_itemsize = jnp.dtype(x.dtype).itemsize
    cin_p = _round_up(cin, LANE)
    tn = 256 if (_MXU_N == 256 and cout > LANE) else LANE
    if tn == 256 and n == 1 and cout <= 256:
        tn = LANE            # keep >= 2 Cout tiles so v7x's two TensorCores get work
    cout_p = _round_up(cout, tn)
    n_j = cout_p // tn

    # --- spatial tiling: in-kernel chunk (acc stays in vregs) + H row tiles (halo).
    chunk_target = max(SUBLANE, (64 * 1024) // (tn * 4))   # ~64 KiB f32 accumulator

    def _tile_dims(th):
        out_need = th * wp
        n_ch = _cdiv(out_need, chunk_target)
        ch = _round_up(_cdiv(out_need, n_ch), SUBLANE)
        out_flat = n_ch * ch                      # >= th*wp; garbage tail sliced off
        rows_in = _cdiv(out_flat, wp) + 3         # +-1 row halo + tap-slice slack
        in_flat = rows_in * wp
        est = (2 * in_flat * cin_p * itemsize        # image tile (double-buffered)
               + 2 * 9 * cin_p * tn * itemsize       # weight tile
               + 2 * out_flat * tn * out_itemsize    # output tile
               + 4 * ch * (cin_p + tn) * 4           # acc + tap loads + slack
               + (2 << 20))
        return n_ch, ch, out_flat, rows_in, in_flat, est

    if row_tile is not None:
        th = max(1, min(int(row_tile), ho))
    else:
        budget = int(0.7 * _VMEM_CAP)
        cands = [ho] + [t for t in (256, 128, 64, 32, 16, 8) if t < ho]
        th = cands[-1]
        for cand in cands:
            if _tile_dims(cand)[-1] <= budget:
                th = cand
                break
    n_r = _cdiv(ho, th)
    n_chunks, chunk, out_flat, rows_in, in_flat, est = _tile_dims(th)
    vmem_limit = int(min(max(est, 32 * 1024 * 1024), int(0.9 * _VMEM_CAP)))

    # --- NCHW -> NHWC, conv halo + row-tile padding, channel pad, flatten rows.
    # TODO(synk): accept/emit NHWC directly (and try allow_input_fusion) so the
    # transpose + pad fuse into the pallas operand DMA instead of a full HBM pass.
    x_nhwc = jnp.transpose(x, (0, 2, 3, 1)).astype(compute_dtype)
    rows_total = (n_r - 1) * th + rows_in
    x_pad = jnp.pad(x_nhwc, ((0, 0), (1, rows_total - 1 - h), (1, 1),
                             (0, cin_p - cin)))
    if n_r == 1:
        x_tiles = x_pad[:, None]
    else:
        # overlapping row tiles (halo) prepared once in HBM; overhead ~ 3/th rows.
        x_tiles = jnp.stack(
            [x_pad[:, r * th: r * th + rows_in] for r in range(n_r)], axis=1)
    x_tiles = x_tiles.reshape(n, n_r, in_flat, cin_p)

    w_hwio = jnp.transpose(w_folded, (2, 3, 1, 0)).reshape(9, cin, cout)
    w_pad = jnp.pad(w_hwio, ((0, 0), (0, cin_p - cin),
                             (0, cout_p - cout))).astype(compute_dtype)
    b_pad = jnp.pad(bias_folded, (0, cout_p - cout)).reshape(1, cout_p)
    b_pad = b_pad.astype(jnp.float32)

    kernel = functools.partial(pcb_kernel, wp=wp, chunk=chunk, n_chunks=n_chunks,
                               negative_slope=negative_slope)

    # TODO(synk): the image block is re-used across the inner Cout axis; with
    # pipeline_mode=pl.Buffered(1) its second VMEM buffer could be dropped on v7x.
    out = pl.pallas_call(
        kernel,
        out_shape=jax.ShapeDtypeStruct((n, n_r, out_flat, cout_p), x.dtype),
        grid_spec=pltpu.PrefetchScalarGridSpec(
            num_scalar_prefetch=0,
            grid=(n, n_r, n_j),
            in_specs=[
                # image tile: resident across the inner Cout-tile axis
                pl.BlockSpec((1, 1, in_flat, cin_p), lambda i, r, j: (i, r, 0, 0)),
                pl.BlockSpec((9, cin_p, tn), lambda i, r, j: (0, 0, j)),
                pl.BlockSpec((1, tn), lambda i, r, j: (0, j)),
            ],
            out_specs=pl.BlockSpec((1, 1, out_flat, tn),
                                   lambda i, r, j: (i, r, 0, j)),
        ),
        compiler_params=pltpu.CompilerParams(
            dimension_semantics=("parallel", "parallel", "parallel"),
            vmem_limit_bytes=vmem_limit),
    )(x_tiles, w_pad, b_pad)

    # drop garbage chunk tail, merge row tiles, drop pad columns/rows/channels.
    out = out[:, :, :th * wp, :].reshape(n, n_r * th, wp, cout_p)
    out = out[:, :ho, :wo, :cout]
    # TODO(synk): emit NHWC (optionally bf16) directly when the consumer accepts
    # it; this transpose only exists to match the PyTorch NCHW layout.
    return jnp.transpose(out, (0, 3, 1, 2))


# ---------------------------------------------------------------------------
# Pure-JAX reference.
# ---------------------------------------------------------------------------
def pcb_reference(x, conv_w, conv_b, gamma, beta, running_mean, running_var,
                  *, eps=1e-5, negative_slope=0.1):
    z = jax.lax.conv_general_dilated(
        x, conv_w, window_strides=(1, 1), padding=((1, 1), (1, 1)),
        dimension_numbers=("NCHW", "OIHW", "NCHW"),
        precision=jax.lax.Precision.HIGHEST)
    z = z + conv_b.reshape(1, -1, 1, 1)
    inv = gamma / jnp.sqrt(running_var + eps)
    y = z * inv.reshape(1, -1, 1, 1) + (beta - running_mean * inv).reshape(1, -1, 1, 1)
    return jnp.where(y >= 0, y, negative_slope * y)


if __name__ == "__main__":
    key = jax.random.PRNGKey(0)
    k0, k1, k2, k3, k4, k5, k6 = jax.random.split(key, 7)

    # PCB(in_channels=4): N=2, C=4, H=W=16.
    n, c, sp = 2, 4, 16
    x = jax.random.normal(k0, (n, c, sp, sp), dtype=jnp.float32)
    conv_w = jax.random.normal(k1, (c, c, 3, 3), dtype=jnp.float32) * 0.2
    conv_b = 0.1 * jax.random.normal(k2, (c,), dtype=jnp.float32)
    gamma = 1.0 + 0.1 * jax.random.normal(k3, (c,), dtype=jnp.float32)
    beta = 0.1 * jax.random.normal(k4, (c,), dtype=jnp.float32)
    r_mean = 0.1 * jax.random.normal(k5, (c,), dtype=jnp.float32)
    r_var = jnp.abs(jax.random.normal(k6, (c,), dtype=jnp.float32)) + 0.5

    # TODO(synk): BatchNorm is inference-mode (running stats); PyTorch
    # training-mode batch statistics are not reproduced here.
    ref = pcb_reference(x, conv_w, conv_b, gamma, beta, r_mean, r_var)

    # 1) default path: bf16 MXU compute with f32 accumulation.
    out = pcb_forward(x, conv_w, conv_b, gamma, beta, r_mean, r_var)
    jax.block_until_ready(out)
    assert out.shape == (n, c, sp, sp), out.shape
    err_bf16 = float(jnp.max(jnp.abs(out - ref)))
    assert jnp.allclose(out, ref, atol=1e-1, rtol=1e-1), err_bf16

    # 2) f32 compute path: tight numerical check of the kernel / tiling logic.
    out32 = pcb_forward(x, conv_w, conv_b, gamma, beta, r_mean, r_var,
                        compute_dtype=jnp.float32)
    err32 = float(jnp.max(jnp.abs(out32 - ref)))
    assert jnp.allclose(out32, ref, atol=5e-3, rtol=5e-3), err32

    # 3) forced H-tiling (2 halo'd row tiles) + multi-chunk inner loop.
    out_t = pcb_forward(x, conv_w, conv_b, gamma, beta, r_mean, r_var,
                        compute_dtype=jnp.float32, row_tile=8)
    err_t = float(jnp.max(jnp.abs(out_t - ref)))
    assert jnp.allclose(out_t, ref, atol=5e-3, rtol=5e-3), err_t

    # 4) multi Cout-tile path (Cout padded to more than one lane tile).
    c2, sp2 = 144, 8
    kk = jax.random.split(jax.random.PRNGKey(1), 7)
    x2 = jax.random.normal(kk[0], (1, c2, sp2, sp2), dtype=jnp.float32)
    w2 = jax.random.normal(kk[1], (c2, c2, 3, 3), dtype=jnp.float32) * 0.05
    b2 = 0.1 * jax.random.normal(kk[2], (c2,), dtype=jnp.float32)
    g2 = 1.0 + 0.1 * jax.random.normal(kk[3], (c2,), dtype=jnp.float32)
    be2 = 0.1 * jax.random.normal(kk[4], (c2,), dtype=jnp.float32)
    m2 = 0.1 * jax.random.normal(kk[5], (c2,), dtype=jnp.float32)
    v2 = jnp.abs(jax.random.normal(kk[6], (c2,), dtype=jnp.float32)) + 0.5
    out2 = pcb_forward(x2, w2, b2, g2, be2, m2, v2, compute_dtype=jnp.float32)
    ref2 = pcb_reference(x2, w2, b2, g2, be2, m2, v2)
    err2 = float(jnp.max(jnp.abs(out2 - ref2)))
    assert jnp.allclose(out2, ref2, atol=2e-2, rtol=2e-2), err2

    print("KERNEL_OK")
</pallas_src>

<mosaic_0001>
module attributes {stable_mosaic.version = 11 : i64} {
  func.func @pcb_kernel(%arg0: i32, %arg1: i32, %arg2: i32, %arg3: memref<1x1x342x128xbf16, #tpu.memory_space<vmem>>, %arg4: memref<9x128x128xbf16, #tpu.memory_space<vmem>>, %arg5: memref<1x128xf32, #tpu.memory_space<vmem>>, %arg6: memref<1x1x288x128xf32, #tpu.memory_space<vmem>>) attributes {dimension_semantics = [#tpu.dimension_semantics<parallel>, #tpu.dimension_semantics<parallel>, #tpu.dimension_semantics<parallel>], iteration_bounds = array<i64: 2, 1, 1>, scalar_prefetch = 0 : i64, scratch_operands = 0 : i64, tpu.core_type = #tpu.core_type<tc>, window_params = [{transform_indices = @transform_0, window_bounds = array<i64: 1, 1, 342, 128>}, {transform_indices = @transform_1, window_bounds = array<i64: 9, 128, 128>}, {transform_indices = @transform_2, window_bounds = array<i64: 1, 128>}, {transform_indices = @transform_3, window_bounds = array<i64: 1, 1, 288, 128>}]} {
    %c0 = arith.constant 0 : index
    %c0_0 = arith.constant 0 : index
    %0 = vector.load %arg5[%c0, %c0_0] : memref<1x128xf32, #tpu.memory_space<vmem>>, vector<1x128xf32>
    %1 = vector.shape_cast %0 : vector<1x128xf32> to vector<128xf32>
    %cst = arith.constant 0.000000e+00 : f32
    %2 = vector.broadcast %cst : f32 to vector<96x128xf32>
    %c0_1 = arith.constant 0 : index
    %c0_2 = arith.constant 0 : index
    %c0_3 = arith.constant 0 : index
    %c0_4 = arith.constant 0 : index
    %3 = vector.load %arg3[%c0_1, %c0_2, %c0_3, %c0_4] : memref<1x1x342x128xbf16, #tpu.memory_space<vmem>>, vector<1x1x96x128xbf16>
    %4 = vector.shape_cast %3 : vector<1x1x96x128xbf16> to vector<96x128xbf16>
    %c0_5 = arith.constant 0 : index
    %c0_6 = arith.constant 0 : index
    %c0_7 = arith.constant 0 : index
    %5 = vector.load %arg4[%c0_5, %c0_6, %c0_7] : memref<9x128x128xbf16, #tpu.memory_space<vmem>>, vector<1x128x128xbf16>
    %6 = vector.shape_cast %5 : vector<1x128x128xbf16> to vector<128x128xbf16>
    %cst_8 = arith.constant dense<0.000000e+00> : vector<96x128xf32>
    %7 = tpu.matmul %4, %6, %cst_8 {dimension_numbers = #tpu.dot_dimension_numbers<[1], [0], [0], [1], [0, 0, 1, 1], [], []>} : vector<96x128xbf16>, vector<128x128xbf16>, vector<96x128xf32> -> vector<96x128xf32>
    %8 = arith.addf %2, %7 : vector<96x128xf32>
    %c0_9 = arith.constant 0 : index
    %c0_10 = arith.constant 0 : index
    %c1 = arith.constant 1 : index
    %c0_11 = arith.constant 0 : index
    %9 = vector.load %arg3[%c0_9, %c0_10, %c1, %c0_11] : memref<1x1x342x128xbf16, #tpu.memory_space<vmem>>, vector<1x1x96x128xbf16>
    %10 = vector.shape_cast %9 : vector<1x1x96x128xbf16> to vector<96x128xbf16>
    %c1_12 = arith.constant 1 : index
    %c0_13 = arith.constant 0 : index
    %c0_14 = arith.constant 0 : index
    %11 = vector.load %arg4[%c1_12, %c0_13, %c0_14] : memref<9x128x128xbf16, #tpu.memory_space<vmem>>, vector<1x128x128xbf16>
    %12 = vector.shape_cast %11 : vector<1x128x128xbf16> to vector<128x128xbf16>
    %cst_15 = arith.constant dense<0.000000e+00> : vector<96x128xf32>
    %13 = tpu.matmul %10, %12, %cst_15 {dimension_numbers = #tpu.dot_dimension_numbers<[1], [0], [0], [1], [0, 0, 1, 1], [], []>} : vector<96x128xbf16>, vector<128x128xbf16>, vector<96x128xf32> -> vector<96x128xf32>
    %14 = arith.addf %8, %13 : vector<96x128xf32>
    %c0_16 = arith.constant 0 : index
    %c0_17 = arith.constant 0 : index
    %c2 = arith.constant 2 : index
    %c0_18 = arith.constant 0 : index
    %15 = vector.load %arg3[%c0_16, %c0_17, %c2, %c0_18] : memref<1x1x342x128xbf16, #tpu.memory_space<vmem>>, vector<1x1x96x128xbf16>
    %16 = vector.shape_cast %15 : vector<1x1x96x128xbf16> to vector<96x128xbf16>
    %c2_19 = arith.constant 2 : index
    %c0_20 = arith.constant 0 : index
    %c0_21 = arith.constant 0 : index
    %17 = vector.load %arg4[%c2_19, %c0_20, %c0_21] : memref<9x128x128xbf16, #tpu.memory_space<vmem>>, vector<1x128x128xbf16>
    %18 = vector.shape_cast %17 : vector<1x128x128xbf16> to vector<128x128xbf16>
    %cst_22 = arith.constant dense<0.000000e+00> : vector<96x128xf32>
    %19 = tpu.matmul %16, %18, %cst_22 {dimension_numbers = #tpu.dot_dimension_numbers<[1], [0], [0], [1], [0, 0, 1, 1], [], []>} : vector<96x128xbf16>, vector<128x128xbf16>, vector<96x128xf32> -> vector<96x128xf32>
    %20 = arith.addf %14, %19 : vector<96x128xf32>
    %c0_23 = arith.constant 0 : index
    %c0_24 = arith.constant 0 : index
    %c18 = arith.constant 18 : index
    %c0_25 = arith.constant 0 : index
    %21 = vector.load %arg3[%c0_23, %c0_24, %c18, %c0_25] : memref<1x1x342x128xbf16, #tpu.memory_space<vmem>>, vector<1x1x96x128xbf16>
    %22 = vector.shape_cast %21 : vector<1x1x96x128xbf16> to vector<96x128xbf16>
    %c3 = arith.constant 3 : index
    %c0_26 = arith.constant 0 : index
    %c0_27 = arith.constant 0 : index
    %23 = vector.load %arg4[%c3, %c0_26, %c0_27] : memref<9x128x128xbf16, #tpu.memory_space<vmem>>, vector<1x128x128xbf16>
    %24 = vector.shape_cast %23 : vector<1x128x128xbf16> to vector<128x128xbf16>
    %cst_28 = arith.constant dense<0.000000e+00> : vector<96x128xf32>
    %25 = tpu.matmul %22, %24, %cst_28 {dimension_numbers = #tpu.dot_dimension_numbers<[1], [0], [0], [1], [0, 0, 1, 1], [], []>} : vector<96x128xbf16>, vector<128x128xbf16>, vector<96x128xf32> -> vector<96x128xf32>
    %26 = arith.addf %20, %25 : vector<96x128xf32>
    %c0_29 = arith.constant 0 : index
    %c0_30 = arith.constant 0 : index
    %c19 = arith.constant 19 : index
    %c0_31 = arith.constant 0 : index
    %27 = vector.load %arg3[%c0_29, %c0_30, %c19, %c0_31] : memref<1x1x342x128xbf16, #tpu.memory_space<vmem>>, vector<1x1x96x128xbf16>
    %28 = vector.shape_cast %27 : vector<1x1x96x128xbf16> to vector<96x128xbf16>
    %c4 = arith.constant 4 : index
    %c0_32 = arith.constant 0 : index
    %c0_33 = arith.constant 0 : index
    %29 = vector.load %arg4[%c4, %c0_32, %c0_33] : memref<9x128x128xbf16, #tpu.memory_space<vmem>>, vector<1x128x128xbf16>
    %30 = vector.shape_cast %29 : vector<1x128x128xbf16> to vector<128x128xbf16>
    %cst_34 = arith.constant dense<0.000000e+00> : vector<96x128xf32>
    %31 = tpu.matmul %28, %30, %cst_34 {dimension_numbers = #tpu.dot_dimension_numbers<[1], [0], [0], [1], [0, 0, 1, 1], [], []>} : vector<96x128xbf16>, vector<128x128xbf16>, vector<96x128xf32> -> vector<96x128xf32>
    %32 = arith.addf %26, %31 : vector<96x128xf32>
    %c0_35 = arith.constant 0 : index
    %c0_36 = arith.constant 0 : index
    %c20 = arith.constant 20 : index
    %c0_37 = arith.constant 0 : index
    %33 = vector.load %arg3[%c0_35, %c0_36, %c20, %c0_37] : memref<1x1x342x128xbf16, #tpu.memory_space<vmem>>, vector<1x1x96x128xbf16>
    %34 = vector.shape_cast %33 : vector<1x1x96x128xbf16> to vector<96x128xbf16>
    %c5 = arith.constant 5 : index
    %c0_38 = arith.constant 0 : index
    %c0_39 = arith.constant 0 : index
    %35 = vector.load %arg4[%c5, %c0_38, %c0_39] : memref<9x128x128xbf16, #tpu.memory_space<vmem>>, vector<1x128x128xbf16>
    %36 = vector.shape_cast %35 : vector<1x128x128xbf16> to vector<128x128xbf16>
    %cst_40 = arith.constant dense<0.000000e+00> : vector<96x128xf32>
    %37 = tpu.matmul %34, %36, %cst_40 {dimension_numbers = #tpu.dot_dimension_numbers<[1], [0], [0], [1], [0, 0, 1, 1], [], []>} : vector<96x128xbf16>, vector<128x128xbf16>, vector<96x128xf32> -> vector<96x128xf32>
    %38 = arith.addf %32, %37 : vector<96x128xf32>
    %c0_41 = arith.constant 0 : index
    %c0_42 = arith.constant 0 : index
    %c36 = arith.constant 36 : index
    %c0_43 = arith.constant 0 : index
    %39 = vector.load %arg3[%c0_41, %c0_42, %c36, %c0_43] : memref<1x1x342x128xbf16, #tpu.memory_space<vmem>>, vector<1x1x96x128xbf16>
    %40 = vector.shape_cast %39 : vector<1x1x96x128xbf16> to vector<96x128xbf16>
    %c6 = arith.constant 6 : index
    %c0_44 = arith.constant 0 : index
    %c0_45 = arith.constant 0 : index
    %41 = vector.load %arg4[%c6, %c0_44, %c0_45] : memref<9x128x128xbf16, #tpu.memory_space<vmem>>, vector<1x128x128xbf16>
    %42 = vector.shape_cast %41 : vector<1x128x128xbf16> to vector<128x128xbf16>
    %cst_46 = arith.constant dense<0.000000e+00> : vector<96x128xf32>
    %43 = tpu.matmul %40, %42, %cst_46 {dimension_numbers = #tpu.dot_dimension_numbers<[1], [0], [0], [1], [0, 0, 1, 1], [], []>} : vector<96x128xbf16>, vector<128x128xbf16>, vector<96x128xf32> -> vector<96x128xf32>
    %44 = arith.addf %38, %43 : vector<96x128xf32>
    %c0_47 = arith.constant 0 : index
    %c0_48 = arith.constant 0 : index
    %c37 = arith.constant 37 : index
    %c0_49 = arith.constant 0 : index
    %45 = vector.load %arg3[%c0_47, %c0_48, %c37, %c0_49] : memref<1x1x342x128xbf16, #tpu.memory_space<vmem>>, vector<1x1x96x128xbf16>
    %46 = vector.shape_cast %45 : vector<1x1x96x128xbf16> to vector<96x128xbf16>
    %c7 = arith.constant 7 : index
    %c0_50 = arith.constant 0 : index
    %c0_51 = arith.constant 0 : index
    %47 = vector.load %arg4[%c7, %c0_50, %c0_51] : memref<9x128x128xbf16, #tpu.memory_space<vmem>>, vector<1x128x128xbf16>
    %48 = vector.shape_cast %47 : vector<1x128x128xbf16> to vector<128x128xbf16>
    %cst_52 = arith.constant dense<0.000000e+00> : vector<96x128xf32>
    %49 = tpu.matmul %46, %48, %cst_52 {dimension_numbers = #tpu.dot_dimension_numbers<[1], [0], [0], [1], [0, 0, 1, 1], [], []>} : vector<96x128xbf16>, vector<128x128xbf16>, vector<96x128xf32> -> vector<96x128xf32>
    %50 = arith.addf %44, %49 : vector<96x128xf32>
    %c0_53 = arith.constant 0 : index
    %c0_54 = arith.constant 0 : index
    %c38 = arith.constant 38 : index
    %c0_55 = arith.constant 0 : index
    %51 = vector.load %arg3[%c0_53, %c0_54, %c38, %c0_55] : memref<1x1x342x128xbf16, #tpu.memory_space<vmem>>, vector<1x1x96x128xbf16>
    %52 = vector.shape_cast %51 : vector<1x1x96x128xbf16> to vector<96x128xbf16>
    %c8 = arith.constant 8 : index
    %c0_56 = arith.constant 0 : index
    %c0_57 = arith.constant 0 : index
    %53 = vector.load %arg4[%c8, %c0_56, %c0_57] : memref<9x128x128xbf16, #tpu.memory_space<vmem>>, vector<1x128x128xbf16>
    %54 = vector.shape_cast %53 : vector<1x128x128xbf16> to vector<128x128xbf16>
    %cst_58 = arith.constant dense<0.000000e+00> : vector<96x128xf32>
    %55 = tpu.matmul %52, %54, %cst_58 {dimension_numbers = #tpu.dot_dimension_numbers<[1], [0], [0], [1], [0, 0, 1, 1], [], []>} : vector<96x128xbf16>, vector<128x128xbf16>, vector<96x128xf32> -> vector<96x128xf32>
    %56 = arith.addf %50, %55 : vector<96x128xf32>
    %57 = vector.shape_cast %1 : vector<128xf32> to vector<1x128xf32>
    %58 = vector.broadcast %57 : vector<1x128xf32> to vector<96x128xf32>
    %59 = arith.addf %56, %58 : vector<96x128xf32>
    %cst_59 = arith.constant 1.000000e-01 : f32
    %60 = vector.broadcast %cst_59 : f32 to vector<96x128xf32>
    %61 = arith.mulf %60, %59 : vector<96x128xf32>
    %62 = arith.maximumf %59, %61 : vector<96x128xf32>
    %c0_60 = arith.constant 0 : index
    %c0_61 = arith.constant 0 : index
    %c0_62 = arith.constant 0 : index
    %c0_63 = arith.constant 0 : index
    %63 = vector.load %arg6[%c0_60, %c0_61, %c0_62, %c0_63] : memref<1x1x288x128xf32, #tpu.memory_space<vmem>>, vector<1x1x96x128xf32>
    %64 = vector.shape_cast %63 : vector<1x1x96x128xf32> to vector<96x128xf32>
    %65 = vector.shape_cast %62 : vector<96x128xf32> to vector<1x1x96x128xf32>
    tpu.vector_store %arg6[%c0_60, %c0_61, %c0_62, %c0_63], %65 {strides = array<i32>} : memref<1x1x288x128xf32, #tpu.memory_space<vmem>>, vector<1x1x96x128xf32>,
    %cst_64 = arith.constant 0.000000e+00 : f32
    %66 = vector.broadcast %cst_64 : f32 to vector<96x128xf32>
    %c0_65 = arith.constant 0 : index
    %c0_66 = arith.constant 0 : index
    %c96 = arith.constant 96 : index
    %c0_67 = arith.constant 0 : index
    %67 = vector.load %arg3[%c0_65, %c0_66, %c96, %c0_67] : memref<1x1x342x128xbf16, #tpu.memory_space<vmem>>, vector<1x1x96x128xbf16>
    %68 = vector.shape_cast %67 : vector<1x1x96x128xbf16> to vector<96x128xbf16>
    %c0_68 = arith.constant 0 : index
    %c0_69 = arith.constant 0 : index
    %c0_70 = arith.constant 0 : index
    %69 = vector.load %arg4[%c0_68, %c0_69, %c0_70] : memref<9x128x128xbf16, #tpu.memory_space<vmem>>, vector<1x128x128xbf16>
    %70 = vector.shape_cast %69 : vector<1x128x128xbf16> to vector<128x128xbf16>
    %cst_71 = arith.constant dense<0.000000e+00> : vector<96x128xf32>
    %71 = tpu.matmul %68, %70, %cst_71 {dimension_numbers = #tpu.dot_dimension_numbers<[1], [0], [0], [1], [0, 0, 1, 1], [], []>} : vector<96x128xbf16>, vector<128x128xbf16>, vector<96x128xf32> -> vector<96x128xf32>
    %72 = arith.addf %66, %71 : vector<96x128xf32>
    %c0_72 = arith.constant 0 : index
    %c0_73 = arith.constant 0 : index
    %c97 = arith.constant 97 : index
    %c0_74 = arith.constant 0 : index
    %73 = vector.load %arg3[%c0_72, %c0_73, %c97, %c0_74] : memref<1x1x342x128xbf16, #tpu.memory_space<vmem>>, vector<1x1x96x128xbf16>
    %74 = vector.shape_cast %73 : vector<1x1x96x128xbf16> to vector<96x128xbf16>
    %c1_75 = arith.constant 1 : index
    %c0_76 = arith.constant 0 : index
    %c0_77 = arith.constant 0 : index
    %75 = vector.load %arg4[%c1_75, %c0_76, %c0_77] : memref<9x128x128xbf16, #tpu.memory_space<vmem>>, vector<1x128x128xbf16>
    %76 = vector.shape_cast %75 : vector<1x128x128xbf16> to vector<128x128xbf16>
    %cst_78 = arith.constant dense<0.000000e+00> : vector<96x128xf32>
    %77 = tpu.matmul %74, %76, %cst_78 {dimension_numbers = #tpu.dot_dimension_numbers<[1], [0], [0], [1], [0, 0, 1, 1], [], []>} : vector<96x128xbf16>, vector<128x128xbf16>, vector<96x128xf32> -> vector<96x128xf32>
    %78 = arith.addf %72, %77 : vector<96x128xf32>
    %c0_79 = arith.constant 0 : index
    %c0_80 = arith.constant 0 : index
    %c98 = arith.constant 98 : index
    %c0_81 = arith.constant 0 : index
    %79 = vector.load %arg3[%c0_79, %c0_80, %c98, %c0_81] : memref<1x1x342x128xbf16, #tpu.memory_space<vmem>>, vector<1x1x96x128xbf16>
    %80 = vector.shape_cast %79 : vector<1x1x96x128xbf16> to vector<96x128xbf16>
    %c2_82 = arith.constant 2 : index
    %c0_83 = arith.constant 0 : index
    %c0_84 = arith.constant 0 : index
    %81 = vector.load %arg4[%c2_82, %c0_83, %c0_84] : memref<9x128x128xbf16, #tpu.memory_space<vmem>>, vector<1x128x128xbf16>
    %82 = vector.shape_cast %81 : vector<1x128x128xbf16> to vector<128x128xbf16>
    %cst_85 = arith.constant dense<0.000000e+00> : vector<96x128xf32>
    %83 = tpu.matmul %80, %82, %cst_85 {dimension_numbers = #tpu.dot_dimension_numbers<[1], [0], [0], [1], [0, 0, 1, 1], [], []>} : vector<96x128xbf16>, vector<128x128xbf16>, vector<96x128xf32> -> vector<96x128xf32>
    %84 = arith.addf %78, %83 : vector<96x128xf32>
    %c0_86 = arith.constant 0 : index
    %c0_87 = arith.constant 0 : index
    %c114 = arith.constant 114 : index
    %c0_88 = arith.constant 0 : index
    %85 = vector.load %arg3[%c0_86, %c0_87, %c114, %c0_88] : memref<1x1x342x128xbf16, #tpu.memory_space<vmem>>, vector<1x1x96x128xbf16>
    %86 = vector.shape_cast %85 : vector<1x1x96x128xbf16> to vector<96x128xbf16>
    %c3_89 = arith.constant 3 : index
    %c0_90 = arith.constant 0 : index
    %c0_91 = arith.constant 0 : index
    %87 = vector.load %arg4[%c3_89, %c0_90, %c0_91] : memref<9x128x128xbf16, #tpu.memory_space<vmem>>, vector<1x128x128xbf16>
    %88 = vector.shape_cast %87 : vector<1x128x128xbf16> to vector<128x128xbf16>
    %cst_92 = arith.constant dense<0.000000e+00> : vector<96x128xf32>
    %89 = tpu.matmul %86, %88, %cst_92 {dimension_numbers = #tpu.dot_dimension_numbers<[1], [0], [0], [1], [0, 0, 1, 1], [], []>} : vector<96x128xbf16>, vector<128x128xbf16>, vector<96x128xf32> -> vector<96x128xf32>
    %90 = arith.addf %84, %89 : vector<96x128xf32>
    %c0_93 = arith.constant 0 : index
    %c0_94 = arith.constant 0 : index
    %c115 = arith.constant 115 : index
    %c0_95 = arith.constant 0 : index
    %91 = vector.load %arg3[%c0_93, %c0_94, %c115, %c0_95] : memref<1x1x342x128xbf16, #tpu.memory_space<vmem>>, vector<1x1x96x128xbf16>
    %92 = vector.shape_cast %91 : vector<1x1x96x128xbf16> to vector<96x128xbf16>
    %c4_96 = arith.constant 4 : index
    %c0_97 = arith.constant 0 : index
    %c0_98 = arith.constant 0 : index
    %93 = vector.load %arg4[%c4_96, %c0_97, %c0_98] : memref<9x128x128xbf16, #tpu.memory_space<vmem>>, vector<1x128x128xbf16>
    %94 = vector.shape_cast %93 : vector<1x128x128xbf16> to vector<128x128xbf16>
    %cst_99 = arith.constant dense<0.000000e+00> : vector<96x128xf32>
    %95 = tpu.matmul %92, %94, %cst_99 {dimension_numbers = #tpu.dot_dimension_numbers<[1], [0], [0], [1], [0, 0, 1, 1], [], []>} : vector<96x128xbf16>, vector<128x128xbf16>, vector<96x128xf32> -> vector<96x128xf32>
    %96 = arith.addf %90, %95 : vector<96x128xf32>
    %c0_100 = arith.constant 0 : index
    %c0_101 = arith.constant 0 : index
    %c116 = arith.constant 116 : index
    %c0_102 = arith.constant 0 : index
    %97 = vector.load %arg3[%c0_100, %c0_101, %c116, %c0_102] : memref<1x1x342x128xbf16, #tpu.memory_space<vmem>>, vector<1x1x96x128xbf16>
    %98 = vector.shape_cast %97 : vector<1x1x96x128xbf16> to vector<96x128xbf16>
    %c5_103 = arith.constant 5 : index
    %c0_104 = arith.constant 0 : index
    %c0_105 = arith.constant 0 : index
    %99 = vector.load %arg4[%c5_103, %c0_104, %c0_105] : memref<9x128x128xbf16, #tpu.memory_space<vmem>>, vector<1x128x128xbf16>
    %100 = vector.shape_cast %99 : vector<1x128x128xbf16> to vector<128x128xbf16>
    %cst_106 = arith.constant dense<0.000000e+00> : vector<96x128xf32>
    %101 = tpu.matmul %98, %100, %cst_106 {dimension_numbers = #tpu.dot_dimension_numbers<[1], [0], [0], [1], [0, 0, 1, 1], [], []>} : vector<96x128xbf16>, vector<128x128xbf16>, vector<96x128xf32> -> vector<96x128xf32>
    %102 = arith.addf %96, %101 : vector<96x128xf32>
    %c0_107 = arith.constant 0 : index
    %c0_108 = arith.constant 0 : index
    %c132 = arith.constant 132 : index
    %c0_109 = arith.constant 0 : index
    %103 = vector.load %arg3[%c0_107, %c0_108, %c132, %c0_109] : memref<1x1x342x128xbf16, #tpu.memory_space<vmem>>, vector<1x1x96x128xbf16>
    %104 = vector.shape_cast %103 : vector<1x1x96x128xbf16> to vector<96x128xbf16>
    %c6_110 = arith.constant 6 : index
    %c0_111 = arith.constant 0 : index
    %c0_112 = arith.constant 0 : index
    %105 = vector.load %arg4[%c6_110, %c0_111, %c0_112] : memref<9x128x128xbf16, #tpu.memory_space<vmem>>, vector<1x128x128xbf16>
    %106 = vector.shape_cast %105 : vector<1x128x128xbf16> to vector<128x128xbf16>
    %cst_113 = arith.constant dense<0.000000e+00> : vector<96x128xf32>
    %107 = tpu.matmul %104, %106, %cst_113 {dimension_numbers = #tpu.dot_dimension_numbers<[1], [0], [0], [1], [0, 0, 1, 1], [], []>} : vector<96x128xbf16>, vector<128x128xbf16>, vector<96x128xf32> -> vector<96x128xf32>
    %108 = arith.addf %102, %107 : vector<96x128xf32>
    %c0_114 = arith.constant 0 : index
    %c0_115 = arith.constant 0 : index
    %c133 = arith.constant 133 : index
    %c0_116 = arith.constant 0 : index
    %109 = vector.load %arg3[%c0_114, %c0_115, %c133, %c0_116] : memref<1x1x342x128xbf16, #tpu.memory_space<vmem>>, vector<1x1x96x128xbf16>
    %110 = vector.shape_cast %109 : vector<1x1x96x128xbf16> to vector<96x128xbf16>
    %c7_117 = arith.constant 7 : index
    %c0_118 = arith.constant 0 : index
    %c0_119 = arith.constant 0 : index
    %111 = vector.load %arg4[%c7_117, %c0_118, %c0_119] : memref<9x128x128xbf16, #tpu.memory_space<vmem>>, vector<1x128x128xbf16>
    %112 = vector.shape_cast %111 : vector<1x128x128xbf16> to vector<128x128xbf16>
    %cst_120 = arith.constant dense<0.000000e+00> : vector<96x128xf32>
    %113 = tpu.matmul %110, %112, %cst_120 {dimension_numbers = #tpu.dot_dimension_numbers<[1], [0], [0], [1], [0, 0, 1, 1], [], []>} : vector<96x128xbf16>, vector<128x128xbf16>, vector<96x128xf32> -> vector<96x128xf32>
    %114 = arith.addf %108, %113 : vector<96x128xf32>
    %c0_121 = arith.constant 0 : index
    %c0_122 = arith.constant 0 : index
    %c134 = arith.constant 134 : index
    %c0_123 = arith.constant 0 : index
    %115 = vector.load %arg3[%c0_121, %c0_122, %c134, %c0_123] : memref<1x1x342x128xbf16, #tpu.memory_space<vmem>>, vector<1x1x96x128xbf16>
    %116 = vector.shape_cast %115 : vector<1x1x96x128xbf16> to vector<96x128xbf16>
    %c8_124 = arith.constant 8 : index
    %c0_125 = arith.constant 0 : index
    %c0_126 = arith.constant 0 : index
    %117 = vector.load %arg4[%c8_124, %c0_125, %c0_126] : memref<9x128x128xbf16, #tpu.memory_space<vmem>>, vector<1x128x128xbf16>
    %118 = vector.shape_cast %117 : vector<1x128x128xbf16> to vector<128x128xbf16>
    %cst_127 = arith.constant dense<0.000000e+00> : vector<96x128xf32>
    %119 = tpu.matmul %116, %118, %cst_127 {dimension_numbers = #tpu.dot_dimension_numbers<[1], [0], [0], [1], [0, 0, 1, 1], [], []>} : vector<96x128xbf16>, vector<128x128xbf16>, vector<96x128xf32> -> vector<96x128xf32>
    %120 = arith.addf %114, %119 : vector<96x128xf32>
    %121 = vector.shape_cast %1 : vector<128xf32> to vector<1x128xf32>
    %122 = vector.broadcast %121 : vector<1x128xf32> to vector<96x128xf32>
    %123 = arith.addf %120, %122 : vector<96x128xf32>
    %cst_128 = arith.constant 1.000000e-01 : f32
    %124 = vector.broadcast %cst_128 : f32 to vector<96x128xf32>
    %125 = arith.mulf %124, %123 : vector<96x128xf32>
    %126 = arith.maximumf %123, %125 : vector<96x128xf32>
    %c0_129 = arith.constant 0 : index
    %c0_130 = arith.constant 0 : index
    %c96_131 = arith.constant 96 : index
    %c0_132 = arith.constant 0 : index
    %127 = vector.load %arg6[%c0_129, %c0_130, %c96_131, %c0_132] : memref<1x1x288x128xf32, #tpu.memory_space<vmem>>, vector<1x1x96x128xf32>
    %128 = vector.shape_cast %127 : vector<1x1x96x128xf32> to vector<96x128xf32>
    %129 = vector.shape_cast %126 : vector<96x128xf32> to vector<1x1x96x128xf32>
    tpu.vector_store %arg6[%c0_129, %c0_130, %c96_131, %c0_132], %129 {strides = array<i32>} : memref<1x1x288x128xf32, #tpu.memory_space<vmem>>, vector<1x1x96x128xf32>,
    %cst_133 = arith.constant 0.000000e+00 : f32
    %130 = vector.broadcast %cst_133 : f32 to vector<96x128xf32>
    %c0_134 = arith.constant 0 : index
    %c0_135 = arith.constant 0 : index
    %c192 = arith.constant 192 : index
    %c0_136 = arith.constant 0 : index
    %131 = vector.load %arg3[%c0_134, %c0_135, %c192, %c0_136] : memref<1x1x342x128xbf16, #tpu.memory_space<vmem>>, vector<1x1x96x128xbf16>
    %132 = vector.shape_cast %131 : vector<1x1x96x128xbf16> to vector<96x128xbf16>
    %c0_137 = arith.constant 0 : index
    %c0_138 = arith.constant 0 : index
    %c0_139 = arith.constant 0 : index
    %133 = vector.load %arg4[%c0_137, %c0_138, %c0_139] : memref<9x128x128xbf16, #tpu.memory_space<vmem>>, vector<1x128x128xbf16>
    %134 = vector.shape_cast %133 : vector<1x128x128xbf16> to vector<128x128xbf16>
    %cst_140 = arith.constant dense<0.000000e+00> : vector<96x128xf32>
    %135 = tpu.matmul %132, %134, %cst_140 {dimension_numbers = #tpu.dot_dimension_numbers<[1], [0], [0], [1], [0, 0, 1, 1], [], []>} : vector<96x128xbf16>, vector<128x128xbf16>, vector<96x128xf32> -> vector<96x128xf32>
    %136 = arith.addf %130, %135 : vector<96x128xf32>
    %c0_141 = arith.constant 0 : index
    %c0_142 = arith.constant 0 : index
    %c193 = arith.constant 193 : index
    %c0_143 = arith.constant 0 : index
    %137 = vector.load %arg3[%c0_141, %c0_142, %c193, %c0_143] : memref<1x1x342x128xbf16, #tpu.memory_space<vmem>>, vector<1x1x96x128xbf16>
    %138 = vector.shape_cast %137 : vector<1x1x96x128xbf16> to vector<96x128xbf16>
    %c1_144 = arith.constant 1 : index
    %c0_145 = arith.constant 0 : index
    %c0_146 = arith.constant 0 : index
    %139 = vector.load %arg4[%c1_144, %c0_145, %c0_146] : memref<9x128x128xbf16, #tpu.memory_space<vmem>>, vector<1x128x128xbf16>
    %140 = vector.shape_cast %139 : vector<1x128x128xbf16> to vector<128x128xbf16>
    %cst_147 = arith.constant dense<0.000000e+00> : vector<96x128xf32>
    %141 = tpu.matmul %138, %140, %cst_147 {dimension_numbers = #tpu.dot_dimension_numbers<[1], [0], [0], [1], [0, 0, 1, 1], [], []>} : vector<96x128xbf16>, vector<128x128xbf16>, vector<96x128xf32> -> vector<96x128xf32>
    %142 = arith.addf %136, %141 : vector<96x128xf32>
    %c0_148 = arith.constant 0 : index
    %c0_149 = arith.constant 0 : index
    %c194 = arith.constant 194 : index
    %c0_150 = arith.constant 0 : index
    %143 = vector.load %arg3[%c0_148, %c0_149, %c194, %c0_150] : memref<1x1x342x128xbf16, #tpu.memory_space<vmem>>, vector<1x1x96x128xbf16>
    %144 = vector.shape_cast %143 : vector<1x1x96x128xbf16> to vector<96x128xbf16>
    %c2_151 = arith.constant 2 : index
    %c0_152 = arith.constant 0 : index
    %c0_153 = arith.constant 0 : index
    %145 = vector.load %arg4[%c2_151, %c0_152, %c0_153] : memref<9x128x128xbf16, #tpu.memory_space<vmem>>, vector<1x128x128xbf16>
    %146 = vector.shape_cast %145 : vector<1x128x128xbf16> to vector<128x128xbf16>
    %cst_154 = arith.constant dense<0.000000e+00> : vector<96x128xf32>
    %147 = tpu.matmul %144, %146, %cst_154 {dimension_numbers = #tpu.dot_dimension_numbers<[1], [0], [0], [1], [0, 0, 1, 1], [], []>} : vector<96x128xbf16>, vector<128x128xbf16>, vector<96x128xf32> -> vector<96x128xf32>
    %148 = arith.addf %142, %147 : vector<96x128xf32>
    %c0_155 = arith.constant 0 : index
    %c0_156 = arith.constant 0 : index
    %c210 = arith.constant 210 : index
    %c0_157 = arith.constant 0 : index
    %149 = vector.load %arg3[%c0_155, %c0_156, %c210, %c0_157] : memref<1x1x342x128xbf16, #tpu.memory_space<vmem>>, vector<1x1x96x128xbf16>
    %150 = vector.shape_cast %149 : vector<1x1x96x128xbf16> to vector<96x128xbf16>
    %c3_158 = arith.constant 3 : index
    %c0_159 = arith.constant 0 : index
    %c0_160 = arith.constant 0 : index
    %151 = vector.load %arg4[%c3_158, %c0_159, %c0_160] : memref<9x128x128xbf16, #tpu.memory_space<vmem>>, vector<1x128x128xbf16>
    %152 = vector.shape_cast %151 : vector<1x128x128xbf16> to vector<128x128xbf16>
    %cst_161 = arith.constant dense<0.000000e+00> : vector<96x128xf32>
    %153 = tpu.matmul %150, %152, %cst_161 {dimension_numbers = #tpu.dot_dimension_numbers<[1], [0], [0], [1], [0, 0, 1, 1], [], []>} : vector<96x128xbf16>, vector<128x128xbf16>, vector<96x128xf32> -> vector<96x128xf32>
    %154 = arith.addf %148, %153 : vector<96x128xf32>
    %c0_162 = arith.constant 0 : index
    %c0_163 = arith.constant 0 : index
    %c211 = arith.constant 211 : index
    %c0_164 = arith.constant 0 : index
    %155 = vector.load %arg3[%c0_162, %c0_163, %c211, %c0_164] : memref<1x1x342x128xbf16, #tpu.memory_space<vmem>>, vector<1x1x96x128xbf16>
    %156 = vector.shape_cast %155 : vector<1x1x96x128xbf16> to vector<96x128xbf16>
    %c4_165 = arith.constant 4 : index
    %c0_166 = arith.constant 0 : index
    %c0_167 = arith.constant 0 : index
    %157 = vector.load %arg4[%c4_165, %c0_166, %c0_167] : memref<9x128x128xbf16, #tpu.memory_space<vmem>>, vector<1x128x128xbf16>
    %158 = vector.shape_cast %157 : vector<1x128x128xbf16> to vector<128x128xbf16>
    %cst_168 = arith.constant dense<0.000000e+00> : vector<96x128xf32>
    %159 = tpu.matmul %156, %158, %cst_168 {dimension_numbers = #tpu.dot_dimension_numbers<[1], [0], [0], [1], [0, 0, 1, 1], [], []>} : vector<96x128xbf16>, vector<128x128xbf16>, vector<96x128xf32> -> vector<96x128xf32>
    %160 = arith.addf %154, %159 : vector<96x128xf32>
    %c0_169 = arith.constant 0 : index
    %c0_170 = arith.constant 0 : index
    %c212 = arith.constant 212 : index
    %c0_171 = arith.constant 0 : index
    %161 = vector.load %arg3[%c0_169, %c0_170, %c212, %c0_171] : memref<1x1x342x128xbf16, #tpu.memory_space<vmem>>, vector<1x1x96x128xbf16>
    %162 = vector.shape_cast %161 : vector<1x1x96x128xbf16> to vector<96x128xbf16>
    %c5_172 = arith.constant 5 : index
    %c0_173 = arith.constant 0 : index
    %c0_174 = arith.constant 0 : index
    %163 = vector.load %arg4[%c5_172, %c0_173, %c0_174] : memref<9x128x128xbf16, #tpu.memory_space<vmem>>, vector<1x128x128xbf16>
    %164 = vector.shape_cast %163 : vector<1x128x128xbf16> to vector<128x128xbf16>
    %cst_175 = arith.constant dense<0.000000e+00> : vector<96x128xf32>
    %165 = tpu.matmul %162, %164, %cst_175 {dimension_numbers = #tpu.dot_dimension_numbers<[1], [0], [0], [1], [0, 0, 1, 1], [], []>} : vector<96x128xbf16>, vector<128x128xbf16>, vector<96x128xf32> -> vector<96x128xf32>
    %166 = arith.addf %160, %165 : vector<96x128xf32>
    %c0_176 = arith.constant 0 : index
    %c0_177 = arith.constant 0 : index
    %c228 = arith.constant 228 : index
    %c0_178 = arith.constant 0 : index
    %167 = vector.load %arg3[%c0_176, %c0_177, %c228, %c0_178] : memref<1x1x342x128xbf16, #tpu.memory_space<vmem>>, vector<1x1x96x128xbf16>
    %168 = vector.shape_cast %167 : vector<1x1x96x128xbf16> to vector<96x128xbf16>
    %c6_179 = arith.constant 6 : index
    %c0_180 = arith.constant 0 : index
    %c0_181 = arith.constant 0 : index
    %169 = vector.load %arg4[%c6_179, %c0_180, %c0_181] : memref<9x128x128xbf16, #tpu.memory_space<vmem>>, vector<1x128x128xbf16>
    %170 = vector.shape_cast %169 : vector<1x128x128xbf16> to vector<128x128xbf16>
    %cst_182 = arith.constant dense<0.000000e+00> : vector<96x128xf32>
    %171 = tpu.matmul %168, %170, %cst_182 {dimension_numbers = #tpu.dot_dimension_numbers<[1], [0], [0], [1], [0, 0, 1, 1], [], []>} : vector<96x128xbf16>, vector<128x128xbf16>, vector<96x128xf32> -> vector<96x128xf32>
    %172 = arith.addf %166, %171 : vector<96x128xf32>
    %c0_183 = arith.constant 0 : index
    %c0_184 = arith.constant 0 : index
    %c229 = arith.constant 229 : index
    %c0_185 = arith.constant 0 : index
    %173 = vector.load %arg3[%c0_183, %c0_184, %c229, %c0_185] : memref<1x1x342x128xbf16, #tpu.memory_space<vmem>>, vector<1x1x96x128xbf16>
    %174 = vector.shape_cast %173 : vector<1x1x96x128xbf16> to vector<96x128xbf16>
    %c7_186 = arith.constant 7 : index
    %c0_187 = arith.constant 0 : index
    %c0_188 = arith.constant 0 : index
    %175 = vector.load %arg4[%c7_186, %c0_187, %c0_188] : memref<9x128x128xbf16, #tpu.memory_space<vmem>>, vector<1x128x128xbf16>
    %176 = vector.shape_cast %175 : vector<1x128x128xbf16> to vector<128x128xbf16>
    %cst_189 = arith.constant dense<0.000000e+00> : vector<96x128xf32>
    %177 = tpu.matmul %174, %176, %cst_189 {dimension_numbers = #tpu.dot_dimension_numbers<[1], [0], [0], [1], [0, 0, 1, 1], [], []>} : vector<96x128xbf16>, vector<128x128xbf16>, vector<96x128xf32> -> vector<96x128xf32>
    %178 = arith.addf %172, %177 : vector<96x128xf32>
    %c0_190 = arith.constant 0 : index
    %c0_191 = arith.constant 0 : index
    %c230 = arith.constant 230 : index
    %c0_192 = arith.constant 0 : index
    %179 = vector.load %arg3[%c0_190, %c0_191, %c230, %c0_192] : memref<1x1x342x128xbf16, #tpu.memory_space<vmem>>, vector<1x1x96x128xbf16>
    %180 = vector.shape_cast %179 : vector<1x1x96x128xbf16> to vector<96x128xbf16>
    %c8_193 = arith.constant 8 : index
    %c0_194 = arith.constant 0 : index
    %c0_195 = arith.constant 0 : index
    %181 = vector.load %arg4[%c8_193, %c0_194, %c0_195] : memref<9x128x128xbf16, #tpu.memory_space<vmem>>, vector<1x128x128xbf16>
    %182 = vector.shape_cast %181 : vector<1x128x128xbf16> to vector<128x128xbf16>
    %cst_196 = arith.constant dense<0.000000e+00> : vector<96x128xf32>
    %183 = tpu.matmul %180, %182, %cst_196 {dimension_numbers = #tpu.dot_dimension_numbers<[1], [0], [0], [1], [0, 0, 1, 1], [], []>} : vector<96x128xbf16>, vector<128x128xbf16>, vector<96x128xf32> -> vector<96x128xf32>
    %184 = arith.addf %178, %183 : vector<96x128xf32>
    %185 = vector.shape_cast %1 : vector<128xf32> to vector<1x128xf32>
    %186 = vector.broadcast %185 : vector<1x128xf32> to vector<96x128xf32>
    %187 = arith.addf %184, %186 : vector<96x128xf32>
    %cst_197 = arith.constant 1.000000e-01 : f32
    %188 = vector.broadcast %cst_197 : f32 to vector<96x128xf32>
    %189 = arith.mulf %188, %187 : vector<96x128xf32>
    %190 = arith.maximumf %187, %189 : vector<96x128xf32>
    %c0_198 = arith.constant 0 : index
    %c0_199 = arith.constant 0 : index
    %c192_200 = arith.constant 192 : index
    %c0_201 = arith.constant 0 : index
    %191 = vector.load %arg6[%c0_198, %c0_199, %c192_200, %c0_201] : memref<1x1x288x128xf32, #tpu.memory_space<vmem>>, vector<1x1x96x128xf32>
    %192 = vector.shape_cast %191 : vector<1x1x96x128xf32> to vector<96x128xf32>
    %193 = vector.shape_cast %190 : vector<96x128xf32> to vector<1x1x96x128xf32>
    tpu.vector_store %arg6[%c0_198, %c0_199, %c192_200, %c0_201], %193 {strides = array<i32>} : memref<1x1x288x128xf32, #tpu.memory_space<vmem>>, vector<1x1x96x128xf32>,
    return
  }
  func.func @transform_0(%arg0: i32, %arg1: i32, %arg2: i32) -> (i32, i32, i32, i32) {
    %c0_i32 = arith.constant 0 : i32
    %c0_i32_0 = arith.constant 0 : i32
    %c0_i32_1 = arith.constant 0 : i32
    return %arg0, %arg1, %c0_i32, %c0_i32_0 : i32, i32, i32, i32
  }
  func.func @transform_1(%arg0: i32, %arg1: i32, %arg2: i32) -> (i32, i32, i32) {
    %c0_i32 = arith.constant 0 : i32
    %c0_i32_0 = arith.constant 0 : i32
    %c0_i32_1 = arith.constant 0 : i32
    return %c0_i32, %c0_i32_0, %arg2 : i32, i32, i32
  }
  func.func @transform_2(%arg0: i32, %arg1: i32, %arg2: i32) -> (i32, i32) {
    %c0_i32 = arith.constant 0 : i32
    %c0_i32_0 = arith.constant 0 : i32
    return %c0_i32, %arg2 : i32, i32
  }
  func.func @transform_3(%arg0: i32, %arg1: i32, %arg2: i32) -> (i32, i32, i32, i32) {
    %c0_i32 = arith.constant 0 : i32
    %c0_i32_0 = arith.constant 0 : i32
    return %arg0, %arg1, %c0_i32, %arg2 : i32, i32, i32, i32
  }
}

</mosaic_0001>

<llo_original>
// kernel: pcb_forward.1
$region0: #{pcb_forward.1}
  #allocation0 [shape = 'u32[]', space=smem, size = 0x4, offset = 0x4, fixed_abs, tag = 'smem constant byte address 0x4 - core index']
  #allocation1 [shape = 'u32[144,128]{1,0:T(1,128)}', space=vmem, size = 0x12000, scoped, tag = 'internal scratch']
  %s0 = inlined_call_operand.vmem [shape: bf16[2,1,342,128], index: 0, kind: input, shape index: {}]
  %s1 = inlined_call_operand.vmem [shape: bf16[9,128,128], index: 1, kind: input, shape index: {}]
  %s2 = inlined_call_operand.vmem [shape: f32[1,128], index: 2, kind: input, shape index: {}]
  %s3 = inlined_call_operand.vmem [shape: f32[2,1,288,128], index: 3, kind: output, shape index: {}]
  %s4 = sld [smem:[#allocation0]]
  $region45: #{pcb_forward.1} parent=0
    _
  %s6 = ssub.s32 1, %s4
  %s7 = scalar_select 0, %s6, %s4
  loop: start=0, step=1, limit=4
  $region2: #{pcb_forward.1} parent=0 // loop_pre_header
    _
  $region3: #{pcb_forward.1} parent=0 // loop_header
    %s9 = sphi 0, %s13
    %p10 = scmp.ge.s32.totalorder %s9, 4
    %s16 = sphi 0, %s35
    %s17 = sphi 0, %s31
    %s18 = sphi 0, %s27
    %s19 = sphi 0, %s16
    %s20 = sphi 0, %s17
    %s21 = sphi 0, %s18
    %s22 = sphi 0, %s19
    %s23 = sphi 0, %s20
    %s24 = sphi 0, %s21
    %s40 = sphi 0, %s42
    %s43 = sphi 0, %s40
    %s44 = sphi 0, %s43
    %s60 = sphi 0, %s44
    %s66 = sphi 0, %s68
    %s69 = sphi 0, %s66
    %s70 = sphi 0, %s69
    %s86 = sphi 0, %s70
    %s92 = sphi 0, %s94
    %s95 = sphi 0, %s92
    %s96 = sphi 0, %s95
    %s112 = sphi 0, %s96
    %s122 = sphi 0, %s124
    %s125 = sphi 0, %s122
    %s126 = sphi 0, %s125
    %s142 = sphi 0, %s126
  $region4: #{pcb_forward.1} parent=0 // loop_header_branch
    %12 = sbr.rel (%p10) target = $region8
  $region5: #{pcb_forward.1} parent=0 // loop_body
    %s14 = ssub.s32 %s9, 1
    %s15 = ssub.s32 %s9, 2
    %s25 = sadd.s32 1, %s18
    %p26 = scmp.ge.s32.totalorder %s25, 1
    %s27 = scalar_select %p26, 0, %s25
    %s28 = sadd.s32 1, %s17
    %s29 = scalar_select %p26, %s28, %s17
    %p30 = scmp.ge.s32.totalorder %s29, 1
    %s31 = scalar_select %p30, 0, %s29
    %s32 = sadd.s32 1, %s16
    %s33 = scalar_select %p30, %s32, %s16
    %p34 = scmp.ge.s32.totalorder %s33, 2
    %s35 = scalar_select %p34, 0, %s33
    %s36 = ssub.s32 %s16, %s35
    %s37 = ssub.s32 %s17, %s31
    %s38 = sor.u32 %s36, %s37
    %p39 = scmp.eq.s32.totalorder %s38, 0
    %s41 = sadd.s32 %s40, 1
    %s42 = scalar_select %p39, %s40, %s41
    %p45 = pneg %p39
    %p46 = scmp.eq.s32.totalorder %s9, 1
    %p47 = por %p45, %p46
    %p48 = scmp.ne.s32.totalorder %s40, %s43
    %p49 = scmp.eq.s32.totalorder %s9, 0
    %p50 = por %p48, %p49
    %p51 = scmp.ne.s32.totalorder %s40, %s43
    %p52 = scmp.eq.s32.totalorder %s14, 1
    %p53 = por %p51, %p52
    %p54 = scmp.ne.s32.totalorder %s43, %s44
    %p55 = scmp.eq.s32.totalorder %s14, 0
    %p56 = por %p54, %p55
    %p57 = scmp.ne.s32.totalorder %s43, %s44
    %p58 = scmp.eq.s32.totalorder %s15, 1
    %p59 = por %p57, %p58
    %p61 = scmp.ne.s32.totalorder %s44, %s60
    %p62 = scmp.eq.s32.totalorder %s15, 0
    %p63 = por %p61, %p62
    %s64 = ssub.s32 %s18, %s27
    %p65 = scmp.eq.s32.totalorder %s64, 0
    %s67 = sadd.s32 %s66, 1
    %s68 = scalar_select %p65, %s66, %s67
    %p71 = pneg %p65
    %p72 = scmp.eq.s32.totalorder %s9, 1
    %p73 = por %p71, %p72
    %p74 = scmp.ne.s32.totalorder %s66, %s69
    %p75 = scmp.eq.s32.totalorder %s9, 0
    %p76 = por %p74, %p75
    %p77 = scmp.ne.s32.totalorder %s66, %s69
    %p78 = scmp.eq.s32.totalorder %s14, 1
    %p79 = por %p77, %p78
    %p80 = scmp.ne.s32.totalorder %s69, %s70
    %p81 = scmp.eq.s32.totalorder %s14, 0
    %p82 = por %p80, %p81
    %p83 = scmp.ne.s32.totalorder %s69, %s70
    %p84 = scmp.eq.s32.totalorder %s15, 1
    %p85 = por %p83, %p84
    %p87 = scmp.ne.s32.totalorder %s70, %s86
    %p88 = scmp.eq.s32.totalorder %s15, 0
    %p89 = por %p87, %p88
    %s90 = ssub.s32 %s18, %s27
    %p91 = scmp.eq.s32.totalorder %s90, 0
    %s93 = sadd.s32 %s92, 1
    %s94 = scalar_select %p91, %s92, %s93
    %p97 = pneg %p91
    %p98 = scmp.eq.s32.totalorder %s9, 1
    %p99 = por %p97, %p98
    %p100 = scmp.ne.s32.totalorder %s92, %s95
    %p101 = scmp.eq.s32.totalorder %s9, 0
    %p102 = por %p100, %p101
    %p103 = scmp.ne.s32.totalorder %s92, %s95
    %p104 = scmp.eq.s32.totalorder %s14, 1
    %p105 = por %p103, %p104
    %p106 = scmp.ne.s32.totalorder %s95, %s96
    %p107 = scmp.eq.s32.totalorder %s14, 0
    %p108 = por %p106, %p107
    %p109 = scmp.ne.s32.totalorder %s95, %s96
    %p110 = scmp.eq.s32.totalorder %s15, 1
    %p111 = por %p109, %p110
    %p113 = scmp.ne.s32.totalorder %s96, %s112
    %p114 = scmp.eq.s32.totalorder %s15, 0
    %p115 = por %p113, %p114
    %s116 = ssub.s32 %s16, %s35
    %s117 = ssub.s32 %s17, %s31
    %s118 = sor.u32 %s116, %s117
    %s119 = ssub.s32 %s18, %s27
    %s120 = sor.u32 %s118, %s119
    %p121 = scmp.eq.s32.totalorder %s120, 0
    %s123 = sadd.s32 %s122, 1
    %s124 = scalar_select %p121, %s122, %s123
    %p127 = pneg %p121
    %p128 = scmp.eq.s32.totalorder %s9, 1
    %p129 = por %p127, %p128
    %p130 = scmp.ne.s32.totalorder %s122, %s125
    %p131 = scmp.eq.s32.totalorder %s9, 0
    %p132 = por %p130, %p131
    %p133 = scmp.ne.s32.totalorder %s122, %s125
    %p134 = scmp.eq.s32.totalorder %s14, 1
    %p135 = por %p133, %p134
    %p136 = scmp.ne.s32.totalorder %s125, %s126
    %p137 = scmp.eq.s32.totalorder %s14, 0
    %p138 = por %p136, %p137
    %p139 = scmp.ne.s32.totalorder %s125, %s126
    %p140 = scmp.eq.s32.totalorder %s15, 1
    %p141 = por %p139, %p140
    %p143 = scmp.ne.s32.totalorder %s126, %s142
    %p144 = scmp.eq.s32.totalorder %s15, 0
    %p145 = por %p143, %p144
    %p146 = scmp.le.s32.totalorder 1, %s9
    %p147 = scmp.lt.s32.totalorder %s9, 3
    %p148 = pnand %p146, %p147
    %p149 = pneg %p148
    // Predicated region
    $region9: #{pcb_forward.1} parent=5 // pred_check
      _
    $region10: #{pcb_forward.1} parent=5 // pred_check_branch
      %151 = sbr.rel (%p148) target = $region12
    $region11: #{pcb_forward.1} parent=5 // pred_region
      %s152 = ssub.s32 %s9, 1
      // Predicated region
      $region13: #{pcb_forward.1} parent=11 // pred_check
        %p153 = pneg %p82
      $region14: #{pcb_forward.1} parent=11 // pred_check_branch
        %155 = sbr.rel (%p153) target = $region16
      $region15: #{pcb_forward.1} parent=11 // pred_region
        %p156 = scmp.lt.s32.totalorder %s21, 0
        %s157 = scalar_select %p156, %s21, 0
        %s158 = smul.addr %s157, 4
        %s159 = scalar_lea.vmem %s1, %s158
      $region16: #{pcb_forward.1} parent=11 // pred_fallthru
        _
      // Predicated region
      $region17: #{pcb_forward.1} parent=11 // pred_check
        %p160 = pneg %p108
      $region18: #{pcb_forward.1} parent=11 // pred_check_branch
        %162 = sbr.rel (%p160) target = $region20
      $region19: #{pcb_forward.1} parent=11 // pred_region
        %p163 = scmp.lt.s32.totalorder %s21, 0
        %s164 = scalar_select %p163, %s21, 0
        %s165 = scalar_lea.vmem %s2, %s164
      $region20: #{pcb_forward.1} parent=11 // pred_fallthru
        _
    $region12: #{pcb_forward.1} parent=5 // pred_fallthru
      _
    %p166 = scmp.lt.s32.totalorder %s9, 2
    // Predicated region
    $region21: #{pcb_forward.1} parent=5 // pred_check
      %p167 = pneg %p166
    $region22: #{pcb_forward.1} parent=5 // pred_check_branch
      %169 = sbr.rel (%p167) target = $region24
    $region23: #{pcb_forward.1} parent=5 // pred_region
      // Predicated region
      $region25: #{pcb_forward.1} parent=23 // pred_check
        %p170 = pneg %p50
      $region26: #{pcb_forward.1} parent=23 // pred_check_branch
        %172 = sbr.rel (%p170) target = $region28
      $region27: #{pcb_forward.1} parent=23 // pred_region
        %p173 = scmp.lt.s32.totalorder %s16, 1
        %s174 = scalar_select %p173, %s16, 1
        %p175 = scmp.lt.s32.totalorder %s17, 0
        %s176 = scalar_select %p175, %s17, 0
        %s177 = smul.addr %s176, 43
        %s178 = smul.addr %s174, 43
        %s179 = sadd.s32 %s177, %s178
        %s180 = smul.addr %s179, 4
        %s181 = scalar_lea.vmem %s0, %s180
      $region28: #{pcb_forward.1} parent=23 // pred_fallthru
        _
    $region24: #{pcb_forward.1} parent=5 // pred_fallthru
      _
    %p182 = scmp.le.s32.totalorder 1, %s9
    %p183 = scmp.lt.s32.totalorder %s9, 3
    %p184 = pnand %p182, %p183
    %p185 = pneg %p184
    // Predicated region
    $region29: #{pcb_forward.1} parent=5 // pred_check
      _
    $region30: #{pcb_forward.1} parent=5 // pred_check_branch
      %187 = sbr.rel (%p184) target = $region32
    $region31: #{pcb_forward.1} parent=5 // pred_region
      %s188 = ssub.s32 %s9, 1
      %p189 = scmp.lt.s32.totalorder %s19, 1
      %s190 = scalar_select %p189, %s19, 1
      %p191 = scmp.lt.s32.totalorder %s20, 0
      %s192 = scalar_select %p191, %s20, 0
      %s193 = smul.addr %s192, 43
      %s194 = smul.addr %s190, 43
      %s195 = sadd.s32 %s193, %s194
      %s196 = smul.addr %s195, 4
      %s197 = scalar_lea.vmem %s0, %s196
      %p198 = pneg %p56
      %p199 = pneg %p53
      %p200 = scmp.lt.s32.totalorder %s21, 0
      %s201 = scalar_select %p200, %s21, 0
      %s202 = smul.addr %s201, 4
      %s203 = scalar_lea.vmem %s1, %s202
      %p204 = pneg %p82
      %p205 = pneg %p79
      %p206 = scmp.lt.s32.totalorder %s21, 0
      %s207 = scalar_select %p206, %s21, 0
      %s208 = scalar_lea.vmem %s2, %s207
      %p209 = pneg %p108
      %p210 = pneg %p105
      %p211 = pneg %p138
      %p212 = pneg %p135
      %p213 = scmp.lt.s32.totalorder %s19, 1
      %s214 = scalar_select %p213, %s19, 1
      %p215 = scmp.lt.s32.totalorder %s20, 0
      %s216 = scalar_select %p215, %s20, 0
      %p217 = scmp.lt.s32.totalorder %s21, 0
      %s218 = scalar_select %p217, %s21, 0
      %s219 = smul.addr %s216, 36
      %s220 = sadd.s32 %s218, %s219
      %s221 = smul.addr %s214, 36
      %s222 = sadd.s32 %s220, %s221
      %s223 = smul.addr %s222, 8
      %s224 = scalar_lea.vmem %s3, %s223
      %p225 = scmp.lt.s32.totalorder %s19, 1
      %s226 = scalar_select %p225, %s19, 1
      %p227 = scmp.lt.s32.totalorder %s20, 0
      %s228 = scalar_select %p227, %s20, 0
      %s229 = smul.addr %s228, 43
      %s230 = smul.addr %s226, 43
      %s231 = sadd.s32 %s229, %s230
      %s232 = smul.addr %s231, 4
      %s233 = scalar_lea.vmem %s0, %s232
      %p234 = scmp.lt.s32.totalorder %s21, 0
      %s235 = scalar_select %p234, %s21, 0
      %s236 = smul.addr %s235, 4
      %s237 = scalar_lea.vmem %s1, %s236
      %p238 = scmp.lt.s32.totalorder %s21, 0
      %s239 = scalar_select %p238, %s21, 0
      %s240 = scalar_lea.vmem %s2, %s239
      %p241 = scmp.lt.s32.totalorder %s19, 1
      %s242 = scalar_select %p241, %s19, 1
      %p243 = scmp.lt.s32.totalorder %s20, 0
      %s244 = scalar_select %p243, %s20, 0
      %p245 = scmp.lt.s32.totalorder %s21, 0
      %s246 = scalar_select %p245, %s21, 0
      %s247 = smul.addr %s244, 36
      %s248 = sadd.s32 %s246, %s247
      %s249 = smul.addr %s242, 36
      %s250 = sadd.s32 %s248, %s249
      %s251 = smul.addr %s250, 8
      %s252 = scalar_lea.vmem %s3, %s251
      %v254 = vld [vmem:[%s240] sm:$0x1]
      %v255 = vld [vmem:[%s233] sm:$0xf]
      %v256 = vld [vmem:[%s233 + $0x4] sm:$0xf]
      %v257 = vld [vmem:[%s233 + $0x8] sm:$0xf]
      %v258 = vld [vmem:[%s233 + $0xc] sm:$0xf]
      %v259 = vld [vmem:[%s233 + $0x10] sm:$0xf]
      %v260 = vld [vmem:[%s233 + $0x14] sm:$0xf]
      %v261 = vld [vmem:[%s233 + $0x18] sm:$0xf]
      %v262 = vld [vmem:[%s233 + $0x1c] sm:$0xf]
      %v263 = vld [vmem:[%s233 + $0x20] sm:$0xf]
      %v264 = vld [vmem:[%s233 + $0x24] sm:$0xf]
      %v265 = vld [vmem:[%s233 + $0x28] sm:$0xf]
      %v266 = vld [vmem:[%s233 + $0x2c] sm:$0xf]
      %v267 = vld [vmem:[%s237] sm:$0xf]
      %v268 = vld [vmem:[%s237 + $0x4] sm:$0xf]
      %v269 = vld [vmem:[%s237 + $0x8] sm:$0xf]
      %v270 = vld [vmem:[%s237 + $0xc] sm:$0xf]
      %v271 = vld [vmem:[%s237 + $0x10] sm:$0xf]
      %v272 = vld [vmem:[%s237 + $0x14] sm:$0xf]
      %v273 = vld [vmem:[%s237 + $0x18] sm:$0xf]
      %v274 = vld [vmem:[%s237 + $0x1c] sm:$0xf]
      %v275 = vld [vmem:[%s237 + $0x20] sm:$0xf]
      %v276 = vld [vmem:[%s237 + $0x24] sm:$0xf]
      %v277 = vld [vmem:[%s237 + $0x28] sm:$0xf]
      %v278 = vld [vmem:[%s237 + $0x2c] sm:$0xf]
      %v279 = vld [vmem:[%s237 + $0x30] sm:$0xf]
      %v280 = vld [vmem:[%s237 + $0x34] sm:$0xf]
      %v281 = vld [vmem:[%s237 + $0x38] sm:$0xf]
      %v282 = vld [vmem:[%s237 + $0x3c] sm:$0xf]
      %v283 = vld [vmem:[%s233 + $0x30] sm:$0x1]
      %s284 = scalar_lea.vmem %s237, 64
      %v285 = vld [vmem:[%s284] sm:$0xf]
      %v286 = vld [vmem:[%s284 + $0x4] sm:$0xf]
      %v287 = vld [vmem:[%s284 + $0x8] sm:$0xf]
      %v288 = vld [vmem:[%s284 + $0xc] sm:$0xf]
      %v289 = vld [vmem:[%s284 + $0x10] sm:$0xf]
      %v290 = vld [vmem:[%s284 + $0x14] sm:$0xf]
      %v291 = vld [vmem:[%s284 + $0x18] sm:$0xf]
      %v292 = vld [vmem:[%s284 + $0x1c] sm:$0xf]
      %v293 = vld [vmem:[%s284 + $0x20] sm:$0xf]
      %v294 = vld [vmem:[%s284 + $0x24] sm:$0xf]
      %v295 = vld [vmem:[%s284 + $0x28] sm:$0xf]
      %v296 = vld [vmem:[%s284 + $0x2c] sm:$0xf]
      %v297 = vld [vmem:[%s284 + $0x30] sm:$0xf]
      %v298 = vld [vmem:[%s284 + $0x34] sm:$0xf]
      %v299 = vld [vmem:[%s284 + $0x38] sm:$0xf]
      %v300 = vld [vmem:[%s284 + $0x3c] sm:$0xf]
      %v314 = vunpack.c.l.b16 %v255
      %v315 = vunpack.c.l.b16 %v256
      %v316 = vunpack.c.l.b16 %v257
      %v317 = vunpack.c.l.b16 %v258
      %v318 = vunpack.c.l.b16 %v259
      %v319 = vunpack.c.l.b16 %v260
      %v320 = vunpack.c.l.b16 %v261
      %v321 = vunpack.c.l.b16 %v262
      %v322 = vunpack.c.l.b16 %v263
      %v323 = vunpack.c.l.b16 %v264
      %v324 = vunpack.c.l.b16 %v265
      %v325 = vunpack.c.l.b16 %v266
      %v326 = vunpack.c.l.b16 %v283
      %v327 = vpack.c.b16 %v315, %v314
      %v328 = vpack.c.b16 %v317, %v316
      %v329 = vpack.c.b16 %v319, %v318
      %v330 = vpack.c.b16 %v321, %v320
      %v331 = vpack.c.b16 %v323, %v322
      %v332 = vpack.c.b16 %v325, %v324
      %v333 = vpack.c.b16 %v326, %v326
      %vm334 = vsmask.f32 7424
      %v336 = vshrl.u32 %v327, 16
      %v338 = vshll.u32 %v327, 16
      %v340 = vrot.slane %v338, 1
      %v341 = vor.u32 %v336, %v340
      %v343 = vshll.u32 %v328, 16
      %v345 = vrot.slane %v343, 1
      %v346 = vsel %vm334, %v341, %v345
      %v347 = vshrl.u32 %v328, 16
      %v349 = vor.u32 %v347, %v345
      %v351 = vshll.u32 %v329, 16
      %v353 = vrot.slane %v351, 1
      %v354 = vsel %vm334, %v349, %v353
      %v355 = vshrl.u32 %v329, 16
      %v357 = vor.u32 %v355, %v353
      %v359 = vshll.u32 %v330, 16
      %v361 = vrot.slane %v359, 1
      %v362 = vsel %vm334, %v357, %v361
      %v363 = vshrl.u32 %v330, 16
      %v365 = vor.u32 %v363, %v361
      %v367 = vshll.u32 %v331, 16
      %v369 = vrot.slane %v367, 1
      %v370 = vsel %vm334, %v365, %v369
      %v371 = vshrl.u32 %v331, 16
      %v373 = vor.u32 %v371, %v369
      %v375 = vshll.u32 %v332, 16
      %v377 = vrot.slane %v375, 1
      %v378 = vsel %vm334, %v373, %v377
      %v379 = vshrl.u32 %v332, 16
      %v381 = vor.u32 %v379, %v377
      %v383 = vshll.u32 %v333, 16
      %v385 = vrot.slane %v383, 1
      %v386 = vsel %vm334, %v381, %v385
      %v409 = vunpack.c.l.b16 %v285
      %v410 = vunpack.c.l.b16 %v286
      %v411 = vunpack.c.l.b16 %v287
      %v412 = vunpack.c.l.b16 %v288
      %v413 = vunpack.c.l.b16 %v289
      %v414 = vunpack.c.l.b16 %v290
      %v415 = vunpack.c.l.b16 %v291
      %v416 = vunpack.c.l.b16 %v292
      %v417 = vunpack.c.l.b16 %v293
      %v418 = vunpack.c.l.b16 %v294
      %v419 = vunpack.c.l.b16 %v295
      %v420 = vunpack.c.l.b16 %v296
      %v421 = vunpack.c.l.b16 %v297
      %v422 = vunpack.c.l.b16 %v298
      %v423 = vunpack.c.l.b16 %v299
      %v424 = vunpack.c.l.b16 %v300
      %v425 = vpack.c.b16 %v410, %v409
      %v426 = vpack.c.b16 %v412, %v411
      %v427 = vpack.c.b16 %v414, %v413
      %v428 = vpack.c.b16 %v416, %v415
      %v429 = vpack.c.b16 %v418, %v417
      %v430 = vpack.c.b16 %v420, %v419
      %v431 = vpack.c.b16 %v422, %v421
      %v432 = vpack.c.b16 %v424, %v423
      %441 = vmatprep.subr.bf16.mxu0 0
      %442 = vmatpush1.bf16.msra.mxu0 %v425
      %443 = vmatprep.subr.bf16.mxu0 0
      %444 = vmatpush1.bf16.msra.mxu0 %v426
      %445 = vmatprep.subr.bf16.mxu0 0
      %446 = vmatpush1.bf16.msra.mxu0 %v427
      %447 = vmatprep.subr.bf16.mxu0 0
      %448 = vmatpush1.bf16.msra.mxu0 %v428
      %449 = vmatprep.subr.bf16.mxu0 0
      %450 = vmatpush1.bf16.msra.mxu0 %v429
      %451 = vmatprep.subr.bf16.mxu0 0
      %452 = vmatpush1.bf16.msra.mxu0 %v430
      %453 = vmatprep.subr.bf16.mxu0 0
      %454 = vmatpush1.bf16.msra.mxu0 %v431
      %455 = vmatprep.subr.bf16.mxu0 0
      %456 = vmatpush1.bf16.msra.mxu0 %v432
      %457 = vmatprep.subr.bf16.mxu0 0
      %458 = vmatpush1.bf16.msra.mxu0 0
      %459 = vmatprep.subr.bf16.mxu0 0
      %460 = vmatpush1.bf16.msra.mxu0 0
      %461 = vmatprep.subr.bf16.mxu0 0
      %462 = vmatpush1.bf16.msra.mxu0 0
      %463 = vmatprep.subr.bf16.mxu0 0
      %464 = vmatpush1.bf16.msra.mxu0 0
      %465 = vmatprep.subr.bf16.mxu0 0
      %466 = vmatpush1.bf16.msra.mxu0 0
      %467 = vmatprep.subr.bf16.mxu0 0
      %468 = vmatpush1.bf16.msra.mxu0 0
      %469 = vmatprep.subr.bf16.mxu0 0
      %470 = vmatpush1.bf16.msra.mxu0 0
      %471 = vmatprep.subr.bf16.mxu0 0
      %472 = vmatpush1.bf16.msra.mxu0 0
      %473 = vmatprep.mubr.bf16.mxu0 0
      %474 = vmatmul.mubr.bf16.gmra.mrb[0].mxu0 %v346
      %v475 = vpop.f32.mrb[0].mxu0
      %v476 = vadd.f32 0.0, %v475
      %v477 = vpop.f32.mrb[0].mxu0
      %v478 = vpop.f32.mrb[0].mxu0
      %v479 = vadd.f32 0.0, %v478
      %v480 = vpop.f32.mrb[0].mxu0
      %481 = vmatprep.mubr.bf16.mxu0 0
      %482 = vmatmul.mubr.bf16.gmra.mrb[0].mxu0 %v354
      %v483 = vpop.f32.mrb[0].mxu0
      %v484 = vadd.f32 0.0, %v483
      %v485 = vpop.f32.mrb[0].mxu0
      %v486 = vpop.f32.mrb[0].mxu0
      %v487 = vadd.f32 0.0, %v486
      %v488 = vpop.f32.mrb[0].mxu0
      %489 = vmatprep.mubr.bf16.mxu0 0
      %490 = vmatmul.mubr.bf16.gmra.mrb[0].mxu0 %v362
      %v491 = vpop.f32.mrb[0].mxu0
      %v492 = vadd.f32 0.0, %v491
      %v493 = vpop.f32.mrb[0].mxu0
      %v494 = vpop.f32.mrb[0].mxu0
      %v495 = vadd.f32 0.0, %v494
      %v496 = vpop.f32.mrb[0].mxu0
      %497 = vmatprep.mubr.bf16.mxu0 0
      %498 = vmatmul.mubr.bf16.gmra.mrb[0].mxu0 %v370
      %v499 = vpop.f32.mrb[0].mxu0
      %v500 = vadd.f32 0.0, %v499
      %v501 = vpop.f32.mrb[0].mxu0
      %v502 = vpop.f32.mrb[0].mxu0
      %v503 = vadd.f32 0.0, %v502
      %v504 = vpop.f32.mrb[0].mxu0
      %505 = vmatprep.mubr.bf16.mxu0 0
      %506 = vmatmul.mubr.bf16.gmra.mrb[0].mxu0 %v378
      %v507 = vpop.f32.mrb[0].mxu0
      %v508 = vadd.f32 0.0, %v507
      %v509 = vpop.f32.mrb[0].mxu0
      %v510 = vpop.f32.mrb[0].mxu0
      %v511 = vadd.f32 0.0, %v510
      %v512 = vpop.f32.mrb[0].mxu0
      %513 = vmatprep.mubr.bf16.mxu0 0
      %514 = vmatmul.mubr.bf16.gmra.mrb[0].mxu0 %v386
      %v515 = vpop.f32.mrb[0].mxu0
      %v516 = vadd.f32 0.0, %v515
      %v517 = vpop.f32.mrb[0].mxu0
      %v518 = vpop.f32.mrb[0].mxu0
      %v519 = vadd.f32 0.0, %v518
      %v520 = vpop.f32.mrb[0].mxu0
      %521 = vdwg.mxu0
      %v544 = vunpack.c.l.b16 %v267
      %v545 = vunpack.c.l.b16 %v268
      %v546 = vunpack.c.l.b16 %v269
      %v547 = vunpack.c.l.b16 %v270
      %v548 = vunpack.c.l.b16 %v271
      %v549 = vunpack.c.l.b16 %v272
      %v550 = vunpack.c.l.b16 %v273
      %v551 = vunpack.c.l.b16 %v274
      %v552 = vunpack.c.l.b16 %v275
      %v553 = vunpack.c.l.b16 %v276
      %v554 = vunpack.c.l.b16 %v277
      %v555 = vunpack.c.l.b16 %v278
      %v556 = vunpack.c.l.b16 %v279
      %v557 = vunpack.c.l.b16 %v280
      %v558 = vunpack.c.l.b16 %v281
      %v559 = vunpack.c.l.b16 %v282
      %v560 = vpack.c.b16 %v545, %v544
      %v561 = vpack.c.b16 %v547, %v546
      %v562 = vpack.c.b16 %v549, %v548
      %v563 = vpack.c.b16 %v551, %v550
      %v564 = vpack.c.b16 %v553, %v552
      %v565 = vpack.c.b16 %v555, %v554
      %v566 = vpack.c.b16 %v557, %v556
      %v567 = vpack.c.b16 %v559, %v558
      %576 = vmatprep.subr.bf16.mxu0 0
      %577 = vmatpush1.bf16.msra.mxu0 %v560
      %578 = vmatprep.subr.bf16.mxu0 0
      %579 = vmatpush1.bf16.msra.mxu0 %v561
      %580 = vmatprep.subr.bf16.mxu0 0
      %581 = vmatpush1.bf16.msra.mxu0 %v562
      %582 = vmatprep.subr.bf16.mxu0 0
      %583 = vmatpush1.bf16.msra.mxu0 %v563
      %584 = vmatprep.subr.bf16.mxu0 0
      %585 = vmatpush1.bf16.msra.mxu0 %v564
      %586 = vmatprep.subr.bf16.mxu0 0
      %587 = vmatpush1.bf16.msra.mxu0 %v565
      %588 = vmatprep.subr.bf16.mxu0 0
      %589 = vmatpush1.bf16.msra.mxu0 %v566
      %590 = vmatprep.subr.bf16.mxu0 0
      %591 = vmatpush1.bf16.msra.mxu0 %v567
      %592 = vmatprep.subr.bf16.mxu0 0
      %593 = vmatpush1.bf16.msra.mxu0 0
      %594 = vmatprep.subr.bf16.mxu0 0
      %595 = vmatpush1.bf16.msra.mxu0 0
      %596 = vmatprep.subr.bf16.mxu0 0
      %597 = vmatpush1.bf16.msra.mxu0 0
      %598 = vmatprep.subr.bf16.mxu0 0
      %599 = vmatpush1.bf16.msra.mxu0 0
      %600 = vmatprep.subr.bf16.mxu0 0
      %601 = vmatpush1.bf16.msra.mxu0 0
      %602 = vmatprep.subr.bf16.mxu0 0
      %603 = vmatpush1.bf16.msra.mxu0 0
      %604 = vmatprep.subr.bf16.mxu0 0
      %605 = vmatpush1.bf16.msra.mxu0 0
      %606 = vmatprep.subr.bf16.mxu0 0
      %607 = vmatpush1.bf16.msra.mxu0 0
      %608 = vmatprep.mubr.bf16.mxu0 0
      %609 = vmatmul.mubr.bf16.gmra.mrb[0].mxu0 %v327
      %v610 = vpop.f32.mrb[0].mxu0
      %v611 = vadd.f32 %v476, %v610
      %v612 = vpop.f32.mrb[0].mxu0
      %v613 = vpop.f32.mrb[0].mxu0
      %v614 = vadd.f32 %v479, %v613
      %v615 = vpop.f32.mrb[0].mxu0
      %616 = vmatprep.mubr.bf16.mxu0 0
      %617 = vmatmul.mubr.bf16.gmra.mrb[0].mxu0 %v328
      %v618 = vpop.f32.mrb[0].mxu0
      %v619 = vadd.f32 %v484, %v618
      %v620 = vpop.f32.mrb[0].mxu0
      %v621 = vpop.f32.mrb[0].mxu0
      %v622 = vadd.f32 %v487, %v621
      %v623 = vpop.f32.mrb[0].mxu0
      %624 = vmatprep.mubr.bf16.mxu0 0
      %625 = vmatmul.mubr.bf16.gmra.mrb[0].mxu0 %v329
      %v626 = vpop.f32.mrb[0].mxu0
      %v627 = vadd.f32 %v492, %v626
      %v628 = vpop.f32.mrb[0].mxu0
      %v629 = vpop.f32.mrb[0].mxu0
      %v630 = vadd.f32 %v495, %v629
      %v631 = vpop.f32.mrb[0].mxu0
      %632 = vmatprep.mubr.bf16.mxu0 0
      %633 = vmatmul.mubr.bf16.gmra.mrb[0].mxu0 %v330
      %v634 = vpop.f32.mrb[0].mxu0
      %v635 = vadd.f32 %v500, %v634
      %v636 = vpop.f32.mrb[0].mxu0
      %v637 = vpop.f32.mrb[0].mxu0
      %v638 = vadd.f32 %v503, %v637
      %v639 = vpop.f32.mrb[0].mxu0
      %640 = vmatprep.mubr.bf16.mxu0 0
      %641 = vmatmul.mubr.bf16.gmra.mrb[0].mxu0 %v331
      %v642 = vpop.f32.mrb[0].mxu0
      %v643 = vadd.f32 %v508, %v642
      %v644 = vpop.f32.mrb[0].mxu0
      %v645 = vpop.f32.mrb[0].mxu0
      %v646 = vadd.f32 %v511, %v645
      %v647 = vpop.f32.mrb[0].mxu0
      %648 = vmatprep.mubr.bf16.mxu0 0
      %649 = vmatmul.mubr.bf16.gmra.mrb[0].mxu0 %v332
      %v650 = vpop.f32.mrb[0].mxu0
      %v651 = vadd.f32 %v516, %v650
      %v652 = vpop.f32.mrb[0].mxu0
      %v653 = vpop.f32.mrb[0].mxu0
      %v654 = vadd.f32 %v519, %v653
      %v655 = vpop.f32.mrb[0].mxu0
      %656 = vdwg.mxu0
      %v657 = vld [vmem:[%s233] sm:$0xe]
      %s658 = scalar_lea.vmem %s237, 128
      %v659 = vld [vmem:[%s658] sm:$0xf]
      %v660 = vld [vmem:[%s658 + $0x4] sm:$0xf]
      %v661 = vld [vmem:[%s658 + $0x8] sm:$0xf]
      %v662 = vld [vmem:[%s658 + $0xc] sm:$0xf]
      %v663 = vld [vmem:[%s658 + $0x10] sm:$0xf]
      %v664 = vld [vmem:[%s658 + $0x14] sm:$0xf]
      %v665 = vld [vmem:[%s658 + $0x18] sm:$0xf]
      %v666 = vld [vmem:[%s658 + $0x1c] sm:$0xf]
      %v667 = vld [vmem:[%s658 + $0x20] sm:$0xf]
      %v668 = vld [vmem:[%s658 + $0x24] sm:$0xf]
      %v669 = vld [vmem:[%s658 + $0x28] sm:$0xf]
      %v670 = vld [vmem:[%s658 + $0x2c] sm:$0xf]
      %v671 = vld [vmem:[%s658 + $0x30] sm:$0xf]
      %v672 = vld [vmem:[%s658 + $0x34] sm:$0xf]
      %v673 = vld [vmem:[%s658 + $0x38] sm:$0xf]
      %v674 = vld [vmem:[%s658 + $0x3c] sm:$0xf]
      %v676 = vunpack.c.l.b16 %v657
      %v677 = vpack.c.b16 %v315, %v676
      %vm678 = vcmask 1046528
      %v679 = vrot.slane %v677, 1
      %v680 = vrot.slane %v328, 1
      %v681 = vsel %vm678, %v679, %v680
      %v682 = vrot.slane %v329, 1
      %v683 = vsel %vm678, %v680, %v682
      %v684 = vrot.slane %v330, 1
      %v685 = vsel %vm678, %v682, %v684
      %v686 = vrot.slane %v331, 1
      %v687 = vsel %vm678, %v684, %v686
      %v688 = vrot.slane %v332, 1
      %v689 = vsel %vm678, %v686, %v688
      %v690 = vrot.slane %v333, 1
      %v691 = vsel %vm678, %v688, %v690
      %v714 = vunpack.c.l.b16 %v659
      %v715 = vunpack.c.l.b16 %v660
      %v716 = vunpack.c.l.b16 %v661
      %v717 = vunpack.c.l.b16 %v662
      %v718 = vunpack.c.l.b16 %v663
      %v719 = vunpack.c.l.b16 %v664
      %v720 = vunpack.c.l.b16 %v665
      %v721 = vunpack.c.l.b16 %v666
      %v722 = vunpack.c.l.b16 %v667
      %v723 = vunpack.c.l.b16 %v668
      %v724 = vunpack.c.l.b16 %v669
      %v725 = vunpack.c.l.b16 %v670
      %v726 = vunpack.c.l.b16 %v671
      %v727 = vunpack.c.l.b16 %v672
      %v728 = vunpack.c.l.b16 %v673
      %v729 = vunpack.c.l.b16 %v674
      %v730 = vpack.c.b16 %v715, %v714
      %v731 = vpack.c.b16 %v717, %v716
      %v732 = vpack.c.b16 %v719, %v718
      %v733 = vpack.c.b16 %v721, %v720
      %v734 = vpack.c.b16 %v723, %v722
      %v735 = vpack.c.b16 %v725, %v724
      %v736 = vpack.c.b16 %v727, %v726
      %v737 = vpack.c.b16 %v729, %v728
      %746 = vmatprep.subr.bf16.mxu0 0
      %747 = vmatpush1.bf16.msra.mxu0 %v730
      %748 = vmatprep.subr.bf16.mxu0 0
      %749 = vmatpush1.bf16.msra.mxu0 %v731
      %750 = vmatprep.subr.bf16.mxu0 0
      %751 = vmatpush1.bf16.msra.mxu0 %v732
      %752 = vmatprep.subr.bf16.mxu0 0
      %753 = vmatpush1.bf16.msra.mxu0 %v733
      %754 = vmatprep.subr.bf16.mxu0 0
      %755 = vmatpush1.bf16.msra.mxu0 %v734
      %756 = vmatprep.subr.bf16.mxu0 0
      %757 = vmatpush1.bf16.msra.mxu0 %v735
      %758 = vmatprep.subr.bf16.mxu0 0
      %759 = vmatpush1.bf16.msra.mxu0 %v736
      %760 = vmatprep.subr.bf16.mxu0 0
      %761 = vmatpush1.bf16.msra.mxu0 %v737
      %762 = vmatprep.subr.bf16.mxu0 0
      %763 = vmatpush1.bf16.msra.mxu0 0
      %764 = vmatprep.subr.bf16.mxu0 0
      %765 = vmatpush1.bf16.msra.mxu0 0
      %766 = vmatprep.subr.bf16.mxu0 0
      %767 = vmatpush1.bf16.msra.mxu0 0
      %768 = vmatprep.subr.bf16.mxu0 0
      %769 = vmatpush1.bf16.msra.mxu0 0
      %770 = vmatprep.subr.bf16.mxu0 0
      %771 = vmatpush1.bf16.msra.mxu0 0
      %772 = vmatprep.subr.bf16.mxu0 0
      %773 = vmatpush1.bf16.msra.mxu0 0
      %774 = vmatprep.subr.bf16.mxu0 0
      %775 = vmatpush1.bf16.msra.mxu0 0
      %776 = vmatprep.subr.bf16.mxu0 0
      %777 = vmatpush1.bf16.msra.mxu0 0
      %778 = vmatprep.mubr.bf16.mxu0 0
      %779 = vmatmul.mubr.bf16.gmra.mrb[0].mxu0 %v681
      %v780 = vpop.f32.mrb[0].mxu0
      %v781 = vadd.f32 0.0, %v780
      %v782 = vpop.f32.mrb[0].mxu0
      %v783 = vpop.f32.mrb[0].mxu0
      %v784 = vadd.f32 0.0, %v783
      %v785 = vpop.f32.mrb[0].mxu0
      %786 = vmatprep.mubr.bf16.mxu0 0
      %787 = vmatmul.mubr.bf16.gmra.mrb[0].mxu0 %v683
      %v788 = vpop.f32.mrb[0].mxu0
      %v789 = vadd.f32 0.0, %v788
      %v790 = vpop.f32.mrb[0].mxu0
      %v791 = vpop.f32.mrb[0].mxu0
      %v792 = vadd.f32 0.0, %v791
      %v793 = vpop.f32.mrb[0].mxu0
      %794 = vmatprep.mubr.bf16.mxu0 0
      %795 = vmatmul.mubr.bf16.gmra.mrb[0].mxu0 %v685
      %v796 = vpop.f32.mrb[0].mxu0
      %v797 = vadd.f32 0.0, %v796
      %v798 = vpop.f32.mrb[0].mxu0
      %v799 = vpop.f32.mrb[0].mxu0
      %v800 = vadd.f32 0.0, %v799
      %v801 = vpop.f32.mrb[0].mxu0
      %802 = vmatprep.mubr.bf16.mxu0 0
      %803 = vmatmul.mubr.bf16.gmra.mrb[0].mxu0 %v687
      %v804 = vpop.f32.mrb[0].mxu0
      %v805 = vadd.f32 0.0, %v804
      %v806 = vpop.f32.mrb[0].mxu0
      %v807 = vpop.f32.mrb[0].mxu0
      %v808 = vadd.f32 0.0, %v807
      %v809 = vpop.f32.mrb[0].mxu0
      %810 = vmatprep.mubr.bf16.mxu0 0
      %811 = vmatmul.mubr.bf16.gmra.mrb[0].mxu0 %v689
      %v812 = vpop.f32.mrb[0].mxu0
      %v813 = vadd.f32 0.0, %v812
      %v814 = vpop.f32.mrb[0].mxu0
      %v815 = vpop.f32.mrb[0].mxu0
      %v816 = vadd.f32 0.0, %v815
      %v817 = vpop.f32.mrb[0].mxu0
      %818 = vmatprep.mubr.bf16.mxu0 0
      %819 = vmatmul.mubr.bf16.gmra.mrb[0].mxu0 %v691
      %v820 = vpop.f32.mrb[0].mxu0
      %v821 = vadd.f32 0.0, %v820
      %v822 = vpop.f32.mrb[0].mxu0
      %v823 = vpop.f32.mrb[0].mxu0
      %v824 = vadd.f32 0.0, %v823
      %v825 = vpop.f32.mrb[0].mxu0
      %826 = vdwg.mxu0
      %v827 = vadd.f32 %v611, %v781
      %v828 = vadd.f32 %v614, %v784
      %v829 = vadd.f32 %v619, %v789
      %v830 = vadd.f32 %v622, %v792
      %v831 = vadd.f32 %v627, %v797
      %v832 = vadd.f32 %v630, %v800
      %v833 = vadd.f32 %v635, %v805
      %v834 = vadd.f32 %v638, %v808
      %v835 = vadd.f32 %v643, %v813
      %v836 = vadd.f32 %v646, %v816
      %v837 = vadd.f32 %v651, %v821
      %v838 = vadd.f32 %v654, %v824
      %v839 = vld [vmem:[%s233 + $0x8] sm:$0xe]
      %v840 = vld [vmem:[%s233 + $0xc] sm:$0xf]
      %v841 = vld [vmem:[%s233 + $0x10] sm:$0xf]
      %v842 = vld [vmem:[%s233 + $0x14] sm:$0xf]
      %v843 = vld [vmem:[%s233 + $0x18] sm:$0xf]
      %v844 = vld [vmem:[%s233 + $0x1c] sm:$0xf]
      %v845 = vld [vmem:[%s233 + $0x20] sm:$0xf]
      %v846 = vld [vmem:[%s233 + $0x24] sm:$0xf]
      %v847 = vld [vmem:[%s233 + $0x28] sm:$0xf]
      %v848 = vld [vmem:[%s233 + $0x2c] sm:$0xf]
      %v849 = vld [vmem:[%s233 + $0x30] sm:$0xf]
      %v850 = vld [vmem:[%s233 + $0x34] sm:$0xf]
      %v851 = vld [vmem:[%s233 + $0x38] sm:$0x1]
      %s852 = scalar_lea.vmem %s237, 192
      %v853 = vld [vmem:[%s852] sm:$0xf]
      %v854 = vld [vmem:[%s852 + $0x4] sm:$0xf]
      %v855 = vld [vmem:[%s852 + $0x8] sm:$0xf]
      %v856 = vld [vmem:[%s852 + $0xc] sm:$0xf]
      %v857 = vld [vmem:[%s852 + $0x10] sm:$0xf]
      %v858 = vld [vmem:[%s852 + $0x14] sm:$0xf]
      %v859 = vld [vmem:[%s852 + $0x18] sm:$0xf]
      %v860 = vld [vmem:[%s852 + $0x1c] sm:$0xf]
      %v861 = vld [vmem:[%s852 + $0x20] sm:$0xf]
      %v862 = vld [vmem:[%s852 + $0x24] sm:$0xf]
      %v863 = vld [vmem:[%s852 + $0x28] sm:$0xf]
      %v864 = vld [vmem:[%s852 + $0x2c] sm:$0xf]
      %v865 = vld [vmem:[%s852 + $0x30] sm:$0xf]
      %v866 = vld [vmem:[%s852 + $0x34] sm:$0xf]
      %v867 = vld [vmem:[%s852 + $0x38] sm:$0xf]
      %v868 = vld [vmem:[%s852 + $0x3c] sm:$0xf]
      %v882 = vunpack.c.l.b16 %v839
      %v883 = vunpack.c.l.b16 %v840
      %v884 = vunpack.c.l.b16 %v841
      %v885 = vunpack.c.l.b16 %v842
      %v886 = vunpack.c.l.b16 %v843
      %v887 = vunpack.c.l.b16 %v844
      %v888 = vunpack.c.l.b16 %v845
      %v889 = vunpack.c.l.b16 %v846
      %v890 = vunpack.c.l.b16 %v847
      %v891 = vunpack.c.l.b16 %v848
      %v892 = vunpack.c.l.b16 %v849
      %v893 = vunpack.c.l.b16 %v850
      %v894 = vunpack.c.l.b16 %v851
      %v895 = vpack.c.b16 %v883, %v882
      %v896 = vpack.c.b16 %v885, %v884
      %v897 = vpack.c.b16 %v887, %v886
      %v898 = vpack.c.b16 %v889, %v888
      %v899 = vpack.c.b16 %v891, %v890
      %v900 = vpack.c.b16 %v893, %v892
      %v901 = vpack.c.b16 %v894, %v894
      %v902 = vrot.slane %v895, 1
      %v903 = vrot.slane %v896, 1
      %v904 = vsel %vm678, %v902, %v903
      %v905 = vrot.slane %v897, 1
      %v906 = vsel %vm678, %v903, %v905
      %v907 = vrot.slane %v898, 1
      %v908 = vsel %vm678, %v905, %v907
      %v909 = vrot.slane %v899, 1
      %v910 = vsel %vm678, %v907, %v909
      %v911 = vrot.slane %v900, 1
      %v912 = vsel %vm678, %v909, %v911
      %v913 = vrot.slane %v901, 1
      %v914 = vsel %vm678, %v911, %v913
      %v937 = vunpack.c.l.b16 %v853
      %v938 = vunpack.c.l.b16 %v854
      %v939 = vunpack.c.l.b16 %v855
      %v940 = vunpack.c.l.b16 %v856
      %v941 = vunpack.c.l.b16 %v857
      %v942 = vunpack.c.l.b16 %v858
      %v943 = vunpack.c.l.b16 %v859
      %v944 = vunpack.c.l.b16 %v860
      %v945 = vunpack.c.l.b16 %v861
      %v946 = vunpack.c.l.b16 %v862
      %v947 = vunpack.c.l.b16 %v863
      %v948 = vunpack.c.l.b16 %v864
      %v949 = vunpack.c.l.b16 %v865
      %v950 = vunpack.c.l.b16 %v866
      %v951 = vunpack.c.l.b16 %v867
      %v952 = vunpack.c.l.b16 %v868
      %v953 = vpack.c.b16 %v938, %v937
      %v954 = vpack.c.b16 %v940, %v939
      %v955 = vpack.c.b16 %v942, %v941
      %v956 = vpack.c.b16 %v944, %v943
      %v957 = vpack.c.b16 %v946, %v945
      %v958 = vpack.c.b16 %v948, %v947
      %v959 = vpack.c.b16 %v950, %v949
      %v960 = vpack.c.b16 %v952, %v951
      %969 = vmatprep.subr.bf16.mxu0 0
      %970 = vmatpush1.bf16.msra.mxu0 %v953
      %971 = vmatprep.subr.bf16.mxu0 0
      %972 = vmatpush1.bf16.msra.mxu0 %v954
      %973 = vmatprep.subr.bf16.mxu0 0
      %974 = vmatpush1.bf16.msra.mxu0 %v955
      %975 = vmatprep.subr.bf16.mxu0 0
      %976 = vmatpush1.bf16.msra.mxu0 %v956
      %977 = vmatprep.subr.bf16.mxu0 0
      %978 = vmatpush1.bf16.msra.mxu0 %v957
      %979 = vmatprep.subr.bf16.mxu0 0
      %980 = vmatpush1.bf16.msra.mxu0 %v958
      %981 = vmatprep.subr.bf16.mxu0 0
      %982 = vmatpush1.bf16.msra.mxu0 %v959
      %983 = vmatprep.subr.bf16.mxu0 0
      %984 = vmatpush1.bf16.msra.mxu0 %v960
      %985 = vmatprep.subr.bf16.mxu0 0
      %986 = vmatpush1.bf16.msra.mxu0 0
      %987 = vmatprep.subr.bf16.mxu0 0
      %988 = vmatpush1.bf16.msra.mxu0 0
      %989 = vmatprep.subr.bf16.mxu0 0
      %990 = vmatpush1.bf16.msra.mxu0 0
      %991 = vmatprep.subr.bf16.mxu0 0
      %992 = vmatpush1.bf16.msra.mxu0 0
      %993 = vmatprep.subr.bf16.mxu0 0
      %994 = vmatpush1.bf16.msra.mxu0 0
      %995 = vmatprep.subr.bf16.mxu0 0
      %996 = vmatpush1.bf16.msra.mxu0 0
      %997 = vmatprep.subr.bf16.mxu0 0
      %998 = vmatpush1.bf16.msra.mxu0 0
      %999 = vmatprep.subr.bf16.mxu0 0
      %1000 = vmatpush1.bf16.msra.mxu0 0
      %1001 = vmatprep.mubr.bf16.mxu0 0
      %1002 = vmatmul.mubr.bf16.gmra.mrb[0].mxu0 %v904
      %v1003 = vpop.f32.mrb[0].mxu0
      %v1004 = vadd.f32 0.0, %v1003
      %v1005 = vpop.f32.mrb[0].mxu0
      %v1006 = vpop.f32.mrb[0].mxu0
      %v1007 = vadd.f32 0.0, %v1006
      %v1008 = vpop.f32.mrb[0].mxu0
      %1009 = vmatprep.mubr.bf16.mxu0 0
      %1010 = vmatmul.mubr.bf16.gmra.mrb[0].mxu0 %v906
      %v1011 = vpop.f32.mrb[0].mxu0
      %v1012 = vadd.f32 0.0, %v1011
      %v1013 = vpop.f32.mrb[0].mxu0
      %v1014 = vpop.f32.mrb[0].mxu0
      %v1015 = vadd.f32 0.0, %v1014
      %v1016 = vpop.f32.mrb[0].mxu0
      %1017 = vmatprep.mubr.bf16.mxu0 0
      %1018 = vmatmul.mubr.bf16.gmra.mrb[0].mxu0 %v908
      %v1019 = vpop.f32.mrb[0].mxu0
      %v1020 = vadd.f32 0.0, %v1019
      %v1021 = vpop.f32.mrb[0].mxu0
      %v1022 = vpop.f32.mrb[0].mxu0
      %v1023 = vadd.f32 0.0, %v1022
      %v1024 = vpop.f32.mrb[0].mxu0
      %1025 = vmatprep.mubr.bf16.mxu0 0
      %1026 = vmatmul.mubr.bf16.gmra.mrb[0].mxu0 %v910
      %v1027 = vpop.f32.mrb[0].mxu0
      %v1028 = vadd.f32 0.0, %v1027
      %v1029 = vpop.f32.mrb[0].mxu0
      %v1030 = vpop.f32.mrb[0].mxu0
      %v1031 = vadd.f32 0.0, %v1030
      %v1032 = vpop.f32.mrb[0].mxu0
      %1033 = vmatprep.mubr.bf16.mxu0 0
      %1034 = vmatmul.mubr.bf16.gmra.mrb[0].mxu0 %v912
      %v1035 = vpop.f32.mrb[0].mxu0
      %v1036 = vadd.f32 0.0, %v1035
      %v1037 = vpop.f32.mrb[0].mxu0
      %v1038 = vpop.f32.mrb[0].mxu0
      %v1039 = vadd.f32 0.0, %v1038
      %v1040 = vpop.f32.mrb[0].mxu0
      %1041 = vmatprep.mubr.bf16.mxu0 0
      %1042 = vmatmul.mubr.bf16.gmra.mrb[0].mxu0 %v914
      %v1043 = vpop.f32.mrb[0].mxu0
      %v1044 = vadd.f32 0.0, %v1043
      %v1045 = vpop.f32.mrb[0].mxu0
      %v1046 = vpop.f32.mrb[0].mxu0
      %v1047 = vadd.f32 0.0, %v1046
      %v1048 = vpop.f32.mrb[0].mxu0
      %1049 = vdwg.mxu0
      %v1050 = vadd.f32 %v827, %v1004
      %v1051 = vadd.f32 %v828, %v1007
      %v1052 = vadd.f32 %v829, %v1012
      %v1053 = vadd.f32 %v830, %v1015
      %v1054 = vadd.f32 %v831, %v1020
      %v1055 = vadd.f32 %v832, %v1023
      %v1056 = vadd.f32 %v833, %v1028
      %v1057 = vadd.f32 %v834, %v1031
      %v1058 = vadd.f32 %v835, %v1036
      %v1059 = vadd.f32 %v836, %v1039
      %v1060 = vadd.f32 %v837, %v1044
      %v1061 = vadd.f32 %v838, %v1047
      %v1062 = vld [vmem:[%s233 + $0x38] sm:$0x3]
      %s1063 = scalar_lea.vmem %s237, 256
      %v1064 = vld [vmem:[%s1063] sm:$0xf]
      %v1065 = vld [vmem:[%s1063 + $0x4] sm:$0xf]
      %v1066 = vld [vmem:[%s1063 + $0x8] sm:$0xf]
      %v1067 = vld [vmem:[%s1063 + $0xc] sm:$0xf]
      %v1068 = vld [vmem:[%s1063 + $0x10] sm:$0xf]
      %v1069 = vld [vmem:[%s1063 + $0x14] sm:$0xf]
      %v1070 = vld [vmem:[%s1063 + $0x18] sm:$0xf]
      %v1071 = vld [vmem:[%s1063 + $0x1c] sm:$0xf]
      %v1072 = vld [vmem:[%s1063 + $0x20] sm:$0xf]
      %v1073 = vld [vmem:[%s1063 + $0x24] sm:$0xf]
      %v1074 = vld [vmem:[%s1063 + $0x28] sm:$0xf]
      %v1075 = vld [vmem:[%s1063 + $0x2c] sm:$0xf]
      %v1076 = vld [vmem:[%s1063 + $0x30] sm:$0xf]
      %v1077 = vld [vmem:[%s1063 + $0x34] sm:$0xf]
      %v1078 = vld [vmem:[%s1063 + $0x38] sm:$0xf]
      %v1079 = vld [vmem:[%s1063 + $0x3c] sm:$0xf]
      %v1081 = vunpack.c.l.b16 %v1062
      %v1082 = vpack.c.b16 %v1081, %v1081
      %vm1083 = vsmask.f32 6400
      %v1085 = vshrl.u32 %v895, 16
      %v1087 = vrot.slane %v1085, 1
      %v1088 = vshll.u32 %v895, 16
      %v1090 = vrot.slane %v1088, 2
      %v1091 = vor.u32 %v1087, %v1090
      %v1093 = vshrl.u32 %v896, 16
      %v1095 = vrot.slane %v1093, 1
      %v1096 = vshll.u32 %v896, 16
      %v1098 = vrot.slane %v1096, 2
      %v1099 = vor.u32 %v1095, %v1098
      %v1100 = vsel %vm1083, %v1091, %v1099
      %v1102 = vshrl.u32 %v897, 16
      %v1104 = vrot.slane %v1102, 1
      %v1105 = vshll.u32 %v897, 16
      %v1107 = vrot.slane %v1105, 2
      %v1108 = vor.u32 %v1104, %v1107
      %v1109 = vsel %vm1083, %v1099, %v1108
      %v1111 = vshrl.u32 %v898, 16
      %v1113 = vrot.slane %v1111, 1
      %v1114 = vshll.u32 %v898, 16
      %v1116 = vrot.slane %v1114, 2
      %v1117 = vor.u32 %v1113, %v1116
      %v1118 = vsel %vm1083, %v1108, %v1117
      %v1120 = vshrl.u32 %v899, 16
      %v1122 = vrot.slane %v1120, 1
      %v1123 = vshll.u32 %v899, 16
      %v1125 = vrot.slane %v1123, 2
      %v1126 = vor.u32 %v1122, %v1125
      %v1127 = vsel %vm1083, %v1117, %v1126
      %v1129 = vshrl.u32 %v900, 16
      %v1131 = vrot.slane %v1129, 1
      %v1132 = vshll.u32 %v900, 16
      %v1134 = vrot.slane %v1132, 2
      %v1135 = vor.u32 %v1131, %v1134
      %v1136 = vsel %vm1083, %v1126, %v1135
      %v1138 = vshrl.u32 %v1082, 16
      %v1140 = vrot.slane %v1138, 1
      %v1141 = vshll.u32 %v1082, 16
      %v1143 = vrot.slane %v1141, 2
      %v1144 = vor.u32 %v1140, %v1143
      %v1145 = vsel %vm1083, %v1135, %v1144
      %v1168 = vunpack.c.l.b16 %v1064
      %v1169 = vunpack.c.l.b16 %v1065
      %v1170 = vunpack.c.l.b16 %v1066
      %v1171 = vunpack.c.l.b16 %v1067
      %v1172 = vunpack.c.l.b16 %v1068
      %v1173 = vunpack.c.l.b16 %v1069
      %v1174 = vunpack.c.l.b16 %v1070
      %v1175 = vunpack.c.l.b16 %v1071
      %v1176 = vunpack.c.l.b16 %v1072
      %v1177 = vunpack.c.l.b16 %v1073
      %v1178 = vunpack.c.l.b16 %v1074
      %v1179 = vunpack.c.l.b16 %v1075
      %v1180 = vunpack.c.l.b16 %v1076
      %v1181 = vunpack.c.l.b16 %v1077
      %v1182 = vunpack.c.l.b16 %v1078
      %v1183 = vunpack.c.l.b16 %v1079
      %v1184 = vpack.c.b16 %v1169, %v1168
      %v1185 = vpack.c.b16 %v1171, %v1170
      %v1186 = vpack.c.b16 %v1173, %v1172
      %v1187 = vpack.c.b16 %v1175, %v1174
      %v1188 = vpack.c.b16 %v1177, %v1176
      %v1189 = vpack.c.b16 %v1179, %v1178
      %v1190 = vpack.c.b16 %v1181, %v1180
      %v1191 = vpack.c.b16 %v1183, %v1182
      %1200 = vmatprep.subr.bf16.mxu0 0
      %1201 = vmatpush1.bf16.msra.mxu0 %v1184
      %1202 = vmatprep.subr.bf16.mxu0 0
      %1203 = vmatpush1.bf16.msra.mxu0 %v1185
      %1204 = vmatprep.subr.bf16.mxu0 0
      %1205 = vmatpush1.bf16.msra.mxu0 %v1186
      %1206 = vmatprep.subr.bf16.mxu0 0
      %1207 = vmatpush1.bf16.msra.mxu0 %v1187
      %1208 = vmatprep.subr.bf16.mxu0 0
      %1209 = vmatpush1.bf16.msra.mxu0 %v1188
      %1210 = vmatprep.subr.bf16.mxu0 0
      %1211 = vmatpush1.bf16.msra.mxu0 %v1189
      %1212 = vmatprep.subr.bf16.mxu0 0
      %1213 = vmatpush1.bf16.msra.mxu0 %v1190
      %1214 = vmatprep.subr.bf16.mxu0 0
      %1215 = vmatpush1.bf16.msra.mxu0 %v1191
      %1216 = vmatprep.subr.bf16.mxu0 0
      %1217 = vmatpush1.bf16.msra.mxu0 0
      %1218 = vmatprep.subr.bf16.mxu0 0
      %1219 = vmatpush1.bf16.msra.mxu0 0
      %1220 = vmatprep.subr.bf16.mxu0 0
      %1221 = vmatpush1.bf16.msra.mxu0 0
      %1222 = vmatprep.subr.bf16.mxu0 0
      %1223 = vmatpush1.bf16.msra.mxu0 0
      %1224 = vmatprep.subr.bf16.mxu0 0
      %1225 = vmatpush1.bf16.msra.mxu0 0
      %1226 = vmatprep.subr.bf16.mxu0 0
      %1227 = vmatpush1.bf16.msra.mxu0 0
      %1228 = vmatprep.subr.bf16.mxu0 0
      %1229 = vmatpush1.bf16.msra.mxu0 0
      %1230 = vmatprep.subr.bf16.mxu0 0
      %1231 = vmatpush1.bf16.msra.mxu0 0
      %1232 = vmatprep.mubr.bf16.mxu0 0
      %1233 = vmatmul.mubr.bf16.gmra.mrb[0].mxu0 %v1100
      %v1234 = vpop.f32.mrb[0].mxu0
      %v1235 = vadd.f32 0.0, %v1234
      %v1236 = vpop.f32.mrb[0].mxu0
      %v1237 = vpop.f32.mrb[0].mxu0
      %v1238 = vadd.f32 0.0, %v1237
      %v1239 = vpop.f32.mrb[0].mxu0
      %1240 = vmatprep.mubr.bf16.mxu0 0
      %1241 = vmatmul.mubr.bf16.gmra.mrb[0].mxu0 %v1109
      %v1242 = vpop.f32.mrb[0].mxu0
      %v1243 = vadd.f32 0.0, %v1242
      %v1244 = vpop.f32.mrb[0].mxu0
      %v1245 = vpop.f32.mrb[0].mxu0
      %v1246 = vadd.f32 0.0, %v1245
      %v1247 = vpop.f32.mrb[0].mxu0
      %1248 = vmatprep.mubr.bf16.mxu0 0
      %1249 = vmatmul.mubr.bf16.gmra.mrb[0].mxu0 %v1118
      %v1250 = vpop.f32.mrb[0].mxu0
      %v1251 = vadd.f32 0.0, %v1250
      %v1252 = vpop.f32.mrb[0].mxu0
      %v1253 = vpop.f32.mrb[0].mxu0
      %v1254 = vadd.f32 0.0, %v1253
      %v1255 = vpop.f32.mrb[0].mxu0
      %1256 = vmatprep.mubr.bf16.mxu0 0
      %1257 = vmatmul.mubr.bf16.gmra.mrb[0].mxu0 %v1127
      %v1258 = vpop.f32.mrb[0].mxu0
      %v1259 = vadd.f32 0.0, %v1258
      %v1260 = vpop.f32.mrb[0].mxu0
      %v1261 = vpop.f32.mrb[0].mxu0
      %v1262 = vadd.f32 0.0, %v1261
      %v1263 = vpop.f32.mrb[0].mxu0
      %1264 = vmatprep.mubr.bf16.mxu0 0
      %1265 = vmatmul.mubr.bf16.gmra.mrb[0].mxu0 %v1136
      %v1266 = vpop.f32.mrb[0].mxu0
      %v1267 = vadd.f32 0.0, %v1266
      %v1268 = vpop.f32.mrb[0].mxu0
      %v1269 = vpop.f32.mrb[0].mxu0
      %v1270 = vadd.f32 0.0, %v1269
      %v1271 = vpop.f32.mrb[0].mxu0
      %1272 = vmatprep.mubr.bf16.mxu0 0
      %1273 = vmatmul.mubr.bf16.gmra.mrb[0].mxu0 %v1145
      %v1274 = vpop.f32.mrb[0].mxu0
      %v1275 = vadd.f32 0.0, %v1274
      %v1276 = vpop.f32.mrb[0].mxu0
      %v1277 = vpop.f32.mrb[0].mxu0
      %v1278 = vadd.f32 0.0, %v1277
      %v1279 = vpop.f32.mrb[0].mxu0
      %1280 = vdwg.mxu0
      %v1281 = vadd.f32 %v1050, %v1235
      %v1282 = vadd.f32 %v1051, %v1238
      %v1283 = vadd.f32 %v1052, %v1243
      %v1284 = vadd.f32 %v1053, %v1246
      %v1285 = vadd.f32 %v1054, %v1251
      %v1286 = vadd.f32 %v1055, %v1254
      %v1287 = vadd.f32 %v1056, %v1259
      %v1288 = vadd.f32 %v1057, %v1262
      %v1289 = vadd.f32 %v1058, %v1267
      %v1290 = vadd.f32 %v1059, %v1270
      %v1291 = vadd.f32 %v1060, %v1275
      %v1292 = vadd.f32 %v1061, %v1278
      %v1293 = vld [vmem:[%s233 + $0x8] sm:$0xc]
      %s1294 = scalar_lea.vmem %s237, 320
      %v1295 = vld [vmem:[%s1294] sm:$0xf]
      %v1296 = vld [vmem:[%s1294 + $0x4] sm:$0xf]
      %v1297 = vld [vmem:[%s1294 + $0x8] sm:$0xf]
      %v1298 = vld [vmem:[%s1294 + $0xc] sm:$0xf]
      %v1299 = vld [vmem:[%s1294 + $0x10] sm:$0xf]
      %v1300 = vld [vmem:[%s1294 + $0x14] sm:$0xf]
      %v1301 = vld [vmem:[%s1294 + $0x18] sm:$0xf]
      %v1302 = vld [vmem:[%s1294 + $0x1c] sm:$0xf]
      %v1303 = vld [vmem:[%s1294 + $0x20] sm:$0xf]
      %v1304 = vld [vmem:[%s1294 + $0x24] sm:$0xf]
      %v1305 = vld [vmem:[%s1294 + $0x28] sm:$0xf]
      %v1306 = vld [vmem:[%s1294 + $0x2c] sm:$0xf]
      %v1307 = vld [vmem:[%s1294 + $0x30] sm:$0xf]
      %v1308 = vld [vmem:[%s1294 + $0x34] sm:$0xf]
      %v1309 = vld [vmem:[%s1294 + $0x38] sm:$0xf]
      %v1310 = vld [vmem:[%s1294 + $0x3c] sm:$0xf]
      %v1312 = vunpack.c.l.b16 %v1293
      %v1313 = vpack.c.b16 %v883, %v1312
      %vm1314 = vcmask 1045504
      %v1315 = vrot.slane %v1313, 2
      %v1316 = vrot.slane %v896, 2
      %v1317 = vsel %vm1314, %v1315, %v1316
      %v1318 = vrot.slane %v897, 2
      %v1319 = vsel %vm1314, %v1316, %v1318
      %v1320 = vrot.slane %v898, 2
      %v1321 = vsel %vm1314, %v1318, %v1320
      %v1322 = vrot.slane %v899, 2
      %v1323 = vsel %vm1314, %v1320, %v1322
      %v1324 = vrot.slane %v900, 2
      %v1325 = vsel %vm1314, %v1322, %v1324
      %v1326 = vrot.slane %v1082, 2
      %v1327 = vsel %vm1314, %v1324, %v1326
      %v1350 = vunpack.c.l.b16 %v1295
      %v1351 = vunpack.c.l.b16 %v1296
      %v1352 = vunpack.c.l.b16 %v1297
      %v1353 = vunpack.c.l.b16 %v1298
      %v1354 = vunpack.c.l.b16 %v1299
      %v1355 = vunpack.c.l.b16 %v1300
      %v1356 = vunpack.c.l.b16 %v1301
      %v1357 = vunpack.c.l.b16 %v1302
      %v1358 = vunpack.c.l.b16 %v1303
      %v1359 = vunpack.c.l.b16 %v1304
      %v1360 = vunpack.c.l.b16 %v1305
      %v1361 = vunpack.c.l.b16 %v1306
      %v1362 = vunpack.c.l.b16 %v1307
      %v1363 = vunpack.c.l.b16 %v1308
      %v1364 = vunpack.c.l.b16 %v1309
      %v1365 = vunpack.c.l.b16 %v1310
      %v1366 = vpack.c.b16 %v1351, %v1350
      %v1367 = vpack.c.b16 %v1353, %v1352
      %v1368 = vpack.c.b16 %v1355, %v1354
      %v1369 = vpack.c.b16 %v1357, %v1356
      %v1370 = vpack.c.b16 %v1359, %v1358
      %v1371 = vpack.c.b16 %v1361, %v1360
      %v1372 = vpack.c.b16 %v1363, %v1362
      %v1373 = vpack.c.b16 %v1365, %v1364
      %1382 = vmatprep.subr.bf16.mxu0 0
      %1383 = vmatpush1.bf16.msra.mxu0 %v1366
      %1384 = vmatprep.subr.bf16.mxu0 0
      %1385 = vmatpush1.bf16.msra.mxu0 %v1367
      %1386 = vmatprep.subr.bf16.mxu0 0
      %1387 = vmatpush1.bf16.msra.mxu0 %v1368
      %1388 = vmatprep.subr.bf16.mxu0 0
      %1389 = vmatpush1.bf16.msra.mxu0 %v1369
      %1390 = vmatprep.subr.bf16.mxu0 0
      %1391 = vmatpush1.bf16.msra.mxu0 %v1370
      %1392 = vmatprep.subr.bf16.mxu0 0
      %1393 = vmatpush1.bf16.msra.mxu0 %v1371
      %1394 = vmatprep.subr.bf16.mxu0 0
      %1395 = vmatpush1.bf16.msra.mxu0 %v1372
      %1396 = vmatprep.subr.bf16.mxu0 0
      %1397 = vmatpush1.bf16.msra.mxu0 %v1373
      %1398 = vmatprep.subr.bf16.mxu0 0
      %1399 = vmatpush1.bf16.msra.mxu0 0
      %1400 = vmatprep.subr.bf16.mxu0 0
      %1401 = vmatpush1.bf16.msra.mxu0 0
      %1402 = vmatprep.subr.bf16.mxu0 0
      %1403 = vmatpush1.bf16.msra.mxu0 0
      %1404 = vmatprep.subr.bf16.mxu0 0
      %1405 = vmatpush1.bf16.msra.mxu0 0
      %1406 = vmatprep.subr.bf16.mxu0 0
      %1407 = vmatpush1.bf16.msra.mxu0 0
      %1408 = vmatprep.subr.bf16.mxu0 0
      %1409 = vmatpush1.bf16.msra.mxu0 0
      %1410 = vmatprep.subr.bf16.mxu0 0
      %1411 = vmatpush1.bf16.msra.mxu0 0
      %1412 = vmatprep.subr.bf16.mxu0 0
      %1413 = vmatpush1.bf16.msra.mxu0 0
      %1414 = vmatprep.mubr.bf16.mxu0 0
      %1415 = vmatmul.mubr.bf16.gmra.mrb[0].mxu0 %v1317
      %v1416 = vpop.f32.mrb[0].mxu0
      %v1417 = vadd.f32 0.0, %v1416
      %v1418 = vpop.f32.mrb[0].mxu0
      %v1419 = vpop.f32.mrb[0].mxu0
      %v1420 = vadd.f32 0.0, %v1419
      %v1421 = vpop.f32.mrb[0].mxu0
      %1422 = vmatprep.mubr.bf16.mxu0 0
      %1423 = vmatmul.mubr.bf16.gmra.mrb[0].mxu0 %v1319
      %v1424 = vpop.f32.mrb[0].mxu0
      %v1425 = vadd.f32 0.0, %v1424
      %v1426 = vpop.f32.mrb[0].mxu0
      %v1427 = vpop.f32.mrb[0].mxu0
      %v1428 = vadd.f32 0.0, %v1427
      %v1429 = vpop.f32.mrb[0].mxu0
      %1430 = vmatprep.mubr.bf16.mxu0 0
      %1431 = vmatmul.mubr.bf16.gmra.mrb[0].mxu0 %v1321
      %v1432 = vpop.f32.mrb[0].mxu0
      %v1433 = vadd.f32 0.0, %v1432
      %v1434 = vpop.f32.mrb[0].mxu0
      %v1435 = vpop.f32.mrb[0].mxu0
      %v1436 = vadd.f32 0.0, %v1435
      %v1437 = vpop.f32.mrb[0].mxu0
      %1438 = vmatprep.mubr.bf16.mxu0 0
      %1439 = vmatmul.mubr.bf16.gmra.mrb[0].mxu0 %v1323
      %v1440 = vpop.f32.mrb[0].mxu0
      %v1441 = vadd.f32 0.0, %v1440
      %v1442 = vpop.f32.mrb[0].mxu0
      %v1443 = vpop.f32.mrb[0].mxu0
      %v1444 = vadd.f32 0.0, %v1443
      %v1445 = vpop.f32.mrb[0].mxu0
      %1446 = vmatprep.mubr.bf16.mxu0 0
      %1447 = vmatmul.mubr.bf16.gmra.mrb[0].mxu0 %v1325
      %v1448 = vpop.f32.mrb[0].mxu0
      %v1449 = vadd.f32 0.0, %v1448
      %v1450 = vpop.f32.mrb[0].mxu0
      %v1451 = vpop.f32.mrb[0].mxu0
      %v1452 = vadd.f32 0.0, %v1451
      %v1453 = vpop.f32.mrb[0].mxu0
      %1454 = vmatprep.mubr.bf16.mxu0 0
      %1455 = vmatmul.mubr.bf16.gmra.mrb[0].mxu0 %v1327
      %v1456 = vpop.f32.mrb[0].mxu0
      %v1457 = vadd.f32 0.0, %v1456
      %v1458 = vpop.f32.mrb[0].mxu0
      %v1459 = vpop.f32.mrb[0].mxu0
      %v1460 = vadd.f32 0.0, %v1459
      %v1461 = vpop.f32.mrb[0].mxu0
      %1462 = vdwg.mxu0
      %v1463 = vadd.f32 %v1281, %v1417
      %v1464 = vadd.f32 %v1282, %v1420
      %v1465 = vadd.f32 %v1283, %v1425
      %v1466 = vadd.f32 %v1284, %v1428
      %v1467 = vadd.f32 %v1285, %v1433
      %v1468 = vadd.f32 %v1286, %v1436
      %v1469 = vadd.f32 %v1287, %v1441
      %v1470 = vadd.f32 %v1288, %v1444
      %v1471 = vadd.f32 %v1289, %v1449
      %v1472 = vadd.f32 %v1290, %v1452
      %v1473 = vadd.f32 %v1291, %v1457
      %v1474 = vadd.f32 %v1292, %v1460
      %v1475 = vld [vmem:[%s233 + $0x10] sm:$0xc]
      %v1476 = vld [vmem:[%s233 + $0x14] sm:$0xf]
      %v1477 = vld [vmem:[%s233 + $0x18] sm:$0xf]
      %v1478 = vld [vmem:[%s233 + $0x1c] sm:$0xf]
      %v1479 = vld [vmem:[%s233 + $0x20] sm:$0xf]
      %v1480 = vld [vmem:[%s233 + $0x24] sm:$0xf]
      %v1481 = vld [vmem:[%s233 + $0x28] sm:$0xf]
      %v1482 = vld [vmem:[%s233 + $0x2c] sm:$0xf]
      %v1483 = vld [vmem:[%s233 + $0x30] sm:$0xf]
      %v1484 = vld [vmem:[%s233 + $0x34] sm:$0xf]
      %v1485 = vld [vmem:[%s233 + $0x38] sm:$0xf]
      %v1486 = vld [vmem:[%s233 + $0x3c] sm:$0xf]
      %v1487 = vld [vmem:[%s233 + $0x40] sm:$0x3]
      %s1488 = scalar_lea.vmem %s237, 384
      %v1489 = vld [vmem:[%s1488] sm:$0xf]
      %v1490 = vld [vmem:[%s1488 + $0x4] sm:$0xf]
      %v1491 = vld [vmem:[%s1488 + $0x8] sm:$0xf]
      %v1492 = vld [vmem:[%s1488 + $0xc] sm:$0xf]
      %v1493 = vld [vmem:[%s1488 + $0x10] sm:$0xf]
      %v1494 = vld [vmem:[%s1488 + $0x14] sm:$0xf]
      %v1495 = vld [vmem:[%s1488 + $0x18] sm:$0xf]
      %v1496 = vld [vmem:[%s1488 + $0x1c] sm:$0xf]
      %v1497 = vld [vmem:[%s1488 + $0x20] sm:$0xf]
      %v1498 = vld [vmem:[%s1488 + $0x24] sm:$0xf]
      %v1499 = vld [vmem:[%s1488 + $0x28] sm:$0xf]
      %v1500 = vld [vmem:[%s1488 + $0x2c] sm:$0xf]
      %v1501 = vld [vmem:[%s1488 + $0x30] sm:$0xf]
      %v1502 = vld [vmem:[%s1488 + $0x34] sm:$0xf]
      %v1503 = vld [vmem:[%s1488 + $0x38] sm:$0xf]
      %v1504 = vld [vmem:[%s1488 + $0x3c] sm:$0xf]
      %v1518 = vunpack.c.l.b16 %v1475
      %v1519 = vunpack.c.l.b16 %v1476
      %v1520 = vunpack.c.l.b16 %v1477
      %v1521 = vunpack.c.l.b16 %v1478
      %v1522 = vunpack.c.l.b16 %v1479
      %v1523 = vunpack.c.l.b16 %v1480
      %v1524 = vunpack.c.l.b16 %v1481
      %v1525 = vunpack.c.l.b16 %v1482
      %v1526 = vunpack.c.l.b16 %v1483
      %v1527 = vunpack.c.l.b16 %v1484
      %v1528 = vunpack.c.l.b16 %v1485
      %v1529 = vunpack.c.l.b16 %v1486
      %v1530 = vunpack.c.l.b16 %v1487
      %v1531 = vpack.c.b16 %v1519, %v1518
      %v1532 = vpack.c.b16 %v1521, %v1520
      %v1533 = vpack.c.b16 %v1523, %v1522
      %v1534 = vpack.c.b16 %v1525, %v1524
      %v1535 = vpack.c.b16 %v1527, %v1526
      %v1536 = vpack.c.b16 %v1529, %v1528
      %v1537 = vpack.c.b16 %v1530, %v1530
      %v1538 = vrot.slane %v1531, 2
      %v1539 = vrot.slane %v1532, 2
      %v1540 = vsel %vm1314, %v1538, %v1539
      %v1541 = vrot.slane %v1533, 2
      %v1542 = vsel %vm1314, %v1539, %v1541
      %v1543 = vrot.slane %v1534, 2
      %v1544 = vsel %vm1314, %v1541, %v1543
      %v1545 = vrot.slane %v1535, 2
      %v1546 = vsel %vm1314, %v1543, %v1545
      %v1547 = vrot.slane %v1536, 2
      %v1548 = vsel %vm1314, %v1545, %v1547
      %v1549 = vrot.slane %v1537, 2
      %v1550 = vsel %vm1314, %v1547, %v1549
      %v1573 = vunpack.c.l.b16 %v1489
      %v1574 = vunpack.c.l.b16 %v1490
      %v1575 = vunpack.c.l.b16 %v1491
      %v1576 = vunpack.c.l.b16 %v1492
      %v1577 = vunpack.c.l.b16 %v1493
      %v1578 = vunpack.c.l.b16 %v1494
      %v1579 = vunpack.c.l.b16 %v1495
      %v1580 = vunpack.c.l.b16 %v1496
      %v1581 = vunpack.c.l.b16 %v1497
      %v1582 = vunpack.c.l.b16 %v1498
      %v1583 = vunpack.c.l.b16 %v1499
      %v1584 = vunpack.c.l.b16 %v1500
      %v1585 = vunpack.c.l.b16 %v1501
      %v1586 = vunpack.c.l.b16 %v1502
      %v1587 = vunpack.c.l.b16 %v1503
      %v1588 = vunpack.c.l.b16 %v1504
      %v1589 = vpack.c.b16 %v1574, %v1573
      %v1590 = vpack.c.b16 %v1576, %v1575
      %v1591 = vpack.c.b16 %v1578, %v1577
      %v1592 = vpack.c.b16 %v1580, %v1579
      %v1593 = vpack.c.b16 %v1582, %v1581
      %v1594 = vpack.c.b16 %v1584, %v1583
      %v1595 = vpack.c.b16 %v1586, %v1585
      %v1596 = vpack.c.b16 %v1588, %v1587
      %1605 = vmatprep.subr.bf16.mxu0 0
      %1606 = vmatpush1.bf16.msra.mxu0 %v1589
      %1607 = vmatprep.subr.bf16.mxu0 0
      %1608 = vmatpush1.bf16.msra.mxu0 %v1590
      %1609 = vmatprep.subr.bf16.mxu0 0
      %1610 = vmatpush1.bf16.msra.mxu0 %v1591
      %1611 = vmatprep.subr.bf16.mxu0 0
      %1612 = vmatpush1.bf16.msra.mxu0 %v1592
      %1613 = vmatprep.subr.bf16.mxu0 0
      %1614 = vmatpush1.bf16.msra.mxu0 %v1593
      %1615 = vmatprep.subr.bf16.mxu0 0
      %1616 = vmatpush1.bf16.msra.mxu0 %v1594
      %1617 = vmatprep.subr.bf16.mxu0 0
      %1618 = vmatpush1.bf16.msra.mxu0 %v1595
      %1619 = vmatprep.subr.bf16.mxu0 0
      %1620 = vmatpush1.bf16.msra.mxu0 %v1596
      %1621 = vmatprep.subr.bf16.mxu0 0
      %1622 = vmatpush1.bf16.msra.mxu0 0
      %1623 = vmatprep.subr.bf16.mxu0 0
      %1624 = vmatpush1.bf16.msra.mxu0 0
      %1625 = vmatprep.subr.bf16.mxu0 0
      %1626 = vmatpush1.bf16.msra.mxu0 0
      %1627 = vmatprep.subr.bf16.mxu0 0
      %1628 = vmatpush1.bf16.msra.mxu0 0
      %1629 = vmatprep.subr.bf16.mxu0 0
      %1630 = vmatpush1.bf16.msra.mxu0 0
      %1631 = vmatprep.subr.bf16.mxu0 0
      %1632 = vmatpush1.bf16.msra.mxu0 0
      %1633 = vmatprep.subr.bf16.mxu0 0
      %1634 = vmatpush1.bf16.msra.mxu0 0
      %1635 = vmatprep.subr.bf16.mxu0 0
      %1636 = vmatpush1.bf16.msra.mxu0 0
      %1637 = vmatprep.mubr.bf16.mxu0 0
      %1638 = vmatmul.mubr.bf16.gmra.mrb[0].mxu0 %v1540
      %v1639 = vpop.f32.mrb[0].mxu0
      %v1640 = vadd.f32 0.0, %v1639
      %v1641 = vpop.f32.mrb[0].mxu0
      %v1642 = vpop.f32.mrb[0].mxu0
      %v1643 = vadd.f32 0.0, %v1642
      %v1644 = vpop.f32.mrb[0].mxu0
      %1645 = vmatprep.mubr.bf16.mxu0 0
      %1646 = vmatmul.mubr.bf16.gmra.mrb[0].mxu0 %v1542
      %v1647 = vpop.f32.mrb[0].mxu0
      %v1648 = vadd.f32 0.0, %v1647
      %v1649 = vpop.f32.mrb[0].mxu0
      %v1650 = vpop.f32.mrb[0].mxu0
      %v1651 = vadd.f32 0.0, %v1650
      %v1652 = vpop.f32.mrb[0].mxu0
      %1653 = vmatprep.mubr.bf16.mxu0 0
      %1654 = vmatmul.mubr.bf16.gmra.mrb[0].mxu0 %v1544
      %v1655 = vpop.f32.mrb[0].mxu0
      %v1656 = vadd.f32 0.0, %v1655
      %v1657 = vpop.f32.mrb[0].mxu0
      %v1658 = vpop.f32.mrb[0].mxu0
      %v1659 = vadd.f32 0.0, %v1658
      %v1660 = vpop.f32.mrb[0].mxu0
      %1661 = vmatprep.mubr.bf16.mxu0 0
      %1662 = vmatmul.mubr.bf16.gmra.mrb[0].mxu0 %v1546
      %v1663 = vpop.f32.mrb[0].mxu0
      %v1664 = vadd.f32 0.0, %v1663
      %v1665 = vpop.f32.mrb[0].mxu0
      %v1666 = vpop.f32.mrb[0].mxu0
      %v1667 = vadd.f32 0.0, %v1666
      %v1668 = vpop.f32.mrb[0].mxu0
      %1669 = vmatprep.mubr.bf16.mxu0 0
      %1670 = vmatmul.mubr.bf16.gmra.mrb[0].mxu0 %v1548
      %v1671 = vpop.f32.mrb[0].mxu0
      %v1672 = vadd.f32 0.0, %v1671
      %v1673 = vpop.f32.mrb[0].mxu0
      %v1674 = vpop.f32.mrb[0].mxu0
      %v1675 = vadd.f32 0.0, %v1674
      %v1676 = vpop.f32.mrb[0].mxu0
      %1677 = vmatprep.mubr.bf16.mxu0 0
      %1678 = vmatmul.mubr.bf16.gmra.mrb[0].mxu0 %v1550
      %v1679 = vpop.f32.mrb[0].mxu0
      %v1680 = vadd.f32 0.0, %v1679
      %v1681 = vpop.f32.mrb[0].mxu0
      %v1682 = vpop.f32.mrb[0].mxu0
      %v1683 = vadd.f32 0.0, %v1682
      %v1684 = vpop.f32.mrb[0].mxu0
      %1685 = vdwg.mxu0
      %v1686 = vadd.f32 %v1463, %v1640
      %v1687 = vadd.f32 %v1464, %v1643
      %v1688 = vadd.f32 %v1465, %v1648
      %v1689 = vadd.f32 %v1466, %v1651
      %v1690 = vadd.f32 %v1467, %v1656
      %v1691 = vadd.f32 %v1468, %v1659
      %v1692 = vadd.f32 %v1469, %v1664
      %v1693 = vadd.f32 %v1470, %v1667
      %v1694 = vadd.f32 %v1471, %v1672
      %v1695 = vadd.f32 %v1472, %v1675
      %v1696 = vadd.f32 %v1473, %v1680
      %v1697 = vadd.f32 %v1474, %v1683
      %v1698 = vld [vmem:[%s233 + $0x40] sm:$0x7]
      %s1699 = scalar_lea.vmem %s237, 448
      %v1700 = vld [vmem:[%s1699] sm:$0xf]
      %v1701 = vld [vmem:[%s1699 + $0x4] sm:$0xf]
      %v1702 = vld [vmem:[%s1699 + $0x8] sm:$0xf]
      %v1703 = vld [vmem:[%s1699 + $0xc] sm:$0xf]
      %v1704 = vld [vmem:[%s1699 + $0x10] sm:$0xf]
      %v1705 = vld [vmem:[%s1699 + $0x14] sm:$0xf]
      %v1706 = vld [vmem:[%s1699 + $0x18] sm:$0xf]
      %v1707 = vld [vmem:[%s1699 + $0x1c] sm:$0xf]
      %v1708 = vld [vmem:[%s1699 + $0x20] sm:$0xf]
      %v1709 = vld [vmem:[%s1699 + $0x24] sm:$0xf]
      %v1710 = vld [vmem:[%s1699 + $0x28] sm:$0xf]
      %v1711 = vld [vmem:[%s1699 + $0x2c] sm:$0xf]
      %v1712 = vld [vmem:[%s1699 + $0x30] sm:$0xf]
      %v1713 = vld [vmem:[%s1699 + $0x34] sm:$0xf]
      %v1714 = vld [vmem:[%s1699 + $0x38] sm:$0xf]
      %v1715 = vld [vmem:[%s1699 + $0x3c] sm:$0xf]
      %v1717 = vunpack.c.l.b16 %v1698
      %v1718 = vpack.c.b16 %v1717, %v1717
      %vm1719 = vsmask.f32 5376
      %v1721 = vshrl.u32 %v1531, 16
      %v1723 = vrot.slane %v1721, 2
      %v1724 = vshll.u32 %v1531, 16
      %v1726 = vrot.slane %v1724, 3
      %v1727 = vor.u32 %v1723, %v1726
      %v1729 = vshrl.u32 %v1532, 16
      %v1731 = vrot.slane %v1729, 2
      %v1732 = vshll.u32 %v1532, 16
      %v1734 = vrot.slane %v1732, 3
      %v1735 = vor.u32 %v1731, %v1734
      %v1736 = vsel %vm1719, %v1727, %v1735
      %v1738 = vshrl.u32 %v1533, 16
      %v1740 = vrot.slane %v1738, 2
      %v1741 = vshll.u32 %v1533, 16
      %v1743 = vrot.slane %v1741, 3
      %v1744 = vor.u32 %v1740, %v1743
      %v1745 = vsel %vm1719, %v1735, %v1744
      %v1747 = vshrl.u32 %v1534, 16
      %v1749 = vrot.slane %v1747, 2
      %v1750 = vshll.u32 %v1534, 16
      %v1752 = vrot.slane %v1750, 3
      %v1753 = vor.u32 %v1749, %v1752
      %v1754 = vsel %vm1719, %v1744, %v1753
      %v1756 = vshrl.u32 %v1535, 16
      %v1758 = vrot.slane %v1756, 2
      %v1759 = vshll.u32 %v1535, 16
      %v1761 = vrot.slane %v1759, 3
      %v1762 = vor.u32 %v1758, %v1761
      %v1763 = vsel %vm1719, %v1753, %v1762
      %v1765 = vshrl.u32 %v1536, 16
      %v1767 = vrot.slane %v1765, 2
      %v1768 = vshll.u32 %v1536, 16
      %v1770 = vrot.slane %v1768, 3
      %v1771 = vor.u32 %v1767, %v1770
      %v1772 = vsel %vm1719, %v1762, %v1771
      %v1774 = vshrl.u32 %v1718, 16
      %v1776 = vrot.slane %v1774, 2
      %v1777 = vshll.u32 %v1718, 16
      %v1779 = vrot.slane %v1777, 3
      %v1780 = vor.u32 %v1776, %v1779
      %v1781 = vsel %vm1719, %v1771, %v1780
      %v1804 = vunpack.c.l.b16 %v1700
      %v1805 = vunpack.c.l.b16 %v1701
      %v1806 = vunpack.c.l.b16 %v1702
      %v1807 = vunpack.c.l.b16 %v1703
      %v1808 = vunpack.c.l.b16 %v1704
      %v1809 = vunpack.c.l.b16 %v1705
      %v1810 = vunpack.c.l.b16 %v1706
      %v1811 = vunpack.c.l.b16 %v1707
      %v1812 = vunpack.c.l.b16 %v1708
      %v1813 = vunpack.c.l.b16 %v1709
      %v1814 = vunpack.c.l.b16 %v1710
      %v1815 = vunpack.c.l.b16 %v1711
      %v1816 = vunpack.c.l.b16 %v1712
      %v1817 = vunpack.c.l.b16 %v1713
      %v1818 = vunpack.c.l.b16 %v1714
      %v1819 = vunpack.c.l.b16 %v1715
      %v1820 = vpack.c.b16 %v1805, %v1804
      %v1821 = vpack.c.b16 %v1807, %v1806
      %v1822 = vpack.c.b16 %v1809, %v1808
      %v1823 = vpack.c.b16 %v1811, %v1810
      %v1824 = vpack.c.b16 %v1813, %v1812
      %v1825 = vpack.c.b16 %v1815, %v1814
      %v1826 = vpack.c.b16 %v1817, %v1816
      %v1827 = vpack.c.b16 %v1819, %v1818
      %1836 = vmatprep.subr.bf16.mxu0 0
      %1837 = vmatpush1.bf16.msra.mxu0 %v1820
      %1838 = vmatprep.subr.bf16.mxu0 0
      %1839 = vmatpush1.bf16.msra.mxu0 %v1821
      %1840 = vmatprep.subr.bf16.mxu0 0
      %1841 = vmatpush1.bf16.msra.mxu0 %v1822
      %1842 = vmatprep.subr.bf16.mxu0 0
      %1843 = vmatpush1.bf16.msra.mxu0 %v1823
      %1844 = vmatprep.subr.bf16.mxu0 0
      %1845 = vmatpush1.bf16.msra.mxu0 %v1824
      %1846 = vmatprep.subr.bf16.mxu0 0
      %1847 = vmatpush1.bf16.msra.mxu0 %v1825
      %1848 = vmatprep.subr.bf16.mxu0 0
      %1849 = vmatpush1.bf16.msra.mxu0 %v1826
      %1850 = vmatprep.subr.bf16.mxu0 0
      %1851 = vmatpush1.bf16.msra.mxu0 %v1827
      %1852 = vmatprep.subr.bf16.mxu0 0
      %1853 = vmatpush1.bf16.msra.mxu0 0
      %1854 = vmatprep.subr.bf16.mxu0 0
      %1855 = vmatpush1.bf16.msra.mxu0 0
      %1856 = vmatprep.subr.bf16.mxu0 0
      %1857 = vmatpush1.bf16.msra.mxu0 0
      %1858 = vmatprep.subr.bf16.mxu0 0
      %1859 = vmatpush1.bf16.msra.mxu0 0
      %1860 = vmatprep.subr.bf16.mxu0 0
      %1861 = vmatpush1.bf16.msra.mxu0 0
      %1862 = vmatprep.subr.bf16.mxu0 0
      %1863 = vmatpush1.bf16.msra.mxu0 0
      %1864 = vmatprep.subr.bf16.mxu0 0
      %1865 = vmatpush1.bf16.msra.mxu0 0
      %1866 = vmatprep.subr.bf16.mxu0 0
      %1867 = vmatpush1.bf16.msra.mxu0 0
      %1868 = vmatprep.mubr.bf16.mxu0 0
      %1869 = vmatmul.mubr.bf16.gmra.mrb[0].mxu0 %v1736
      %v1870 = vpop.f32.mrb[0].mxu0
      %v1871 = vadd.f32 0.0, %v1870
      %v1872 = vpop.f32.mrb[0].mxu0
      %v1873 = vpop.f32.mrb[0].mxu0
      %v1874 = vadd.f32 0.0, %v1873
      %v1875 = vpop.f32.mrb[0].mxu0
      %1876 = vmatprep.mubr.bf16.mxu0 0
      %1877 = vmatmul.mubr.bf16.gmra.mrb[0].mxu0 %v1745
      %v1878 = vpop.f32.mrb[0].mxu0
      %v1879 = vadd.f32 0.0, %v1878
      %v1880 = vpop.f32.mrb[0].mxu0
      %v1881 = vpop.f32.mrb[0].mxu0
      %v1882 = vadd.f32 0.0, %v1881
      %v1883 = vpop.f32.mrb[0].mxu0
      %1884 = vmatprep.mubr.bf16.mxu0 0
      %1885 = vmatmul.mubr.bf16.gmra.mrb[0].mxu0 %v1754
      %v1886 = vpop.f32.mrb[0].mxu0
      %v1887 = vadd.f32 0.0, %v1886
      %v1888 = vpop.f32.mrb[0].mxu0
      %v1889 = vpop.f32.mrb[0].mxu0
      %v1890 = vadd.f32 0.0, %v1889
      %v1891 = vpop.f32.mrb[0].mxu0
      %1892 = vmatprep.mubr.bf16.mxu0 0
      %1893 = vmatmul.mubr.bf16.gmra.mrb[0].mxu0 %v1763
      %v1894 = vpop.f32.mrb[0].mxu0
      %v1895 = vadd.f32 0.0, %v1894
      %v1896 = vpop.f32.mrb[0].mxu0
      %v1897 = vpop.f32.mrb[0].mxu0
      %v1898 = vadd.f32 0.0, %v1897
      %v1899 = vpop.f32.mrb[0].mxu0
      %1900 = vmatprep.mubr.bf16.mxu0 0
      %1901 = vmatmul.mubr.bf16.gmra.mrb[0].mxu0 %v1772
      %v1902 = vpop.f32.mrb[0].mxu0
      %v1903 = vadd.f32 0.0, %v1902
      %v1904 = vpop.f32.mrb[0].mxu0
      %v1905 = vpop.f32.mrb[0].mxu0
      %v1906 = vadd.f32 0.0, %v1905
      %v1907 = vpop.f32.mrb[0].mxu0
      %1908 = vmatprep.mubr.bf16.mxu0 0
      %1909 = vmatmul.mubr.bf16.gmra.mrb[0].mxu0 %v1781
      %v1910 = vpop.f32.mrb[0].mxu0
      %v1911 = vadd.f32 0.0, %v1910
      %v1912 = vpop.f32.mrb[0].mxu0
      %v1913 = vpop.f32.mrb[0].mxu0
      %v1914 = vadd.f32 0.0, %v1913
      %v1915 = vpop.f32.mrb[0].mxu0
      %1916 = vdwg.mxu0
      %v1917 = vadd.f32 %v1686, %v1871
      %v1918 = vadd.f32 %v1687, %v1874
      %v1919 = vadd.f32 %v1688, %v1879
      %v1920 = vadd.f32 %v1689, %v1882
      %v1921 = vadd.f32 %v1690, %v1887
      %v1922 = vadd.f32 %v1691, %v1890
      %v1923 = vadd.f32 %v1692, %v1895
      %v1924 = vadd.f32 %v1693, %v1898
      %v1925 = vadd.f32 %v1694, %v1903
      %v1926 = vadd.f32 %v1695, %v1906
      %v1927 = vadd.f32 %v1696, %v1911
      %v1928 = vadd.f32 %v1697, %v1914
      %v1929 = vld [vmem:[%s233 + $0x10] sm:$0x8]
      %s1930 = scalar_lea.vmem %s237, 512
      %v1931 = vld [vmem:[%s1930] sm:$0xf]
      %v1932 = vld [vmem:[%s1930 + $0x4] sm:$0xf]
      %v1933 = vld [vmem:[%s1930 + $0x8] sm:$0xf]
      %v1934 = vld [vmem:[%s1930 + $0xc] sm:$0xf]
      %v1935 = vld [vmem:[%s1930 + $0x10] sm:$0xf]
      %v1936 = vld [vmem:[%s1930 + $0x14] sm:$0xf]
      %v1937 = vld [vmem:[%s1930 + $0x18] sm:$0xf]
      %v1938 = vld [vmem:[%s1930 + $0x1c] sm:$0xf]
      %v1939 = vld [vmem:[%s1930 + $0x20] sm:$0xf]
      %v1940 = vld [vmem:[%s1930 + $0x24] sm:$0xf]
      %v1941 = vld [vmem:[%s1930 + $0x28] sm:$0xf]
      %v1942 = vld [vmem:[%s1930 + $0x2c] sm:$0xf]
      %v1943 = vld [vmem:[%s1930 + $0x30] sm:$0xf]
      %v1944 = vld [vmem:[%s1930 + $0x34] sm:$0xf]
      %v1945 = vld [vmem:[%s1930 + $0x38] sm:$0xf]
      %v1946 = vld [vmem:[%s1930 + $0x3c] sm:$0xf]
      %v1948 = vunpack.c.l.b16 %v1929
      %v1949 = vpack.c.b16 %v1519, %v1948
      %vm1950 = vcmask 1044480
      %v1951 = vrot.slane %v1949, 3
      %v1952 = vrot.slane %v1532, 3
      %v1953 = vsel %vm1950, %v1951, %v1952
      %v1954 = vrot.slane %v1533, 3
      %v1955 = vsel %vm1950, %v1952, %v1954
      %v1956 = vrot.slane %v1534, 3
      %v1957 = vsel %vm1950, %v1954, %v1956
      %v1958 = vrot.slane %v1535, 3
      %v1959 = vsel %vm1950, %v1956, %v1958
      %v1960 = vrot.slane %v1536, 3
      %v1961 = vsel %vm1950, %v1958, %v1960
      %v1962 = vrot.slane %v1718, 3
      %v1963 = vsel %vm1950, %v1960, %v1962
      %v1986 = vunpack.c.l.b16 %v1931
      %v1987 = vunpack.c.l.b16 %v1932
      %v1988 = vunpack.c.l.b16 %v1933
      %v1989 = vunpack.c.l.b16 %v1934
      %v1990 = vunpack.c.l.b16 %v1935
      %v1991 = vunpack.c.l.b16 %v1936
      %v1992 = vunpack.c.l.b16 %v1937
      %v1993 = vunpack.c.l.b16 %v1938
      %v1994 = vunpack.c.l.b16 %v1939
      %v1995 = vunpack.c.l.b16 %v1940
      %v1996 = vunpack.c.l.b16 %v1941
      %v1997 = vunpack.c.l.b16 %v1942
      %v1998 = vunpack.c.l.b16 %v1943
      %v1999 = vunpack.c.l.b16 %v1944
      %v2000 = vunpack.c.l.b16 %v1945
      %v2001 = vunpack.c.l.b16 %v1946
      %v2002 = vpack.c.b16 %v1987, %v1986
      %v2003 = vpack.c.b16 %v1989, %v1988
      %v2004 = vpack.c.b16 %v1991, %v1990
      %v2005 = vpack.c.b16 %v1993, %v1992
      %v2006 = vpack.c.b16 %v1995, %v1994
      %v2007 = vpack.c.b16 %v1997, %v1996
      %v2008 = vpack.c.b16 %v1999, %v1998
      %v2009 = vpack.c.b16 %v2001, %v2000
      %2018 = vmatprep.subr.bf16.mxu0 0
      %2019 = vmatpush1.bf16.msra.mxu0 %v2002
      %2020 = vmatprep.subr.bf16.mxu0 0
      %2021 = vmatpush1.bf16.msra.mxu0 %v2003
      %2022 = vmatprep.subr.bf16.mxu0 0
      %2023 = vmatpush1.bf16.msra.mxu0 %v2004
      %2024 = vmatprep.subr.bf16.mxu0 0
      %2025 = vmatpush1.bf16.msra.mxu0 %v2005
      %2026 = vmatprep.subr.bf16.mxu0 0
      %2027 = vmatpush1.bf16.msra.mxu0 %v2006
      %2028 = vmatprep.subr.bf16.mxu0 0
      %2029 = vmatpush1.bf16.msra.mxu0 %v2007
      %2030 = vmatprep.subr.bf16.mxu0 0
      %2031 = vmatpush1.bf16.msra.mxu0 %v2008
      %2032 = vmatprep.subr.bf16.mxu0 0
      %2033 = vmatpush1.bf16.msra.mxu0 %v2009
      %2034 = vmatprep.subr.bf16.mxu0 0
      %2035 = vmatpush1.bf16.msra.mxu0 0
      %2036 = vmatprep.subr.bf16.mxu0 0
      %2037 = vmatpush1.bf16.msra.mxu0 0
      %2038 = vmatprep.subr.bf16.mxu0 0
      %2039 = vmatpush1.bf16.msra.mxu0 0
      %2040 = vmatprep.subr.bf16.mxu0 0
      %2041 = vmatpush1.bf16.msra.mxu0 0
      %2042 = vmatprep.subr.bf16.mxu0 0
      %2043 = vmatpush1.bf16.msra.mxu0 0
      %2044 = vmatprep.subr.bf16.mxu0 0
      %2045 = vmatpush1.bf16.msra.mxu0 0
      %2046 = vmatprep.subr.bf16.mxu0 0
      %2047 = vmatpush1.bf16.msra.mxu0 0
      %2048 = vmatprep.subr.bf16.mxu0 0
      %2049 = vmatpush1.bf16.msra.mxu0 0
      %2050 = vmatprep.mubr.bf16.mxu0 0
      %2051 = vmatmul.mubr.bf16.gmra.mrb[0].mxu0 %v1953
      %v2052 = vpop.f32.mrb[0].mxu0
      %v2053 = vadd.f32 0.0, %v2052
      %v2054 = vpop.f32.mrb[0].mxu0
      %v2055 = vpop.f32.mrb[0].mxu0
      %v2056 = vadd.f32 0.0, %v2055
      %v2057 = vpop.f32.mrb[0].mxu0
      %2058 = vmatprep.mubr.bf16.mxu0 0
      %2059 = vmatmul.mubr.bf16.gmra.mrb[0].mxu0 %v1955
      %v2060 = vpop.f32.mrb[0].mxu0
      %v2061 = vadd.f32 0.0, %v2060
      %v2062 = vpop.f32.mrb[0].mxu0
      %v2063 = vpop.f32.mrb[0].mxu0
      %v2064 = vadd.f32 0.0, %v2063
      %v2065 = vpop.f32.mrb[0].mxu0
      %2066 = vmatprep.mubr.bf16.mxu0 0
      %2067 = vmatmul.mubr.bf16.gmra.mrb[0].mxu0 %v1957
      %v2068 = vpop.f32.mrb[0].mxu0
      %v2069 = vadd.f32 0.0, %v2068
      %v2070 = vpop.f32.mrb[0].mxu0
      %v2071 = vpop.f32.mrb[0].mxu0
      %v2072 = vadd.f32 0.0, %v2071
      %v2073 = vpop.f32.mrb[0].mxu0
      %2074 = vmatprep.mubr.bf16.mxu0 0
      %2075 = vmatmul.mubr.bf16.gmra.mrb[0].mxu0 %v1959
      %v2076 = vpop.f32.mrb[0].mxu0
      %v2077 = vadd.f32 0.0, %v2076
      %v2078 = vpop.f32.mrb[0].mxu0
      %v2079 = vpop.f32.mrb[0].mxu0
      %v2080 = vadd.f32 0.0, %v2079
      %v2081 = vpop.f32.mrb[0].mxu0
      %2082 = vmatprep.mubr.bf16.mxu0 0
      %2083 = vmatmul.mubr.bf16.gmra.mrb[0].mxu0 %v1961
      %v2084 = vpop.f32.mrb[0].mxu0
      %v2085 = vadd.f32 0.0, %v2084
      %v2086 = vpop.f32.mrb[0].mxu0
      %v2087 = vpop.f32.mrb[0].mxu0
      %v2088 = vadd.f32 0.0, %v2087
      %v2089 = vpop.f32.mrb[0].mxu0
      %2090 = vmatprep.mubr.bf16.mxu0 0
      %2091 = vmatmul.mubr.bf16.gmra.mrb[0].mxu0 %v1963
      %v2092 = vpop.f32.mrb[0].mxu0
      %v2093 = vadd.f32 0.0, %v2092
      %v2094 = vpop.f32.mrb[0].mxu0
      %v2095 = vpop.f32.mrb[0].mxu0
      %v2096 = vadd.f32 0.0, %v2095
      %v2097 = vpop.f32.mrb[0].mxu0
      %2098 = vdwg.mxu0
      %v2099 = vadd.f32 %v1917, %v2053
      %v2100 = vadd.f32 %v1918, %v2056
      %v2101 = vadd.f32 %v1919, %v2061
      %v2102 = vadd.f32 %v1920, %v2064
      %v2103 = vadd.f32 %v1921, %v2069
      %v2104 = vadd.f32 %v1922, %v2072
      %v2105 = vadd.f32 %v1923, %v2077
      %v2106 = vadd.f32 %v1924, %v2080
      %v2107 = vadd.f32 %v1925, %v2085
      %v2108 = vadd.f32 %v1926, %v2088
      %v2109 = vadd.f32 %v1927, %v2093
      %v2110 = vadd.f32 %v1928, %v2096
      %v2112 = vlaneseq
      %v2113 = vshrl.u32 %v2112, 7
      %v2114 = vsub.s32 0, %v2113
      %v2115 = vrot.slane %v254, %v2114
      %v2117 = vadd.f32 %v2099, %v2115
      %v2118 = vadd.f32 %v2100, %v2115
      %v2119 = vadd.f32 %v2101, %v2115
      %v2120 = vadd.f32 %v2102, %v2115
      %v2121 = vadd.f32 %v2103, %v2115
      %v2122 = vadd.f32 %v2104, %v2115
      %v2123 = vadd.f32 %v2105, %v2115
      %v2124 = vadd.f32 %v2106, %v2115
      %v2125 = vadd.f32 %v2107, %v2115
      %v2126 = vadd.f32 %v2108, %v2115
      %v2127 = vadd.f32 %v2109, %v2115
      %v2128 = vadd.f32 %v2110, %v2115
      %v2129 = vmul.f32 %v2117, 0.1
      %v2130 = vmul.f32 %v2118, 0.1
      %v2131 = vmul.f32 %v2119, 0.1
      %v2132 = vmul.f32 %v2120, 0.1
      %v2133 = vmul.f32 %v2121, 0.1
      %v2134 = vmul.f32 %v2122, 0.1
      %v2135 = vmul.f32 %v2123, 0.1
      %v2136 = vmul.f32 %v2124, 0.1
      %v2137 = vmul.f32 %v2125, 0.1
      %v2138 = vmul.f32 %v2126, 0.1
      %v2139 = vmul.f32 %v2127, 0.1
      %v2140 = vmul.f32 %v2128, 0.1
      %v2141 = vmax.f32 %v2117, %v2129
      %v2142 = vmax.f32 %v2118, %v2130
      %v2143 = vmax.f32 %v2119, %v2131
      %v2144 = vmax.f32 %v2120, %v2132
      %v2145 = vmax.f32 %v2121, %v2133
      %v2146 = vmax.f32 %v2122, %v2134
      %v2147 = vmax.f32 %v2123, %v2135
      %v2148 = vmax.f32 %v2124, %v2136
      %v2149 = vmax.f32 %v2125, %v2137
      %v2150 = vmax.f32 %v2126, %v2138
      %v2151 = vmax.f32 %v2127, %v2139
      %v2152 = vmax.f32 %v2128, %v2140
      %2153 = vst [vmem:[%s252] sm:$0xff] %v2141
      %2154 = vst [vmem:[%s252 + $0x8] sm:$0xff] %v2142
      %2155 = vst [vmem:[%s252 + $0x10] sm:$0xff] %v2143
      %2156 = vst [vmem:[%s252 + $0x18] sm:$0xff] %v2144
      %2157 = vst [vmem:[%s252 + $0x20] sm:$0xff] %v2145
      %2158 = vst [vmem:[%s252 + $0x28] sm:$0xff] %v2146
      %2159 = vst [vmem:[%s252 + $0x30] sm:$0xff] %v2147
      %2160 = vst [vmem:[%s252 + $0x38] sm:$0xff] %v2148
      %2161 = vst [vmem:[%s252 + $0x40] sm:$0xff] %v2149
      %2162 = vst [vmem:[%s252 + $0x48] sm:$0xff] %v2150
      %2163 = vst [vmem:[%s252 + $0x50] sm:$0xff] %v2151
      %2164 = vst [vmem:[%s252 + $0x58] sm:$0xff] %v2152
      %v2165 = vld [vmem:[%s233 + $0x30] sm:$0xf]
      %v2166 = vld [vmem:[%s233 + $0x34] sm:$0xf]
      %v2167 = vld [vmem:[%s233 + $0x38] sm:$0xf]
      %v2168 = vld [vmem:[%s233 + $0x3c] sm:$0xf]
      %v2169 = vld [vmem:[%s233 + $0x40] sm:$0xf]
      %v2170 = vld [vmem:[%s233 + $0x44] sm:$0xf]
      %v2171 = vld [vmem:[%s233 + $0x48] sm:$0xf]
      %v2172 = vld [vmem:[%s233 + $0x4c] sm:$0xf]
      %v2173 = vld [vmem:[%s233 + $0x50] sm:$0xf]
      %v2174 = vld [vmem:[%s233 + $0x54] sm:$0xf]
      %v2175 = vld [vmem:[%s233 + $0x58] sm:$0xf]
      %v2176 = vld [vmem:[%s233 + $0x5c] sm:$0xf]
      %v2177 = vld [vmem:[%s237] sm:$0xf]
      %v2178 = vld [vmem:[%s237 + $0x4] sm:$0xf]
      %v2179 = vld [vmem:[%s237 + $0x8] sm:$0xf]
      %v2180 = vld [vmem:[%s237 + $0xc] sm:$0xf]
      %v2181 = vld [vmem:[%s237 + $0x10] sm:$0xf]
      %v2182 = vld [vmem:[%s237 + $0x14] sm:$0xf]
      %v2183 = vld [vmem:[%s237 + $0x18] sm:$0xf]
      %v2184 = vld [vmem:[%s237 + $0x1c] sm:$0xf]
      %v2185 = vld [vmem:[%s237 + $0x20] sm:$0xf]
      %v2186 = vld [vmem:[%s237 + $0x24] sm:$0xf]
      %v2187 = vld [vmem:[%s237 + $0x28] sm:$0xf]
      %v2188 = vld [vmem:[%s237 + $0x2c] sm:$0xf]
      %v2189 = vld [vmem:[%s237 + $0x30] sm:$0xf]
      %v2190 = vld [vmem:[%s237 + $0x34] sm:$0xf]
      %v2191 = vld [vmem:[%s237 + $0x38] sm:$0xf]
      %v2192 = vld [vmem:[%s237 + $0x3c] sm:$0xf]
      %v2193 = vld [vmem:[%s233 + $0x60] sm:$0x1]
      %v2194 = vld [vmem:[%s284] sm:$0xf]
      %v2195 = vld [vmem:[%s284 + $0x4] sm:$0xf]
      %v2196 = vld [vmem:[%s284 + $0x8] sm:$0xf]
      %v2197 = vld [vmem:[%s284 + $0xc] sm:$0xf]
      %v2198 = vld [vmem:[%s284 + $0x10] sm:$0xf]
      %v2199 = vld [vmem:[%s284 + $0x14] sm:$0xf]
      %v2200 = vld [vmem:[%s284 + $0x18] sm:$0xf]
      %v2201 = vld [vmem:[%s284 + $0x1c] sm:$0xf]
      %v2202 = vld [vmem:[%s284 + $0x20] sm:$0xf]
      %v2203 = vld [vmem:[%s284 + $0x24] sm:$0xf]
      %v2204 = vld [vmem:[%s284 + $0x28] sm:$0xf]
      %v2205 = vld [vmem:[%s284 + $0x2c] sm:$0xf]
      %v2206 = vld [vmem:[%s284 + $0x30] sm:$0xf]
      %v2207 = vld [vmem:[%s284 + $0x34] sm:$0xf]
      %v2208 = vld [vmem:[%s284 + $0x38] sm:$0xf]
      %v2209 = vld [vmem:[%s284 + $0x3c] sm:$0xf]
      %v2223 = vunpack.c.l.b16 %v2165
      %v2224 = vunpack.c.l.b16 %v2166
      %v2225 = vunpack.c.l.b16 %v2167
      %v2226 = vunpack.c.l.b16 %v2168
      %v2227 = vunpack.c.l.b16 %v2169
      %v2228 = vunpack.c.l.b16 %v2170
      %v2229 = vunpack.c.l.b16 %v2171
      %v2230 = vunpack.c.l.b16 %v2172
      %v2231 = vunpack.c.l.b16 %v2173
      %v2232 = vunpack.c.l.b16 %v2174
      %v2233 = vunpack.c.l.b16 %v2175
      %v2234 = vunpack.c.l.b16 %v2176
      %v2235 = vunpack.c.l.b16 %v2193
      %v2236 = vpack.c.b16 %v2224, %v2223
      %v2237 = vpack.c.b16 %v2226, %v2225
      %v2238 = vpack.c.b16 %v2228, %v2227
      %v2239 = vpack.c.b16 %v2230, %v2229
      %v2240 = vpack.c.b16 %v2232, %v2231
      %v2241 = vpack.c.b16 %v2234, %v2233
      %v2242 = vpack.c.b16 %v2235, %v2235
      %v2244 = vshrl.u32 %v2236, 16
      %v2246 = vshll.u32 %v2236, 16
      %v2248 = vrot.slane %v2246, 1
      %v2249 = vor.u32 %v2244, %v2248
      %v2251 = vshll.u32 %v2237, 16
      %v2253 = vrot.slane %v2251, 1
      %v2254 = vsel %vm334, %v2249, %v2253
      %v2255 = vshrl.u32 %v2237, 16
      %v2257 = vor.u32 %v2255, %v2253
      %v2259 = vshll.u32 %v2238, 16
      %v2261 = vrot.slane %v2259, 1
      %v2262 = vsel %vm334, %v2257, %v2261
      %v2263 = vshrl.u32 %v2238, 16
      %v2265 = vor.u32 %v2263, %v2261
      %v2267 = vshll.u32 %v2239, 16
      %v2269 = vrot.slane %v2267, 1
      %v2270 = vsel %vm334, %v2265, %v2269
      %v2271 = vshrl.u32 %v2239, 16
      %v2273 = vor.u32 %v2271, %v2269
      %v2275 = vshll.u32 %v2240, 16
      %v2277 = vrot.slane %v2275, 1
      %v2278 = vsel %vm334, %v2273, %v2277
      %v2279 = vshrl.u32 %v2240, 16
      %v2281 = vor.u32 %v2279, %v2277
      %v2283 = vshll.u32 %v2241, 16
      %v2285 = vrot.slane %v2283, 1
      %v2286 = vsel %vm334, %v2281, %v2285
      %v2287 = vshrl.u32 %v2241, 16
      %v2289 = vor.u32 %v2287, %v2285
      %v2291 = vshll.u32 %v2242, 16
      %v2293 = vrot.slane %v2291, 1
      %v2294 = vsel %vm334, %v2289, %v2293
      %v2317 = vunpack.c.l.b16 %v2194
      %v2318 = vunpack.c.l.b16 %v2195
      %v2319 = vunpack.c.l.b16 %v2196
      %v2320 = vunpack.c.l.b16 %v2197
      %v2321 = vunpack.c.l.b16 %v2198
      %v2322 = vunpack.c.l.b16 %v2199
      %v2323 = vunpack.c.l.b16 %v2200
      %v2324 = vunpack.c.l.b16 %v2201
      %v2325 = vunpack.c.l.b16 %v2202
      %v2326 = vunpack.c.l.b16 %v2203
      %v2327 = vunpack.c.l.b16 %v2204
      %v2328 = vunpack.c.l.b16 %v2205
      %v2329 = vunpack.c.l.b16 %v2206
      %v2330 = vunpack.c.l.b16 %v2207
      %v2331 = vunpack.c.l.b16 %v2208
      %v2332 = vunpack.c.l.b16 %v2209
      %v2333 = vpack.c.b16 %v2318, %v2317
      %v2334 = vpack.c.b16 %v2320, %v2319
      %v2335 = vpack.c.b16 %v2322, %v2321
      %v2336 = vpack.c.b16 %v2324, %v2323
      %v2337 = vpack.c.b16 %v2326, %v2325
      %v2338 = vpack.c.b16 %v2328, %v2327
      %v2339 = vpack.c.b16 %v2330, %v2329
      %v2340 = vpack.c.b16 %v2332, %v2331
      %2349 = vmatprep.subr.bf16.mxu0 0
      %2350 = vmatpush1.bf16.msra.mxu0 %v2333
      %2351 = vmatprep.subr.bf16.mxu0 0
      %2352 = vmatpush1.bf16.msra.mxu0 %v2334
      %2353 = vmatprep.subr.bf16.mxu0 0
      %2354 = vmatpush1.bf16.msra.mxu0 %v2335
      %2355 = vmatprep.subr.bf16.mxu0 0
      %2356 = vmatpush1.bf16.msra.mxu0 %v2336
      %2357 = vmatprep.subr.bf16.mxu0 0
      %2358 = vmatpush1.bf16.msra.mxu0 %v2337
      %2359 = vmatprep.subr.bf16.mxu0 0
      %2360 = vmatpush1.bf16.msra.mxu0 %v2338
      %2361 = vmatprep.subr.bf16.mxu0 0
      %2362 = vmatpush1.bf16.msra.mxu0 %v2339
      %2363 = vmatprep.subr.bf16.mxu0 0
      %2364 = vmatpush1.bf16.msra.mxu0 %v2340
      %2365 = vmatprep.subr.bf16.mxu0 0
      %2366 = vmatpush1.bf16.msra.mxu0 0
      %2367 = vmatprep.subr.bf16.mxu0 0
      %2368 = vmatpush1.bf16.msra.mxu0 0
      %2369 = vmatprep.subr.bf16.mxu0 0
      %2370 = vmatpush1.bf16.msra.mxu0 0
      %2371 = vmatprep.subr.bf16.mxu0 0
      %2372 = vmatpush1.bf16.msra.mxu0 0
      %2373 = vmatprep.subr.bf16.mxu0 0
      %2374 = vmatpush1.bf16.msra.mxu0 0
      %2375 = vmatprep.subr.bf16.mxu0 0
      %2376 = vmatpush1.bf16.msra.mxu0 0
      %2377 = vmatprep.subr.bf16.mxu0 0
      %2378 = vmatpush1.bf16.msra.mxu0 0
      %2379 = vmatprep.subr.bf16.mxu0 0
      %2380 = vmatpush1.bf16.msra.mxu0 0
      %2381 = vmatprep.mubr.bf16.mxu0 0
      %2382 = vmatmul.mubr.bf16.gmra.mrb[0].mxu0 %v2254
      %v2383 = vpop.f32.mrb[0].mxu0
      %v2384 = vadd.f32 0.0, %v2383
      %v2385 = vpop.f32.mrb[0].mxu0
      %v2386 = vpop.f32.mrb[0].mxu0
      %v2387 = vadd.f32 0.0, %v2386
      %v2388 = vpop.f32.mrb[0].mxu0
      %2389 = vmatprep.mubr.bf16.mxu0 0
      %2390 = vmatmul.mubr.bf16.gmra.mrb[0].mxu0 %v2262
      %v2391 = vpop.f32.mrb[0].mxu0
      %v2392 = vadd.f32 0.0, %v2391
      %v2393 = vpop.f32.mrb[0].mxu0
      %v2394 = vpop.f32.mrb[0].mxu0
      %v2395 = vadd.f32 0.0, %v2394
      %v2396 = vpop.f32.mrb[0].mxu0
      %2397 = vmatprep.mubr.bf16.mxu0 0
      %2398 = vmatmul.mubr.bf16.gmra.mrb[0].mxu0 %v2270
      %v2399 = vpop.f32.mrb[0].mxu0
      %v2400 = vadd.f32 0.0, %v2399
      %v2401 = vpop.f32.mrb[0].mxu0
      %v2402 = vpop.f32.mrb[0].mxu0
      %v2403 = vadd.f32 0.0, %v2402
      %v2404 = vpop.f32.mrb[0].mxu0
      %2405 = vmatprep.mubr.bf16.mxu0 0
      %2406 = vmatmul.mubr.bf16.gmra.mrb[0].mxu0 %v2278
      %v2407 = vpop.f32.mrb[0].mxu0
      %v2408 = vadd.f32 0.0, %v2407
      %v2409 = vpop.f32.mrb[0].mxu0
      %v2410 = vpop.f32.mrb[0].mxu0
      %v2411 = vadd.f32 0.0, %v2410
      %v2412 = vpop.f32.mrb[0].mxu0
      %2413 = vmatprep.mubr.bf16.mxu0 0
      %2414 = vmatmul.mubr.bf16.gmra.mrb[0].mxu0 %v2286
      %v2415 = vpop.f32.mrb[0].mxu0
      %v2416 = vadd.f32 0.0, %v2415
      %v2417 = vpop.f32.mrb[0].mxu0
      %v2418 = vpop.f32.mrb[0].mxu0
      %v2419 = vadd.f32 0.0, %v2418
      %v2420 = vpop.f32.mrb[0].mxu0
      %2421 = vmatprep.mubr.bf16.mxu0 0
      %2422 = vmatmul.mubr.bf16.gmra.mrb[0].mxu0 %v2294
      %v2423 = vpop.f32.mrb[0].mxu0
      %v2424 = vadd.f32 0.0, %v2423
      %v2425 = vpop.f32.mrb[0].mxu0
      %v2426 = vpop.f32.mrb[0].mxu0
      %v2427 = vadd.f32 0.0, %v2426
      %v2428 = vpop.f32.mrb[0].mxu0
      %2429 = vdwg.mxu0
      %v2452 = vunpack.c.l.b16 %v2177
      %v2453 = vunpack.c.l.b16 %v2178
      %v2454 = vunpack.c.l.b16 %v2179
      %v2455 = vunpack.c.l.b16 %v2180
      %v2456 = vunpack.c.l.b16 %v2181
      %v2457 = vunpack.c.l.b16 %v2182
      %v2458 = vunpack.c.l.b16 %v2183
      %v2459 = vunpack.c.l.b16 %v2184
      %v2460 = vunpack.c.l.b16 %v2185
      %v2461 = vunpack.c.l.b16 %v2186
      %v2462 = vunpack.c.l.b16 %v2187
      %v2463 = vunpack.c.l.b16 %v2188
      %v2464 = vunpack.c.l.b16 %v2189
      %v2465 = vunpack.c.l.b16 %v2190
      %v2466 = vunpack.c.l.b16 %v2191
      %v2467 = vunpack.c.l.b16 %v2192
      %v2468 = vpack.c.b16 %v2453, %v2452
      %v2469 = vpack.c.b16 %v2455, %v2454
      %v2470 = vpack.c.b16 %v2457, %v2456
      %v2471 = vpack.c.b16 %v2459, %v2458
      %v2472 = vpack.c.b16 %v2461, %v2460
      %v2473 = vpack.c.b16 %v2463, %v2462
      %v2474 = vpack.c.b16 %v2465, %v2464
      %v2475 = vpack.c.b16 %v2467, %v2466
      %2484 = vmatprep.subr.bf16.mxu0 0
      %2485 = vmatpush1.bf16.msra.mxu0 %v2468
      %2486 = vmatprep.subr.bf16.mxu0 0
      %2487 = vmatpush1.bf16.msra.mxu0 %v2469
      %2488 = vmatprep.subr.bf16.mxu0 0
      %2489 = vmatpush1.bf16.msra.mxu0 %v2470
      %2490 = vmatprep.subr.bf16.mxu0 0
      %2491 = vmatpush1.bf16.msra.mxu0 %v2471
      %2492 = vmatprep.subr.bf16.mxu0 0
      %2493 = vmatpush1.bf16.msra.mxu0 %v2472
      %2494 = vmatprep.subr.bf16.mxu0 0
      %2495 = vmatpush1.bf16.msra.mxu0 %v2473
      %2496 = vmatprep.subr.bf16.mxu0 0
      %2497 = vmatpush1.bf16.msra.mxu0 %v2474
      %2498 = vmatprep.subr.bf16.mxu0 0
      %2499 = vmatpush1.bf16.msra.mxu0 %v2475
      %2500 = vmatprep.subr.bf16.mxu0 0
      %2501 = vmatpush1.bf16.msra.mxu0 0
      %2502 = vmatprep.subr.bf16.mxu0 0
      %2503 = vmatpush1.bf16.msra.mxu0 0
      %2504 = vmatprep.subr.bf16.mxu0 0
      %2505 = vmatpush1.bf16.msra.mxu0 0
      %2506 = vmatprep.subr.bf16.mxu0 0
      %2507 = vmatpush1.bf16.msra.mxu0 0
      %2508 = vmatprep.subr.bf16.mxu0 0
      %2509 = vmatpush1.bf16.msra.mxu0 0
      %2510 = vmatprep.subr.bf16.mxu0 0
      %2511 = vmatpush1.bf16.msra.mxu0 0
      %2512 = vmatprep.subr.bf16.mxu0 0
      %2513 = vmatpush1.bf16.msra.mxu0 0
      %2514 = vmatprep.subr.bf16.mxu0 0
      %2515 = vmatpush1.bf16.msra.mxu0 0
      %2516 = vmatprep.mubr.bf16.mxu0 0
      %2517 = vmatmul.mubr.bf16.gmra.mrb[0].mxu0 %v2236
      %v2518 = vpop.f32.mrb[0].mxu0
      %v2519 = vadd.f32 %v2384, %v2518
      %v2520 = vpop.f32.mrb[0].mxu0
      %v2521 = vpop.f32.mrb[0].mxu0
      %v2522 = vadd.f32 %v2387, %v2521
      %v2523 = vpop.f32.mrb[0].mxu0
      %2524 = vmatprep.mubr.bf16.mxu0 0
      %2525 = vmatmul.mubr.bf16.gmra.mrb[0].mxu0 %v2237
      %v2526 = vpop.f32.mrb[0].mxu0
      %v2527 = vadd.f32 %v2392, %v2526
      %v2528 = vpop.f32.mrb[0].mxu0
      %v2529 = vpop.f32.mrb[0].mxu0
      %v2530 = vadd.f32 %v2395, %v2529
      %v2531 = vpop.f32.mrb[0].mxu0
      %2532 = vmatprep.mubr.bf16.mxu0 0
      %2533 = vmatmul.mubr.bf16.gmra.mrb[0].mxu0 %v2238
      %v2534 = vpop.f32.mrb[0].mxu0
      %v2535 = vadd.f32 %v2400, %v2534
      %v2536 = vpop.f32.mrb[0].mxu0
      %v2537 = vpop.f32.mrb[0].mxu0
      %v2538 = vadd.f32 %v2403, %v2537
      %v2539 = vpop.f32.mrb[0].mxu0
      %2540 = vmatprep.mubr.bf16.mxu0 0
      %2541 = vmatmul.mubr.bf16.gmra.mrb[0].mxu0 %v2239
      %v2542 = vpop.f32.mrb[0].mxu0
      %v2543 = vadd.f32 %v2408, %v2542
      %v2544 = vpop.f32.mrb[0].mxu0
      %v2545 = vpop.f32.mrb[0].mxu0
      %v2546 = vadd.f32 %v2411, %v2545
      %v2547 = vpop.f32.mrb[0].mxu0
      %2548 = vmatprep.mubr.bf16.mxu0 0
      %2549 = vmatmul.mubr.bf16.gmra.mrb[0].mxu0 %v2240
      %v2550 = vpop.f32.mrb[0].mxu0
      %v2551 = vadd.f32 %v2416, %v2550
      %v2552 = vpop.f32.mrb[0].mxu0
      %v2553 = vpop.f32.mrb[0].mxu0
      %v2554 = vadd.f32 %v2419, %v2553
      %v2555 = vpop.f32.mrb[0].mxu0
      %2556 = vmatprep.mubr.bf16.mxu0 0
      %2557 = vmatmul.mubr.bf16.gmra.mrb[0].mxu0 %v2241
      %v2558 = vpop.f32.mrb[0].mxu0
      %v2559 = vadd.f32 %v2424, %v2558
      %v2560 = vpop.f32.mrb[0].mxu0
      %v2561 = vpop.f32.mrb[0].mxu0
      %v2562 = vadd.f32 %v2427, %v2561
      %v2563 = vpop.f32.mrb[0].mxu0
      %2564 = vdwg.mxu0
      %v2565 = vld [vmem:[%s233 + $0x30] sm:$0xe]
      %v2566 = vld [vmem:[%s658] sm:$0xf]
      %v2567 = vld [vmem:[%s658 + $0x4] sm:$0xf]
      %v2568 = vld [vmem:[%s658 + $0x8] sm:$0xf]
      %v2569 = vld [vmem:[%s658 + $0xc] sm:$0xf]
      %v2570 = vld [vmem:[%s658 + $0x10] sm:$0xf]
      %v2571 = vld [vmem:[%s658 + $0x14] sm:$0xf]
      %v2572 = vld [vmem:[%s658 + $0x18] sm:$0xf]
      %v2573 = vld [vmem:[%s658 + $0x1c] sm:$0xf]
      %v2574 = vld [vmem:[%s658 + $0x20] sm:$0xf]
      %v2575 = vld [vmem:[%s658 + $0x24] sm:$0xf]
      %v2576 = vld [vmem:[%s658 + $0x28] sm:$0xf]
      %v2577 = vld [vmem:[%s658 + $0x2c] sm:$0xf]
      %v2578 = vld [vmem:[%s658 + $0x30] sm:$0xf]
      %v2579 = vld [vmem:[%s658 + $0x34] sm:$0xf]
      %v2580 = vld [vmem:[%s658 + $0x38] sm:$0xf]
      %v2581 = vld [vmem:[%s658 + $0x3c] sm:$0xf]
      %v2583 = vunpack.c.l.b16 %v2565
      %v2584 = vpack.c.b16 %v2224, %v2583
      %v2585 = vrot.slane %v2584, 1
      %v2586 = vrot.slane %v2237, 1
      %v2587 = vsel %vm678, %v2585, %v2586
      %v2588 = vrot.slane %v2238, 1
      %v2589 = vsel %vm678, %v2586, %v2588
      %v2590 = vrot.slane %v2239, 1
      %v2591 = vsel %vm678, %v2588, %v2590
      %v2592 = vrot.slane %v2240, 1
      %v2593 = vsel %vm678, %v2590, %v2592
      %v2594 = vrot.slane %v2241, 1
      %v2595 = vsel %vm678, %v2592, %v2594
      %v2596 = vrot.slane %v2242, 1
      %v2597 = vsel %vm678, %v2594, %v2596
      %v2620 = vunpack.c.l.b16 %v2566
      %v2621 = vunpack.c.l.b16 %v2567
      %v2622 = vunpack.c.l.b16 %v2568
      %v2623 = vunpack.c.l.b16 %v2569
      %v2624 = vunpack.c.l.b16 %v2570
      %v2625 = vunpack.c.l.b16 %v2571
      %v2626 = vunpack.c.l.b16 %v2572
      %v2627 = vunpack.c.l.b16 %v2573
      %v2628 = vunpack.c.l.b16 %v2574
      %v2629 = vunpack.c.l.b16 %v2575
      %v2630 = vunpack.c.l.b16 %v2576
      %v2631 = vunpack.c.l.b16 %v2577
      %v2632 = vunpack.c.l.b16 %v2578
      %v2633 = vunpack.c.l.b16 %v2579
      %v2634 = vunpack.c.l.b16 %v2580
      %v2635 = vunpack.c.l.b16 %v2581
      %v2636 = vpack.c.b16 %v2621, %v2620
      %v2637 = vpack.c.b16 %v2623, %v2622
      %v2638 = vpack.c.b16 %v2625, %v2624
      %v2639 = vpack.c.b16 %v2627, %v2626
      %v2640 = vpack.c.b16 %v2629, %v2628
      %v2641 = vpack.c.b16 %v2631, %v2630
      %v2642 = vpack.c.b16 %v2633, %v2632
      %v2643 = vpack.c.b16 %v2635, %v2634
      %2652 = vmatprep.subr.bf16.mxu0 0
      %2653 = vmatpush1.bf16.msra.mxu0 %v2636
      %2654 = vmatprep.subr.bf16.mxu0 0
      %2655 = vmatpush1.bf16.msra.mxu0 %v2637
      %2656 = vmatprep.subr.bf16.mxu0 0
      %2657 = vmatpush1.bf16.msra.mxu0 %v2638
      %2658 = vmatprep.subr.bf16.mxu0 0
      %2659 = vmatpush1.bf16.msra.mxu0 %v2639
      %2660 = vmatprep.subr.bf16.mxu0 0
      %2661 = vmatpush1.bf16.msra.mxu0 %v2640
      %2662 = vmatprep.subr.bf16.mxu0 0
      %2663 = vmatpush1.bf16.msra.mxu0 %v2641
      %2664 = vmatprep.subr.bf16.mxu0 0
      %2665 = vmatpush1.bf16.msra.mxu0 %v2642
      %2666 = vmatprep.subr.bf16.mxu0 0
      %2667 = vmatpush1.bf16.msra.mxu0 %v2643
      %2668 = vmatprep.subr.bf16.mxu0 0
      %2669 = vmatpush1.bf16.msra.mxu0 0
      %2670 = vmatprep.subr.bf16.mxu0 0
      %2671 = vmatpush1.bf16.msra.mxu0 0
      %2672 = vmatprep.subr.bf16.mxu0 0
      %2673 = vmatpush1.bf16.msra.mxu0 0
      %2674 = vmatprep.subr.bf16.mxu0 0
      %2675 = vmatpush1.bf16.msra.mxu0 0
      %2676 = vmatprep.subr.bf16.mxu0 0
      %2677 = vmatpush1.bf16.msra.mxu0 0
      %2678 = vmatprep.subr.bf16.mxu0 0
      %2679 = vmatpush1.bf16.msra.mxu0 0
      %2680 = vmatprep.subr.bf16.mxu0 0
      %2681 = vmatpush1.bf16.msra.mxu0 0
      %2682 = vmatprep.subr.bf16.mxu0 0
      %2683 = vmatpush1.bf16.msra.mxu0 0
      %2684 = vmatprep.mubr.bf16.mxu0 0
      %2685 = vmatmul.mubr.bf16.gmra.mrb[0].mxu0 %v2587
      %v2686 = vpop.f32.mrb[0].mxu0
      %v2687 = vadd.f32 0.0, %v2686
      %v2688 = vpop.f32.mrb[0].mxu0
      %v2689 = vpop.f32.mrb[0].mxu0
      %v2690 = vadd.f32 0.0, %v2689
      %v2691 = vpop.f32.mrb[0].mxu0
      %2692 = vmatprep.mubr.bf16.mxu0 0
      %2693 = vmatmul.mubr.bf16.gmra.mrb[0].mxu0 %v2589
      %v2694 = vpop.f32.mrb[0].mxu0
      %v2695 = vadd.f32 0.0, %v2694
      %v2696 = vpop.f32.mrb[0].mxu0
      %v2697 = vpop.f32.mrb[0].mxu0
      %v2698 = vadd.f32 0.0, %v2697
      %v2699 = vpop.f32.mrb[0].mxu0
      %2700 = vmatprep.mubr.bf16.mxu0 0
      %2701 = vmatmul.mubr.bf16.gmra.mrb[0].mxu0 %v2591
      %v2702 = vpop.f32.mrb[0].mxu0
      %v2703 = vadd.f32 0.0, %v2702
      %v2704 = vpop.f32.mrb[0].mxu0
      %v2705 = vpop.f32.mrb[0].mxu0
      %v2706 = vadd.f32 0.0, %v2705
      %v2707 = vpop.f32.mrb[0].mxu0
      %2708 = vmatprep.mubr.bf16.mxu0 0
      %2709 = vmatmul.mubr.bf16.gmra.mrb[0].mxu0 %v2593
      %v2710 = vpop.f32.mrb[0].mxu0
      %v2711 = vadd.f32 0.0, %v2710
      %v2712 = vpop.f32.mrb[0].mxu0
      %v2713 = vpop.f32.mrb[0].mxu0
      %v2714 = vadd.f32 0.0, %v2713
      %v2715 = vpop.f32.mrb[0].mxu0
      %2716 = vmatprep.mubr.bf16.mxu0 0
      %2717 = vmatmul.mubr.bf16.gmra.mrb[0].mxu0 %v2595
      %v2718 = vpop.f32.mrb[0].mxu0
      %v2719 = vadd.f32 0.0, %v2718
      %v2720 = vpop.f32.mrb[0].mxu0
      %v2721 = vpop.f32.mrb[0].mxu0
      %v2722 = vadd.f32 0.0, %v2721
      %v2723 = vpop.f32.mrb[0].mxu0
      %2724 = vmatprep.mubr.bf16.mxu0 0
      %2725 = vmatmul.mubr.bf16.gmra.mrb[0].mxu0 %v2597
      %v2726 = vpop.f32.mrb[0].mxu0
      %v2727 = vadd.f32 0.0, %v2726
      %v2728 = vpop.f32.mrb[0].mxu0
      %v2729 = vpop.f32.mrb[0].mxu0
      %v2730 = vadd.f32 0.0, %v2729
      %v2731 = vpop.f32.mrb[0].mxu0
      %2732 = vdwg.mxu0
      %v2733 = vadd.f32 %v2519, %v2687
      %v2734 = vadd.f32 %v2522, %v2690
      %v2735 = vadd.f32 %v2527, %v2695
      %v2736 = vadd.f32 %v2530, %v2698
      %v2737 = vadd.f32 %v2535, %v2703
      %v2738 = vadd.f32 %v2538, %v2706
      %v2739 = vadd.f32 %v2543, %v2711
      %v2740 = vadd.f32 %v2546, %v2714
      %v2741 = vadd.f32 %v2551, %v2719
      %v2742 = vadd.f32 %v2554, %v2722
      %v2743 = vadd.f32 %v2559, %v2727
      %v2744 = vadd.f32 %v2562, %v2730
      %v2745 = vld [vmem:[%s233 + $0x38] sm:$0xe]
      %v2746 = vld [vmem:[%s233 + $0x3c] sm:$0xf]
      %v2747 = vld [vmem:[%s233 + $0x40] sm:$0xf]
      %v2748 = vld [vmem:[%s233 + $0x44] sm:$0xf]
      %v2749 = vld [vmem:[%s233 + $0x48] sm:$0xf]
      %v2750 = vld [vmem:[%s233 + $0x4c] sm:$0xf]
      %v2751 = vld [vmem:[%s233 + $0x50] sm:$0xf]
      %v2752 = vld [vmem:[%s233 + $0x54] sm:$0xf]
      %v2753 = vld [vmem:[%s233 + $0x58] sm:$0xf]
      %v2754 = vld [vmem:[%s233 + $0x5c] sm:$0xf]
      %v2755 = vld [vmem:[%s233 + $0x60] sm:$0xf]
      %v2756 = vld [vmem:[%s233 + $0x64] sm:$0xf]
      %v2757 = vld [vmem:[%s233 + $0x68] sm:$0x1]
      %v2758 = vld [vmem:[%s852] sm:$0xf]
      %v2759 = vld [vmem:[%s852 + $0x4] sm:$0xf]
      %v2760 = vld [vmem:[%s852 + $0x8] sm:$0xf]
      %v2761 = vld [vmem:[%s852 + $0xc] sm:$0xf]
      %v2762 = vld [vmem:[%s852 + $0x10] sm:$0xf]
      %v2763 = vld [vmem:[%s852 + $0x14] sm:$0xf]
      %v2764 = vld [vmem:[%s852 + $0x18] sm:$0xf]
      %v2765 = vld [vmem:[%s852 + $0x1c] sm:$0xf]
      %v2766 = vld [vmem:[%s852 + $0x20] sm:$0xf]
      %v2767 = vld [vmem:[%s852 + $0x24] sm:$0xf]
      %v2768 = vld [vmem:[%s852 + $0x28] sm:$0xf]
      %v2769 = vld [vmem:[%s852 + $0x2c] sm:$0xf]
      %v2770 = vld [vmem:[%s852 + $0x30] sm:$0xf]
      %v2771 = vld [vmem:[%s852 + $0x34] sm:$0xf]
      %v2772 = vld [vmem:[%s852 + $0x38] sm:$0xf]
      %v2773 = vld [vmem:[%s852 + $0x3c] sm:$0xf]
      %v2787 = vunpack.c.l.b16 %v2745
      %v2788 = vunpack.c.l.b16 %v2746
      %v2789 = vunpack.c.l.b16 %v2747
      %v2790 = vunpack.c.l.b16 %v2748
      %v2791 = vunpack.c.l.b16 %v2749
      %v2792 = vunpack.c.l.b16 %v2750
      %v2793 = vunpack.c.l.b16 %v2751
      %v2794 = vunpack.c.l.b16 %v2752
      %v2795 = vunpack.c.l.b16 %v2753
      %v2796 = vunpack.c.l.b16 %v2754
      %v2797 = vunpack.c.l.b16 %v2755
      %v2798 = vunpack.c.l.b16 %v2756
      %v2799 = vunpack.c.l.b16 %v2757
      %v2800 = vpack.c.b16 %v2788, %v2787
      %v2801 = vpack.c.b16 %v2790, %v2789
      %v2802 = vpack.c.b16 %v2792, %v2791
      %v2803 = vpack.c.b16 %v2794, %v2793
      %v2804 = vpack.c.b16 %v2796, %v2795
      %v2805 = vpack.c.b16 %v2798, %v2797
      %v2806 = vpack.c.b16 %v2799, %v2799
      %v2807 = vrot.slane %v2800, 1
      %v2808 = vrot.slane %v2801, 1
      %v2809 = vsel %vm678, %v2807, %v2808
      %v2810 = vrot.slane %v2802, 1
      %v2811 = vsel %vm678, %v2808, %v2810
      %v2812 = vrot.slane %v2803, 1
      %v2813 = vsel %vm678, %v2810, %v2812
      %v2814 = vrot.slane %v2804, 1
      %v2815 = vsel %vm678, %v2812, %v2814
      %v2816 = vrot.slane %v2805, 1
      %v2817 = vsel %vm678, %v2814, %v2816
      %v2818 = vrot.slane %v2806, 1
      %v2819 = vsel %vm678, %v2816, %v2818
      %v2842 = vunpack.c.l.b16 %v2758
      %v2843 = vunpack.c.l.b16 %v2759
      %v2844 = vunpack.c.l.b16 %v2760
      %v2845 = vunpack.c.l.b16 %v2761
      %v2846 = vunpack.c.l.b16 %v2762
      %v2847 = vunpack.c.l.b16 %v2763
      %v2848 = vunpack.c.l.b16 %v2764
      %v2849 = vunpack.c.l.b16 %v2765
      %v2850 = vunpack.c.l.b16 %v2766
      %v2851 = vunpack.c.l.b16 %v2767
      %v2852 = vunpack.c.l.b16 %v2768
      %v2853 = vunpack.c.l.b16 %v2769
      %v2854 = vunpack.c.l.b16 %v2770
      %v2855 = vunpack.c.l.b16 %v2771
      %v2856 = vunpack.c.l.b16 %v2772
      %v2857 = vunpack.c.l.b16 %v2773
      %v2858 = vpack.c.b16 %v2843, %v2842
      %v2859 = vpack.c.b16 %v2845, %v2844
      %v2860 = vpack.c.b16 %v2847, %v2846
      %v2861 = vpack.c.b16 %v2849, %v2848
      %v2862 = vpack.c.b16 %v2851, %v2850
      %v2863 = vpack.c.b16 %v2853, %v2852
      %v2864 = vpack.c.b16 %v2855, %v2854
      %v2865 = vpack.c.b16 %v2857, %v2856
      %2874 = vmatprep.subr.bf16.mxu0 0
      %2875 = vmatpush1.bf16.msra.mxu0 %v2858
      %2876 = vmatprep.subr.bf16.mxu0 0
      %2877 = vmatpush1.bf16.msra.mxu0 %v2859
      %2878 = vmatprep.subr.bf16.mxu0 0
      %2879 = vmatpush1.bf16.msra.mxu0 %v2860
      %2880 = vmatprep.subr.bf16.mxu0 0
      %2881 = vmatpush1.bf16.msra.mxu0 %v2861
      %2882 = vmatprep.subr.bf16.mxu0 0
      %2883 = vmatpush1.bf16.msra.mxu0 %v2862
      %2884 = vmatprep.subr.bf16.mxu0 0
      %2885 = vmatpush1.bf16.msra.mxu0 %v2863
      %2886 = vmatprep.subr.bf16.mxu0 0
      %2887 = vmatpush1.bf16.msra.mxu0 %v2864
      %2888 = vmatprep.subr.bf16.mxu0 0
      %2889 = vmatpush1.bf16.msra.mxu0 %v2865
      %2890 = vmatprep.subr.bf16.mxu0 0
      %2891 = vmatpush1.bf16.msra.mxu0 0
      %2892 = vmatprep.subr.bf16.mxu0 0
      %2893 = vmatpush1.bf16.msra.mxu0 0
      %2894 = vmatprep.subr.bf16.mxu0 0
      %2895 = vmatpush1.bf16.msra.mxu0 0
      %2896 = vmatprep.subr.bf16.mxu0 0
      %2897 = vmatpush1.bf16.msra.mxu0 0
      %2898 = vmatprep.subr.bf16.mxu0 0
      %2899 = vmatpush1.bf16.msra.mxu0 0
      %2900 = vmatprep.subr.bf16.mxu0 0
      %2901 = vmatpush1.bf16.msra.mxu0 0
      %2902 = vmatprep.subr.bf16.mxu0 0
      %2903 = vmatpush1.bf16.msra.mxu0 0
      %2904 = vmatprep.subr.bf16.mxu0 0
      %2905 = vmatpush1.bf16.msra.mxu0 0
      %2906 = vmatprep.mubr.bf16.mxu0 0
      %2907 = vmatmul.mubr.bf16.gmra.mrb[0].mxu0 %v2809
      %v2908 = vpop.f32.mrb[0].mxu0
      %v2909 = vadd.f32 0.0, %v2908
      %v2910 = vpop.f32.mrb[0].mxu0
      %v2911 = vpop.f32.mrb[0].mxu0
      %v2912 = vadd.f32 0.0, %v2911
      %v2913 = vpop.f32.mrb[0].mxu0
      %2914 = vmatprep.mubr.bf16.mxu0 0
      %2915 = vmatmul.mubr.bf16.gmra.mrb[0].mxu0 %v2811
      %v2916 = vpop.f32.mrb[0].mxu0
      %v2917 = vadd.f32 0.0, %v2916
      %v2918 = vpop.f32.mrb[0].mxu0
      %v2919 = vpop.f32.mrb[0].mxu0
      %v2920 = vadd.f32 0.0, %v2919
      %v2921 = vpop.f32.mrb[0].mxu0
      %2922 = vmatprep.mubr.bf16.mxu0 0
      %2923 = vmatmul.mubr.bf16.gmra.mrb[0].mxu0 %v2813
      %v2924 = vpop.f32.mrb[0].mxu0
      %v2925 = vadd.f32 0.0, %v2924
      %v2926 = vpop.f32.mrb[0].mxu0
      %v2927 = vpop.f32.mrb[0].mxu0
      %v2928 = vadd.f32 0.0, %v2927
      %v2929 = vpop.f32.mrb[0].mxu0
      %2930 = vmatprep.mubr.bf16.mxu0 0
      %2931 = vmatmul.mubr.bf16.gmra.mrb[0].mxu0 %v2815
      %v2932 = vpop.f32.mrb[0].mxu0
      %v2933 = vadd.f32 0.0, %v2932
      %v2934 = vpop.f32.mrb[0].mxu0
      %v2935 = vpop.f32.mrb[0].mxu0
      %v2936 = vadd.f32 0.0, %v2935
      %v2937 = vpop.f32.mrb[0].mxu0
      %2938 = vmatprep.mubr.bf16.mxu0 0
      %2939 = vmatmul.mubr.bf16.gmra.mrb[0].mxu0 %v2817
      %v2940 = vpop.f32.mrb[0].mxu0
      %v2941 = vadd.f32 0.0, %v2940
      %v2942 = vpop.f32.mrb[0].mxu0
      %v2943 = vpop.f32.mrb[0].mxu0
      %v2944 = vadd.f32 0.0, %v2943
      %v2945 = vpop.f32.mrb[0].mxu0
      %2946 = vmatprep.mubr.bf16.mxu0 0
      %2947 = vmatmul.mubr.bf16.gmra.mrb[0].mxu0 %v2819
      %v2948 = vpop.f32.mrb[0].mxu0
      %v2949 = vadd.f32 0.0, %v2948
      %v2950 = vpop.f32.mrb[0].mxu0
      %v2951 = vpop.f32.mrb[0].mxu0
      %v2952 = vadd.f32 0.0, %v2951
      %v2953 = vpop.f32.mrb[0].mxu0
      %2954 = vdwg.mxu0
      %v2955 = vadd.f32 %v2733, %v2909
      %v2956 = vadd.f32 %v2734, %v2912
      %v2957 = vadd.f32 %v2735, %v2917
      %v2958 = vadd.f32 %v2736, %v2920
      %v2959 = vadd.f32 %v2737, %v2925
      %v2960 = vadd.f32 %v2738, %v2928
      %v2961 = vadd.f32 %v2739, %v2933
      %v2962 = vadd.f32 %v2740, %v2936
      %v2963 = vadd.f32 %v2741, %v2941
      %v2964 = vadd.f32 %v2742, %v2944
      %v2965 = vadd.f32 %v2743, %v2949
      %v2966 = vadd.f32 %v2744, %v2952
      %v2967 = vld [vmem:[%s233 + $0x68] sm:$0x3]
      %v2968 = vld [vmem:[%s1063] sm:$0xf]
      %v2969 = vld [vmem:[%s1063 + $0x4] sm:$0xf]
      %v2970 = vld [vmem:[%s1063 + $0x8] sm:$0xf]
      %v2971 = vld [vmem:[%s1063 + $0xc] sm:$0xf]
      %v2972 = vld [vmem:[%s1063 + $0x10] sm:$0xf]
      %v2973 = vld [vmem:[%s1063 + $0x14] sm:$0xf]
      %v2974 = vld [vmem:[%s1063 + $0x18] sm:$0xf]
      %v2975 = vld [vmem:[%s1063 + $0x1c] sm:$0xf]
      %v2976 = vld [vmem:[%s1063 + $0x20] sm:$0xf]
      %v2977 = vld [vmem:[%s1063 + $0x24] sm:$0xf]
      %v2978 = vld [vmem:[%s1063 + $0x28] sm:$0xf]
      %v2979 = vld [vmem:[%s1063 + $0x2c] sm:$0xf]
      %v2980 = vld [vmem:[%s1063 + $0x30] sm:$0xf]
      %v2981 = vld [vmem:[%s1063 + $0x34] sm:$0xf]
      %v2982 = vld [vmem:[%s1063 + $0x38] sm:$0xf]
      %v2983 = vld [vmem:[%s1063 + $0x3c] sm:$0xf]
      %v2985 = vunpack.c.l.b16 %v2967
      %v2986 = vpack.c.b16 %v2985, %v2985
      %v2988 = vshrl.u32 %v2800, 16
      %v2990 = vrot.slane %v2988, 1
      %v2991 = vshll.u32 %v2800, 16
      %v2993 = vrot.slane %v2991, 2
      %v2994 = vor.u32 %v2990, %v2993
      %v2996 = vshrl.u32 %v2801, 16
      %v2998 = vrot.slane %v2996, 1
      %v2999 = vshll.u32 %v2801, 16
      %v3001 = vrot.slane %v2999, 2
      %v3002 = vor.u32 %v2998, %v3001
      %v3003 = vsel %vm1083, %v2994, %v3002
      %v3005 = vshrl.u32 %v2802, 16
      %v3007 = vrot.slane %v3005, 1
      %v3008 = vshll.u32 %v2802, 16
      %v3010 = vrot.slane %v3008, 2
      %v3011 = vor.u32 %v3007, %v3010
      %v3012 = vsel %vm1083, %v3002, %v3011
      %v3014 = vshrl.u32 %v2803, 16
      %v3016 = vrot.slane %v3014, 1
      %v3017 = vshll.u32 %v2803, 16
      %v3019 = vrot.slane %v3017, 2
      %v3020 = vor.u32 %v3016, %v3019
      %v3021 = vsel %vm1083, %v3011, %v3020
      %v3023 = vshrl.u32 %v2804, 16
      %v3025 = vrot.slane %v3023, 1
      %v3026 = vshll.u32 %v2804, 16
      %v3028 = vrot.slane %v3026, 2
      %v3029 = vor.u32 %v3025, %v3028
      %v3030 = vsel %vm1083, %v3020, %v3029
      %v3032 = vshrl.u32 %v2805, 16
      %v3034 = vrot.slane %v3032, 1
      %v3035 = vshll.u32 %v2805, 16
      %v3037 = vrot.slane %v3035, 2
      %v3038 = vor.u32 %v3034, %v3037
      %v3039 = vsel %vm1083, %v3029, %v3038
      %v3041 = vshrl.u32 %v2986, 16
      %v3043 = vrot.slane %v3041, 1
      %v3044 = vshll.u32 %v2986, 16
      %v3046 = vrot.slane %v3044, 2
      %v3047 = vor.u32 %v3043, %v3046
      %v3048 = vsel %vm1083, %v3038, %v3047
      %v3071 = vunpack.c.l.b16 %v2968
      %v3072 = vunpack.c.l.b16 %v2969
      %v3073 = vunpack.c.l.b16 %v2970
      %v3074 = vunpack.c.l.b16 %v2971
      %v3075 = vunpack.c.l.b16 %v2972
      %v3076 = vunpack.c.l.b16 %v2973
      %v3077 = vunpack.c.l.b16 %v2974
      %v3078 = vunpack.c.l.b16 %v2975
      %v3079 = vunpack.c.l.b16 %v2976
      %v3080 = vunpack.c.l.b16 %v2977
      %v3081 = vunpack.c.l.b16 %v2978
      %v3082 = vunpack.c.l.b16 %v2979
      %v3083 = vunpack.c.l.b16 %v2980
      %v3084 = vunpack.c.l.b16 %v2981
      %v3085 = vunpack.c.l.b16 %v2982
      %v3086 = vunpack.c.l.b16 %v2983
      %v3087 = vpack.c.b16 %v3072, %v3071
      %v3088 = vpack.c.b16 %v3074, %v3073
      %v3089 = vpack.c.b16 %v3076, %v3075
      %v3090 = vpack.c.b16 %v3078, %v3077
      %v3091 = vpack.c.b16 %v3080, %v3079
      %v3092 = vpack.c.b16 %v3082, %v3081
      %v3093 = vpack.c.b16 %v3084, %v3083
      %v3094 = vpack.c.b16 %v3086, %v3085
      %3103 = vmatprep.subr.bf16.mxu0 0
      %3104 = vmatpush1.bf16.msra.mxu0 %v3087
      %3105 = vmatprep.subr.bf16.mxu0 0
      %3106 = vmatpush1.bf16.msra.mxu0 %v3088
      %3107 = vmatprep.subr.bf16.mxu0 0
      %3108 = vmatpush1.bf16.msra.mxu0 %v3089
      %3109 = vmatprep.subr.bf16.mxu0 0
      %3110 = vmatpush1.bf16.msra.mxu0 %v3090
      %3111 = vmatprep.subr.bf16.mxu0 0
      %3112 = vmatpush1.bf16.msra.mxu0 %v3091
      %3113 = vmatprep.subr.bf16.mxu0 0
      %3114 = vmatpush1.bf16.msra.mxu0 %v3092
      %3115 = vmatprep.subr.bf16.mxu0 0
      %3116 = vmatpush1.bf16.msra.mxu0 %v3093
      %3117 = vmatprep.subr.bf16.mxu0 0
      %3118 = vmatpush1.bf16.msra.mxu0 %v3094
      %3119 = vmatprep.subr.bf16.mxu0 0
      %3120 = vmatpush1.bf16.msra.mxu0 0
      %3121 = vmatprep.subr.bf16.mxu0 0
      %3122 = vmatpush1.bf16.msra.mxu0 0
      %3123 = vmatprep.subr.bf16.mxu0 0
      %3124 = vmatpush1.bf16.msra.mxu0 0
      %3125 = vmatprep.subr.bf16.mxu0 0
      %3126 = vmatpush1.bf16.msra.mxu0 0
      %3127 = vmatprep.subr.bf16.mxu0 0
      %3128 = vmatpush1.bf16.msra.mxu0 0
      %3129 = vmatprep.subr.bf16.mxu0 0
      %3130 = vmatpush1.bf16.msra.mxu0 0
      %3131 = vmatprep.subr.bf16.mxu0 0
      %3132 = vmatpush1.bf16.msra.mxu0 0
      %3133 = vmatprep.subr.bf16.mxu0 0
      %3134 = vmatpush1.bf16.msra.mxu0 0
      %3135 = vmatprep.mubr.bf16.mxu0 0
      %3136 = vmatmul.mubr.bf16.gmra.mrb[0].mxu0 %v3003
      %v3137 = vpop.f32.mrb[0].mxu0
      %v3138 = vadd.f32 0.0, %v3137
      %v3139 = vpop.f32.mrb[0].mxu0
      %v3140 = vpop.f32.mrb[0].mxu0
      %v3141 = vadd.f32 0.0, %v3140
      %v3142 = vpop.f32.mrb[0].mxu0
      %3143 = vmatprep.mubr.bf16.mxu0 0
      %3144 = vmatmul.mubr.bf16.gmra.mrb[0].mxu0 %v3012
      %v3145 = vpop.f32.mrb[0].mxu0
      %v3146 = vadd.f32 0.0, %v3145
      %v3147 = vpop.f32.mrb[0].mxu0
      %v3148 = vpop.f32.mrb[0].mxu0
      %v3149 = vadd.f32 0.0, %v3148
      %v3150 = vpop.f32.mrb[0].mxu0
      %3151 = vmatprep.mubr.bf16.mxu0 0
      %3152 = vmatmul.mubr.bf16.gmra.mrb[0].mxu0 %v3021
      %v3153 = vpop.f32.mrb[0].mxu0
      %v3154 = vadd.f32 0.0, %v3153
      %v3155 = vpop.f32.mrb[0].mxu0
      %v3156 = vpop.f32.mrb[0].mxu0
      %v3157 = vadd.f32 0.0, %v3156
      %v3158 = vpop.f32.mrb[0].mxu0
      %3159 = vmatprep.mubr.bf16.mxu0 0
      %3160 = vmatmul.mubr.bf16.gmra.mrb[0].mxu0 %v3030
      %v3161 = vpop.f32.mrb[0].mxu0
      %v3162 = vadd.f32 0.0, %v3161
      %v3163 = vpop.f32.mrb[0].mxu0
      %v3164 = vpop.f32.mrb[0].mxu0
      %v3165 = vadd.f32 0.0, %v3164
      %v3166 = vpop.f32.mrb[0].mxu0
      %3167 = vmatprep.mubr.bf16.mxu0 0
      %3168 = vmatmul.mubr.bf16.gmra.mrb[0].mxu0 %v3039
      %v3169 = vpop.f32.mrb[0].mxu0
      %v3170 = vadd.f32 0.0, %v3169
      %v3171 = vpop.f32.mrb[0].mxu0
      %v3172 = vpop.f32.mrb[0].mxu0
      %v3173 = vadd.f32 0.0, %v3172
      %v3174 = vpop.f32.mrb[0].mxu0
      %3175 = vmatprep.mubr.bf16.mxu0 0
      %3176 = vmatmul.mubr.bf16.gmra.mrb[0].mxu0 %v3048
      %v3177 = vpop.f32.mrb[0].mxu0
      %v3178 = vadd.f32 0.0, %v3177
      %v3179 = vpop.f32.mrb[0].mxu0
      %v3180 = vpop.f32.mrb[0].mxu0
      %v3181 = vadd.f32 0.0, %v3180
      %v3182 = vpop.f32.mrb[0].mxu0
      %3183 = vdwg.mxu0
      %v3184 = vadd.f32 %v2955, %v3138
      %v3185 = vadd.f32 %v2956, %v3141
      %v3186 = vadd.f32 %v2957, %v3146
      %v3187 = vadd.f32 %v2958, %v3149
      %v3188 = vadd.f32 %v2959, %v3154
      %v3189 = vadd.f32 %v2960, %v3157
      %v3190 = vadd.f32 %v2961, %v3162
      %v3191 = vadd.f32 %v2962, %v3165
      %v3192 = vadd.f32 %v2963, %v3170
      %v3193 = vadd.f32 %v2964, %v3173
      %v3194 = vadd.f32 %v2965, %v3178
      %v3195 = vadd.f32 %v2966, %v3181
      %v3196 = vld [vmem:[%s233 + $0x38] sm:$0xc]
      %v3197 = vld [vmem:[%s1294] sm:$0xf]
      %v3198 = vld [vmem:[%s1294 + $0x4] sm:$0xf]
      %v3199 = vld [vmem:[%s1294 + $0x8] sm:$0xf]
      %v3200 = vld [vmem:[%s1294 + $0xc] sm:$0xf]
      %v3201 = vld [vmem:[%s1294 + $0x10] sm:$0xf]
      %v3202 = vld [vmem:[%s1294 + $0x14] sm:$0xf]
      %v3203 = vld [vmem:[%s1294 + $0x18] sm:$0xf]
      %v3204 = vld [vmem:[%s1294 + $0x1c] sm:$0xf]
      %v3205 = vld [vmem:[%s1294 + $0x20] sm:$0xf]
      %v3206 = vld [vmem:[%s1294 + $0x24] sm:$0xf]
      %v3207 = vld [vmem:[%s1294 + $0x28] sm:$0xf]
      %v3208 = vld [vmem:[%s1294 + $0x2c] sm:$0xf]
      %v3209 = vld [vmem:[%s1294 + $0x30] sm:$0xf]
      %v3210 = vld [vmem:[%s1294 + $0x34] sm:$0xf]
      %v3211 = vld [vmem:[%s1294 + $0x38] sm:$0xf]
      %v3212 = vld [vmem:[%s1294 + $0x3c] sm:$0xf]
      %v3214 = vunpack.c.l.b16 %v3196
      %v3215 = vpack.c.b16 %v2788, %v3214
      %v3216 = vrot.slane %v3215, 2
      %v3217 = vrot.slane %v2801, 2
      %v3218 = vsel %vm1314, %v3216, %v3217
      %v3219 = vrot.slane %v2802, 2
      %v3220 = vsel %vm1314, %v3217, %v3219
      %v3221 = vrot.slane %v2803, 2
      %v3222 = vsel %vm1314, %v3219, %v3221
      %v3223 = vrot.slane %v2804, 2
      %v3224 = vsel %vm1314, %v3221, %v3223
      %v3225 = vrot.slane %v2805, 2
      %v3226 = vsel %vm1314, %v3223, %v3225
      %v3227 = vrot.slane %v2986, 2
      %v3228 = vsel %vm1314, %v3225, %v3227
      %v3251 = vunpack.c.l.b16 %v3197
      %v3252 = vunpack.c.l.b16 %v3198
      %v3253 = vunpack.c.l.b16 %v3199
      %v3254 = vunpack.c.l.b16 %v3200
      %v3255 = vunpack.c.l.b16 %v3201
      %v3256 = vunpack.c.l.b16 %v3202
      %v3257 = vunpack.c.l.b16 %v3203
      %v3258 = vunpack.c.l.b16 %v3204
      %v3259 = vunpack.c.l.b16 %v3205
      %v3260 = vunpack.c.l.b16 %v3206
      %v3261 = vunpack.c.l.b16 %v3207
      %v3262 = vunpack.c.l.b16 %v3208
      %v3263 = vunpack.c.l.b16 %v3209
      %v3264 = vunpack.c.l.b16 %v3210
      %v3265 = vunpack.c.l.b16 %v3211
      %v3266 = vunpack.c.l.b16 %v3212
      %v3267 = vpack.c.b16 %v3252, %v3251
      %v3268 = vpack.c.b16 %v3254, %v3253
      %v3269 = vpack.c.b16 %v3256, %v3255
      %v3270 = vpack.c.b16 %v3258, %v3257
      %v3271 = vpack.c.b16 %v3260, %v3259
      %v3272 = vpack.c.b16 %v3262, %v3261
      %v3273 = vpack.c.b16 %v3264, %v3263
      %v3274 = vpack.c.b16 %v3266, %v3265
      %3283 = vmatprep.subr.bf16.mxu0 0
      %3284 = vmatpush1.bf16.msra.mxu0 %v3267
      %3285 = vmatprep.subr.bf16.mxu0 0
      %3286 = vmatpush1.bf16.msra.mxu0 %v3268
      %3287 = vmatprep.subr.bf16.mxu0 0
      %3288 = vmatpush1.bf16.msra.mxu0 %v3269
      %3289 = vmatprep.subr.bf16.mxu0 0
      %3290 = vmatpush1.bf16.msra.mxu0 %v3270
      %3291 = vmatprep.subr.bf16.mxu0 0
      %3292 = vmatpush1.bf16.msra.mxu0 %v3271
      %3293 = vmatprep.subr.bf16.mxu0 0
      %3294 = vmatpush1.bf16.msra.mxu0 %v3272
      %3295 = vmatprep.subr.bf16.mxu0 0
      %3296 = vmatpush1.bf16.msra.mxu0 %v3273
      %3297 = vmatprep.subr.bf16.mxu0 0
      %3298 = vmatpush1.bf16.msra.mxu0 %v3274
      %3299 = vmatprep.subr.bf16.mxu0 0
      %3300 = vmatpush1.bf16.msra.mxu0 0
      %3301 = vmatprep.subr.bf16.mxu0 0
      %3302 = vmatpush1.bf16.msra.mxu0 0
      %3303 = vmatprep.subr.bf16.mxu0 0
      %3304 = vmatpush1.bf16.msra.mxu0 0
      %3305 = vmatprep.subr.bf16.mxu0 0
      %3306 = vmatpush1.bf16.msra.mxu0 0
      %3307 = vmatprep.subr.bf16.mxu0 0
      %3308 = vmatpush1.bf16.msra.mxu0 0
      %3309 = vmatprep.subr.bf16.mxu0 0
      %3310 = vmatpush1.bf16.msra.mxu0 0
      %3311 = vmatprep.subr.bf16.mxu0 0
      %3312 = vmatpush1.bf16.msra.mxu0 0
      %3313 = vmatprep.subr.bf16.mxu0 0
      %3314 = vmatpush1.bf16.msra.mxu0 0
      %3315 = vmatprep.mubr.bf16.mxu0 0
      %3316 = vmatmul.mubr.bf16.gmra.mrb[0].mxu0 %v3218
      %v3317 = vpop.f32.mrb[0].mxu0
      %v3318 = vadd.f32 0.0, %v3317
      %v3319 = vpop.f32.mrb[0].mxu0
      %v3320 = vpop.f32.mrb[0].mxu0
      %v3321 = vadd.f32 0.0, %v3320
      %v3322 = vpop.f32.mrb[0].mxu0
      %3323 = vmatprep.mubr.bf16.mxu0 0
      %3324 = vmatmul.mubr.bf16.gmra.mrb[0].mxu0 %v3220
      %v3325 = vpop.f32.mrb[0].mxu0
      %v3326 = vadd.f32 0.0, %v3325
      %v3327 = vpop.f32.mrb[0].mxu0
      %v3328 = vpop.f32.mrb[0].mxu0
      %v3329 = vadd.f32 0.0, %v3328
      %v3330 = vpop.f32.mrb[0].mxu0
      %3331 = vmatprep.mubr.bf16.mxu0 0
      %3332 = vmatmul.mubr.bf16.gmra.mrb[0].mxu0 %v3222
      %v3333 = vpop.f32.mrb[0].mxu0
      %v3334 = vadd.f32 0.0, %v3333
      %v3335 = vpop.f32.mrb[0].mxu0
      %v3336 = vpop.f32.mrb[0].mxu0
      %v3337 = vadd.f32 0.0, %v3336
      %v3338 = vpop.f32.mrb[0].mxu0
      %3339 = vmatprep.mubr.bf16.mxu0 0
      %3340 = vmatmul.mubr.bf16.gmra.mrb[0].mxu0 %v3224
      %v3341 = vpop.f32.mrb[0].mxu0
      %v3342 = vadd.f32 0.0, %v3341
      %v3343 = vpop.f32.mrb[0].mxu0
      %v3344 = vpop.f32.mrb[0].mxu0
      %v3345 = vadd.f32 0.0, %v3344
      %v3346 = vpop.f32.mrb[0].mxu0
      %3347 = vmatprep.mubr.bf16.mxu0 0
      %3348 = vmatmul.mubr.bf16.gmra.mrb[0].mxu0 %v3226
      %v3349 = vpop.f32.mrb[0].mxu0
      %v3350 = vadd.f32 0.0, %v3349
      %v3351 = vpop.f32.mrb[0].mxu0
      %v3352 = vpop.f32.mrb[0].mxu0
      %v3353 = vadd.f32 0.0, %v3352
      %v3354 = vpop.f32.mrb[0].mxu0
      %3355 = vmatprep.mubr.bf16.mxu0 0
      %3356 = vmatmul.mubr.bf16.gmra.mrb[0].mxu0 %v3228
      %v3357 = vpop.f32.mrb[0].mxu0
      %v3358 = vadd.f32 0.0, %v3357
      %v3359 = vpop.f32.mrb[0].mxu0
      %v3360 = vpop.f32.mrb[0].mxu0
      %v3361 = vadd.f32 0.0, %v3360
      %v3362 = vpop.f32.mrb[0].mxu0
      %3363 = vdwg.mxu0
      %v3364 = vadd.f32 %v3184, %v3318
      %v3365 = vadd.f32 %v3185, %v3321
      %v3366 = vadd.f32 %v3186, %v3326
      %v3367 = vadd.f32 %v3187, %v3329
      %v3368 = vadd.f32 %v3188, %v3334
      %v3369 = vadd.f32 %v3189, %v3337
      %v3370 = vadd.f32 %v3190, %v3342
      %v3371 = vadd.f32 %v3191, %v3345
      %v3372 = vadd.f32 %v3192, %v3350
      %v3373 = vadd.f32 %v3193, %v3353
      %v3374 = vadd.f32 %v3194, %v3358
      %v3375 = vadd.f32 %v3195, %v3361
      %v3376 = vld [vmem:[%s233 + $0x40] sm:$0xc]
      %v3377 = vld [vmem:[%s233 + $0x44] sm:$0xf]
      %v3378 = vld [vmem:[%s233 + $0x48] sm:$0xf]
      %v3379 = vld [vmem:[%s233 + $0x4c] sm:$0xf]
      %v3380 = vld [vmem:[%s233 + $0x50] sm:$0xf]
      %v3381 = vld [vmem:[%s233 + $0x54] sm:$0xf]
      %v3382 = vld [vmem:[%s233 + $0x58] sm:$0xf]
      %v3383 = vld [vmem:[%s233 + $0x5c] sm:$0xf]
      %v3384 = vld [vmem:[%s233 + $0x60] sm:$0xf]
      %v3385 = vld [vmem:[%s233 + $0x64] sm:$0xf]
      %v3386 = vld [vmem:[%s233 + $0x68] sm:$0xf]
      %v3387 = vld [vmem:[%s233 + $0x6c] sm:$0xf]
      %v3388 = vld [vmem:[%s233 + $0x70] sm:$0x3]
      %v3389 = vld [vmem:[%s1488] sm:$0xf]
      %v3390 = vld [vmem:[%s1488 + $0x4] sm:$0xf]
      %v3391 = vld [vmem:[%s1488 + $0x8] sm:$0xf]
      %v3392 = vld [vmem:[%s1488 + $0xc] sm:$0xf]
      %v3393 = vld [vmem:[%s1488 + $0x10] sm:$0xf]
      %v3394 = vld [vmem:[%s1488 + $0x14] sm:$0xf]
      %v3395 = vld [vmem:[%s1488 + $0x18] sm:$0xf]
      %v3396 = vld [vmem:[%s1488 + $0x1c] sm:$0xf]
      %v3397 = vld [vmem:[%s1488 + $0x20] sm:$0xf]
      %v3398 = vld [vmem:[%s1488 + $0x24] sm:$0xf]
      %v3399 = vld [vmem:[%s1488 + $0x28] sm:$0xf]
      %v3400 = vld [vmem:[%s1488 + $0x2c] sm:$0xf]
      %v3401 = vld [vmem:[%s1488 + $0x30] sm:$0xf]
      %v3402 = vld [vmem:[%s1488 + $0x34] sm:$0xf]
      %v3403 = vld [vmem:[%s1488 + $0x38] sm:$0xf]
      %v3404 = vld [vmem:[%s1488 + $0x3c] sm:$0xf]
      %v3418 = vunpack.c.l.b16 %v3376
      %v3419 = vunpack.c.l.b16 %v3377
      %v3420 = vunpack.c.l.b16 %v3378
      %v3421 = vunpack.c.l.b16 %v3379
      %v3422 = vunpack.c.l.b16 %v3380
      %v3423 = vunpack.c.l.b16 %v3381
      %v3424 = vunpack.c.l.b16 %v3382
      %v3425 = vunpack.c.l.b16 %v3383
      %v3426 = vunpack.c.l.b16 %v3384
      %v3427 = vunpack.c.l.b16 %v3385
      %v3428 = vunpack.c.l.b16 %v3386
      %v3429 = vunpack.c.l.b16 %v3387
      %v3430 = vunpack.c.l.b16 %v3388
      %v3431 = vpack.c.b16 %v3419, %v3418
      %v3432 = vpack.c.b16 %v3421, %v3420
      %v3433 = vpack.c.b16 %v3423, %v3422
      %v3434 = vpack.c.b16 %v3425, %v3424
      %v3435 = vpack.c.b16 %v3427, %v3426
      %v3436 = vpack.c.b16 %v3429, %v3428
      %v3437 = vpack.c.b16 %v3430, %v3430
      %v3438 = vrot.slane %v3431, 2
      %v3439 = vrot.slane %v3432, 2
      %v3440 = vsel %vm1314, %v3438, %v3439
      %v3441 = vrot.slane %v3433, 2
      %v3442 = vsel %vm1314, %v3439, %v3441
      %v3443 = vrot.slane %v3434, 2
      %v3444 = vsel %vm1314, %v3441, %v3443
      %v3445 = vrot.slane %v3435, 2
      %v3446 = vsel %vm1314, %v3443, %v3445
      %v3447 = vrot.slane %v3436, 2
      %v3448 = vsel %vm1314, %v3445, %v3447
      %v3449 = vrot.slane %v3437, 2
      %v3450 = vsel %vm1314, %v3447, %v3449
      %v3473 = vunpack.c.l.b16 %v3389
      %v3474 = vunpack.c.l.b16 %v3390
      %v3475 = vunpack.c.l.b16 %v3391
      %v3476 = vunpack.c.l.b16 %v3392
      %v3477 = vunpack.c.l.b16 %v3393
      %v3478 = vunpack.c.l.b16 %v3394
      %v3479 = vunpack.c.l.b16 %v3395
      %v3480 = vunpack.c.l.b16 %v3396
      %v3481 = vunpack.c.l.b16 %v3397
      %v3482 = vunpack.c.l.b16 %v3398
      %v3483 = vunpack.c.l.b16 %v3399
      %v3484 = vunpack.c.l.b16 %v3400
      %v3485 = vunpack.c.l.b16 %v3401
      %v3486 = vunpack.c.l.b16 %v3402
      %v3487 = vunpack.c.l.b16 %v3403
      %v3488 = vunpack.c.l.b16 %v3404
      %v3489 = vpack.c.b16 %v3474, %v3473
      %v3490 = vpack.c.b16 %v3476, %v3475
      %v3491 = vpack.c.b16 %v3478, %v3477
      %v3492 = vpack.c.b16 %v3480, %v3479
      %v3493 = vpack.c.b16 %v3482, %v3481
      %v3494 = vpack.c.b16 %v3484, %v3483
      %v3495 = vpack.c.b16 %v3486, %v3485
      %v3496 = vpack.c.b16 %v3488, %v3487
      %3505 = vmatprep.subr.bf16.mxu0 0
      %3506 = vmatpush1.bf16.msra.mxu0 %v3489
      %3507 = vmatprep.subr.bf16.mxu0 0
      %3508 = vmatpush1.bf16.msra.mxu0 %v3490
      %3509 = vmatprep.subr.bf16.mxu0 0
      %3510 = vmatpush1.bf16.msra.mxu0 %v3491
      %3511 = vmatprep.subr.bf16.mxu0 0
      %3512 = vmatpush1.bf16.msra.mxu0 %v3492
      %3513 = vmatprep.subr.bf16.mxu0 0
      %3514 = vmatpush1.bf16.msra.mxu0 %v3493
      %3515 = vmatprep.subr.bf16.mxu0 0
      %3516 = vmatpush1.bf16.msra.mxu0 %v3494
      %3517 = vmatprep.subr.bf16.mxu0 0
      %3518 = vmatpush1.bf16.msra.mxu0 %v3495
      %3519 = vmatprep.subr.bf16.mxu0 0
      %3520 = vmatpush1.bf16.msra.mxu0 %v3496
      %3521 = vmatprep.subr.bf16.mxu0 0
      %3522 = vmatpush1.bf16.msra.mxu0 0
      %3523 = vmatprep.subr.bf16.mxu0 0
      %3524 = vmatpush1.bf16.msra.mxu0 0
      %3525 = vmatprep.subr.bf16.mxu0 0
      %3526 = vmatpush1.bf16.msra.mxu0 0
      %3527 = vmatprep.subr.bf16.mxu0 0
      %3528 = vmatpush1.bf16.msra.mxu0 0
      %3529 = vmatprep.subr.bf16.mxu0 0
      %3530 = vmatpush1.bf16.msra.mxu0 0
      %3531 = vmatprep.subr.bf16.mxu0 0
      %3532 = vmatpush1.bf16.msra.mxu0 0
      %3533 = vmatprep.subr.bf16.mxu0 0
      %3534 = vmatpush1.bf16.msra.mxu0 0
      %3535 = vmatprep.subr.bf16.mxu0 0
      %3536 = vmatpush1.bf16.msra.mxu0 0
      %3537 = vmatprep.mubr.bf16.mxu0 0
      %3538 = vmatmul.mubr.bf16.gmra.mrb[0].mxu0 %v3440
      %v3539 = vpop.f32.mrb[0].mxu0
      %v3540 = vadd.f32 0.0, %v3539
      %v3541 = vpop.f32.mrb[0].mxu0
      %v3542 = vpop.f32.mrb[0].mxu0
      %v3543 = vadd.f32 0.0, %v3542
      %v3544 = vpop.f32.mrb[0].mxu0
      %3545 = vmatprep.mubr.bf16.mxu0 0
      %3546 = vmatmul.mubr.bf16.gmra.mrb[0].mxu0 %v3442
      %v3547 = vpop.f32.mrb[0].mxu0
      %v3548 = vadd.f32 0.0, %v3547
      %v3549 = vpop.f32.mrb[0].mxu0
      %v3550 = vpop.f32.mrb[0].mxu0
      %v3551 = vadd.f32 0.0, %v3550
      %v3552 = vpop.f32.mrb[0].mxu0
      %3553 = vmatprep.mubr.bf16.mxu0 0
      %3554 = vmatmul.mubr.bf16.gmra.mrb[0].mxu0 %v3444
      %v3555 = vpop.f32.mrb[0].mxu0
      %v3556 = vadd.f32 0.0, %v3555
      %v3557 = vpop.f32.mrb[0].mxu0
      %v3558 = vpop.f32.mrb[0].mxu0
      %v3559 = vadd.f32 0.0, %v3558
      %v3560 = vpop.f32.mrb[0].mxu0
      %3561 = vmatprep.mubr.bf16.mxu0 0
      %3562 = vmatmul.mubr.bf16.gmra.mrb[0].mxu0 %v3446
      %v3563 = vpop.f32.mrb[0].mxu0
      %v3564 = vadd.f32 0.0, %v3563
      %v3565 = vpop.f32.mrb[0].mxu0
      %v3566 = vpop.f32.mrb[0].mxu0
      %v3567 = vadd.f32 0.0, %v3566
      %v3568 = vpop.f32.mrb[0].mxu0
      %3569 = vmatprep.mubr.bf16.mxu0 0
      %3570 = vmatmul.mubr.bf16.gmra.mrb[0].mxu0 %v3448
      %v3571 = vpop.f32.mrb[0].mxu0
      %v3572 = vadd.f32 0.0, %v3571
      %v3573 = vpop.f32.mrb[0].mxu0
      %v3574 = vpop.f32.mrb[0].mxu0
      %v3575 = vadd.f32 0.0, %v3574
      %v3576 = vpop.f32.mrb[0].mxu0
      %3577 = vmatprep.mubr.bf16.mxu0 0
      %3578 = vmatmul.mubr.bf16.gmra.mrb[0].mxu0 %v3450
      %v3579 = vpop.f32.mrb[0].mxu0
      %v3580 = vadd.f32 0.0, %v3579
      %v3581 = vpop.f32.mrb[0].mxu0
      %v3582 = vpop.f32.mrb[0].mxu0
      %v3583 = vadd.f32 0.0, %v3582
      %v3584 = vpop.f32.mrb[0].mxu0
      %3585 = vdwg.mxu0
      %v3586 = vadd.f32 %v3364, %v3540
      %v3587 = vadd.f32 %v3365, %v3543
      %v3588 = vadd.f32 %v3366, %v3548
      %v3589 = vadd.f32 %v3367, %v3551
      %v3590 = vadd.f32 %v3368, %v3556
      %v3591 = vadd.f32 %v3369, %v3559
      %v3592 = vadd.f32 %v3370, %v3564
      %v3593 = vadd.f32 %v3371, %v3567
      %v3594 = vadd.f32 %v3372, %v3572
      %v3595 = vadd.f32 %v3373, %v3575
      %v3596 = vadd.f32 %v3374, %v3580
      %v3597 = vadd.f32 %v3375, %v3583
      %v3598 = vld [vmem:[%s233 + $0x70] sm:$0x7]
      %v3599 = vld [vmem:[%s1699] sm:$0xf]
      %v3600 = vld [vmem:[%s1699 + $0x4] sm:$0xf]
      %v3601 = vld [vmem:[%s1699 + $0x8] sm:$0xf]
      %v3602 = vld [vmem:[%s1699 + $0xc] sm:$0xf]
      %v3603 = vld [vmem:[%s1699 + $0x10] sm:$0xf]
      %v3604 = vld [vmem:[%s1699 + $0x14] sm:$0xf]
      %v3605 = vld [vmem:[%s1699 + $0x18] sm:$0xf]
      %v3606 = vld [vmem:[%s1699 + $0x1c] sm:$0xf]
      %v3607 = vld [vmem:[%s1699 + $0x20] sm:$0xf]
      %v3608 = vld [vmem:[%s1699 + $0x24] sm:$0xf]
      %v3609 = vld [vmem:[%s1699 + $0x28] sm:$0xf]
      %v3610 = vld [vmem:[%s1699 + $0x2c] sm:$0xf]
      %v3611 = vld [vmem:[%s1699 + $0x30] sm:$0xf]
      %v3612 = vld [vmem:[%s1699 + $0x34] sm:$0xf]
      %v3613 = vld [vmem:[%s1699 + $0x38] sm:$0xf]
      %v3614 = vld [vmem:[%s1699 + $0x3c] sm:$0xf]
      %v3616 = vunpack.c.l.b16 %v3598
      %v3617 = vpack.c.b16 %v3616, %v3616
      %v3619 = vshrl.u32 %v3431, 16
      %v3621 = vrot.slane %v3619, 2
      %v3622 = vshll.u32 %v3431, 16
      %v3624 = vrot.slane %v3622, 3
      %v3625 = vor.u32 %v3621, %v3624
      %v3627 = vshrl.u32 %v3432, 16
      %v3629 = vrot.slane %v3627, 2
      %v3630 = vshll.u32 %v3432, 16
      %v3632 = vrot.slane %v3630, 3
      %v3633 = vor.u32 %v3629, %v3632
      %v3634 = vsel %vm1719, %v3625, %v3633
      %v3636 = vshrl.u32 %v3433, 16
      %v3638 = vrot.slane %v3636, 2
      %v3639 = vshll.u32 %v3433, 16
      %v3641 = vrot.slane %v3639, 3
      %v3642 = vor.u32 %v3638, %v3641
      %v3643 = vsel %vm1719, %v3633, %v3642
      %v3645 = vshrl.u32 %v3434, 16
      %v3647 = vrot.slane %v3645, 2
      %v3648 = vshll.u32 %v3434, 16
      %v3650 = vrot.slane %v3648, 3
      %v3651 = vor.u32 %v3647, %v3650
      %v3652 = vsel %vm1719, %v3642, %v3651
      %v3654 = vshrl.u32 %v3435, 16
      %v3656 = vrot.slane %v3654, 2
      %v3657 = vshll.u32 %v3435, 16
      %v3659 = vrot.slane %v3657, 3
      %v3660 = vor.u32 %v3656, %v3659
      %v3661 = vsel %vm1719, %v3651, %v3660
      %v3663 = vshrl.u32 %v3436, 16
      %v3665 = vrot.slane %v3663, 2
      %v3666 = vshll.u32 %v3436, 16
      %v3668 = vrot.slane %v3666, 3
      %v3669 = vor.u32 %v3665, %v3668
      %v3670 = vsel %vm1719, %v3660, %v3669
      %v3672 = vshrl.u32 %v3617, 16
      %v3674 = vrot.slane %v3672, 2
      %v3675 = vshll.u32 %v3617, 16
      %v3677 = vrot.slane %v3675, 3
      %v3678 = vor.u32 %v3674, %v3677
      %v3679 = vsel %vm1719, %v3669, %v3678
      %v3702 = vunpack.c.l.b16 %v3599
      %v3703 = vunpack.c.l.b16 %v3600
      %v3704 = vunpack.c.l.b16 %v3601
      %v3705 = vunpack.c.l.b16 %v3602
      %v3706 = vunpack.c.l.b16 %v3603
      %v3707 = vunpack.c.l.b16 %v3604
      %v3708 = vunpack.c.l.b16 %v3605
      %v3709 = vunpack.c.l.b16 %v3606
      %v3710 = vunpack.c.l.b16 %v3607
      %v3711 = vunpack.c.l.b16 %v3608
      %v3712 = vunpack.c.l.b16 %v3609
      %v3713 = vunpack.c.l.b16 %v3610
      %v3714 = vunpack.c.l.b16 %v3611
      %v3715 = vunpack.c.l.b16 %v3612
      %v3716 = vunpack.c.l.b16 %v3613
      %v3717 = vunpack.c.l.b16 %v3614
      %v3718 = vpack.c.b16 %v3703, %v3702
      %v3719 = vpack.c.b16 %v3705, %v3704
      %v3720 = vpack.c.b16 %v3707, %v3706
      %v3721 = vpack.c.b16 %v3709, %v3708
      %v3722 = vpack.c.b16 %v3711, %v3710
      %v3723 = vpack.c.b16 %v3713, %v3712
      %v3724 = vpack.c.b16 %v3715, %v3714
      %v3725 = vpack.c.b16 %v3717, %v3716
      %3734 = vmatprep.subr.bf16.mxu0 0
      %3735 = vmatpush1.bf16.msra.mxu0 %v3718
      %3736 = vmatprep.subr.bf16.mxu0 0
      %3737 = vmatpush1.bf16.msra.mxu0 %v3719
      %3738 = vmatprep.subr.bf16.mxu0 0
      %3739 = vmatpush1.bf16.msra.mxu0 %v3720
      %3740 = vmatprep.subr.bf16.mxu0 0
      %3741 = vmatpush1.bf16.msra.mxu0 %v3721
      %3742 = vmatprep.subr.bf16.mxu0 0
      %3743 = vmatpush1.bf16.msra.mxu0 %v3722
      %3744 = vmatprep.subr.bf16.mxu0 0
      %3745 = vmatpush1.bf16.msra.mxu0 %v3723
      %3746 = vmatprep.subr.bf16.mxu0 0
      %3747 = vmatpush1.bf16.msra.mxu0 %v3724
      %3748 = vmatprep.subr.bf16.mxu0 0
      %3749 = vmatpush1.bf16.msra.mxu0 %v3725
      %3750 = vmatprep.subr.bf16.mxu0 0
      %3751 = vmatpush1.bf16.msra.mxu0 0
      %3752 = vmatprep.subr.bf16.mxu0 0
      %3753 = vmatpush1.bf16.msra.mxu0 0
      %3754 = vmatprep.subr.bf16.mxu0 0
      %3755 = vmatpush1.bf16.msra.mxu0 0
      %3756 = vmatprep.subr.bf16.mxu0 0
      %3757 = vmatpush1.bf16.msra.mxu0 0
      %3758 = vmatprep.subr.bf16.mxu0 0
      %3759 = vmatpush1.bf16.msra.mxu0 0
      %3760 = vmatprep.subr.bf16.mxu0 0
      %3761 = vmatpush1.bf16.msra.mxu0 0
      %3762 = vmatprep.subr.bf16.mxu0 0
      %3763 = vmatpush1.bf16.msra.mxu0 0
      %3764 = vmatprep.subr.bf16.mxu0 0
      %3765 = vmatpush1.bf16.msra.mxu0 0
      %3766 = vmatprep.mubr.bf16.mxu0 0
      %3767 = vmatmul.mubr.bf16.gmra.mrb[0].mxu0 %v3634
      %v3768 = vpop.f32.mrb[0].mxu0
      %v3769 = vadd.f32 0.0, %v3768
      %v3770 = vpop.f32.mrb[0].mxu0
      %v3771 = vpop.f32.mrb[0].mxu0
      %v3772 = vadd.f32 0.0, %v3771
      %v3773 = vpop.f32.mrb[0].mxu0
      %3774 = vmatprep.mubr.bf16.mxu0 0
      %3775 = vmatmul.mubr.bf16.gmra.mrb[0].mxu0 %v3643
      %v3776 = vpop.f32.mrb[0].mxu0
      %v3777 = vadd.f32 0.0, %v3776
      %v3778 = vpop.f32.mrb[0].mxu0
      %v3779 = vpop.f32.mrb[0].mxu0
      %v3780 = vadd.f32 0.0, %v3779
      %v3781 = vpop.f32.mrb[0].mxu0
      %3782 = vmatprep.mubr.bf16.mxu0 0
      %3783 = vmatmul.mubr.bf16.gmra.mrb[0].mxu0 %v3652
      %v3784 = vpop.f32.mrb[0].mxu0
      %v3785 = vadd.f32 0.0, %v3784
      %v3786 = vpop.f32.mrb[0].mxu0
      %v3787 = vpop.f32.mrb[0].mxu0
      %v3788 = vadd.f32 0.0, %v3787
      %v3789 = vpop.f32.mrb[0].mxu0
      %3790 = vmatprep.mubr.bf16.mxu0 0
      %3791 = vmatmul.mubr.bf16.gmra.mrb[0].mxu0 %v3661
      %v3792 = vpop.f32.mrb[0].mxu0
      %v3793 = vadd.f32 0.0, %v3792
      %v3794 = vpop.f32.mrb[0].mxu0
      %v3795 = vpop.f32.mrb[0].mxu0
      %v3796 = vadd.f32 0.0, %v3795
      %v3797 = vpop.f32.mrb[0].mxu0
      %3798 = vmatprep.mubr.bf16.mxu0 0
      %3799 = vmatmul.mubr.bf16.gmra.mrb[0].mxu0 %v3670
      %v3800 = vpop.f32.mrb[0].mxu0
      %v3801 = vadd.f32 0.0, %v3800
      %v3802 = vpop.f32.mrb[0].mxu0
      %v3803 = vpop.f32.mrb[0].mxu0
      %v3804 = vadd.f32 0.0, %v3803
      %v3805 = vpop.f32.mrb[0].mxu0
      %3806 = vmatprep.mubr.bf16.mxu0 0
      %3807 = vmatmul.mubr.bf16.gmra.mrb[0].mxu0 %v3679
      %v3808 = vpop.f32.mrb[0].mxu0
      %v3809 = vadd.f32 0.0, %v3808
      %v3810 = vpop.f32.mrb[0].mxu0
      %v3811 = vpop.f32.mrb[0].mxu0
      %v3812 = vadd.f32 0.0, %v3811
      %v3813 = vpop.f32.mrb[0].mxu0
      %3814 = vdwg.mxu0
      %v3815 = vadd.f32 %v3586, %v3769
      %v3816 = vadd.f32 %v3587, %v3772
      %v3817 = vadd.f32 %v3588, %v3777
      %v3818 = vadd.f32 %v3589, %v3780
      %v3819 = vadd.f32 %v3590, %v3785
      %v3820 = vadd.f32 %v3591, %v3788
      %v3821 = vadd.f32 %v3592, %v3793
      %v3822 = vadd.f32 %v3593, %v3796
      %v3823 = vadd.f32 %v3594, %v3801
      %v3824 = vadd.f32 %v3595, %v3804
      %v3825 = vadd.f32 %v3596, %v3809
      %v3826 = vadd.f32 %v3597, %v3812
      %v3827 = vld [vmem:[%s233 + $0x40] sm:$0x8]
      %v3828 = vld [vmem:[%s1930] sm:$0xf]
      %v3829 = vld [vmem:[%s1930 + $0x4] sm:$0xf]
      %v3830 = vld [vmem:[%s1930 + $0x8] sm:$0xf]
      %v3831 = vld [vmem:[%s1930 + $0xc] sm:$0xf]
      %v3832 = vld [vmem:[%s1930 + $0x10] sm:$0xf]
      %v3833 = vld [vmem:[%s1930 + $0x14] sm:$0xf]
      %v3834 = vld [vmem:[%s1930 + $0x18] sm:$0xf]
      %v3835 = vld [vmem:[%s1930 + $0x1c] sm:$0xf]
      %v3836 = vld [vmem:[%s1930 + $0x20] sm:$0xf]
      %v3837 = vld [vmem:[%s1930 + $0x24] sm:$0xf]
      %v3838 = vld [vmem:[%s1930 + $0x28] sm:$0xf]
      %v3839 = vld [vmem:[%s1930 + $0x2c] sm:$0xf]
      %v3840 = vld [vmem:[%s1930 + $0x30] sm:$0xf]
      %v3841 = vld [vmem:[%s1930 + $0x34] sm:$0xf]
      %v3842 = vld [vmem:[%s1930 + $0x38] sm:$0xf]
      %v3843 = vld [vmem:[%s1930 + $0x3c] sm:$0xf]
      %v3845 = vunpack.c.l.b16 %v3827
      %v3846 = vpack.c.b16 %v3419, %v3845
      %v3847 = vrot.slane %v3846, 3
      %v3848 = vrot.slane %v3432, 3
      %v3849 = vsel %vm1950, %v3847, %v3848
      %v3850 = vrot.slane %v3433, 3
      %v3851 = vsel %vm1950, %v3848, %v3850
      %v3852 = vrot.slane %v3434, 3
      %v3853 = vsel %vm1950, %v3850, %v3852
      %v3854 = vrot.slane %v3435, 3
      %v3855 = vsel %vm1950, %v3852, %v3854
      %v3856 = vrot.slane %v3436, 3
      %v3857 = vsel %vm1950, %v3854, %v3856
      %v3858 = vrot.slane %v3617, 3
      %v3859 = vsel %vm1950, %v3856, %v3858
      %v3882 = vunpack.c.l.b16 %v3828
      %v3883 = vunpack.c.l.b16 %v3829
      %v3884 = vunpack.c.l.b16 %v3830
      %v3885 = vunpack.c.l.b16 %v3831
      %v3886 = vunpack.c.l.b16 %v3832
      %v3887 = vunpack.c.l.b16 %v3833
      %v3888 = vunpack.c.l.b16 %v3834
      %v3889 = vunpack.c.l.b16 %v3835
      %v3890 = vunpack.c.l.b16 %v3836
      %v3891 = vunpack.c.l.b16 %v3837
      %v3892 = vunpack.c.l.b16 %v3838
      %v3893 = vunpack.c.l.b16 %v3839
      %v3894 = vunpack.c.l.b16 %v3840
      %v3895 = vunpack.c.l.b16 %v3841
      %v3896 = vunpack.c.l.b16 %v3842
      %v3897 = vunpack.c.l.b16 %v3843
      %v3898 = vpack.c.b16 %v3883, %v3882
      %v3899 = vpack.c.b16 %v3885, %v3884
      %v3900 = vpack.c.b16 %v3887, %v3886
      %v3901 = vpack.c.b16 %v3889, %v3888
      %v3902 = vpack.c.b16 %v3891, %v3890
      %v3903 = vpack.c.b16 %v3893, %v3892
      %v3904 = vpack.c.b16 %v3895, %v3894
      %v3905 = vpack.c.b16 %v3897, %v3896
      %3914 = vmatprep.subr.bf16.mxu0 0
      %3915 = vmatpush1.bf16.msra.mxu0 %v3898
      %3916 = vmatprep.subr.bf16.mxu0 0
      %3917 = vmatpush1.bf16.msra.mxu0 %v3899
      %3918 = vmatprep.subr.bf16.mxu0 0
      %3919 = vmatpush1.bf16.msra.mxu0 %v3900
      %3920 = vmatprep.subr.bf16.mxu0 0
      %3921 = vmatpush1.bf16.msra.mxu0 %v3901
      %3922 = vmatprep.subr.bf16.mxu0 0
      %3923 = vmatpush1.bf16.msra.mxu0 %v3902
      %3924 = vmatprep.subr.bf16.mxu0 0
      %3925 = vmatpush1.bf16.msra.mxu0 %v3903
      %3926 = vmatprep.subr.bf16.mxu0 0
      %3927 = vmatpush1.bf16.msra.mxu0 %v3904
      %3928 = vmatprep.subr.bf16.mxu0 0
      %3929 = vmatpush1.bf16.msra.mxu0 %v3905
      %3930 = vmatprep.subr.bf16.mxu0 0
      %3931 = vmatpush1.bf16.msra.mxu0 0
      %3932 = vmatprep.subr.bf16.mxu0 0
      %3933 = vmatpush1.bf16.msra.mxu0 0
      %3934 = vmatprep.subr.bf16.mxu0 0
      %3935 = vmatpush1.bf16.msra.mxu0 0
      %3936 = vmatprep.subr.bf16.mxu0 0
      %3937 = vmatpush1.bf16.msra.mxu0 0
      %3938 = vmatprep.subr.bf16.mxu0 0
      %3939 = vmatpush1.bf16.msra.mxu0 0
      %3940 = vmatprep.subr.bf16.mxu0 0
      %3941 = vmatpush1.bf16.msra.mxu0 0
      %3942 = vmatprep.subr.bf16.mxu0 0
      %3943 = vmatpush1.bf16.msra.mxu0 0
      %3944 = vmatprep.subr.bf16.mxu0 0
      %3945 = vmatpush1.bf16.msra.mxu0 0
      %3946 = vmatprep.mubr.bf16.mxu0 0
      %3947 = vmatmul.mubr.bf16.gmra.mrb[0].mxu0 %v3849
      %v3948 = vpop.f32.mrb[0].mxu0
      %v3949 = vadd.f32 0.0, %v3948
      %v3950 = vpop.f32.mrb[0].mxu0
      %v3951 = vpop.f32.mrb[0].mxu0
      %v3952 = vadd.f32 0.0, %v3951
      %v3953 = vpop.f32.mrb[0].mxu0
      %3954 = vmatprep.mubr.bf16.mxu0 0
      %3955 = vmatmul.mubr.bf16.gmra.mrb[0].mxu0 %v3851
      %v3956 = vpop.f32.mrb[0].mxu0
      %v3957 = vadd.f32 0.0, %v3956
      %v3958 = vpop.f32.mrb[0].mxu0
      %v3959 = vpop.f32.mrb[0].mxu0
      %v3960 = vadd.f32 0.0, %v3959
      %v3961 = vpop.f32.mrb[0].mxu0
      %3962 = vmatprep.mubr.bf16.mxu0 0
      %3963 = vmatmul.mubr.bf16.gmra.mrb[0].mxu0 %v3853
      %v3964 = vpop.f32.mrb[0].mxu0
      %v3965 = vadd.f32 0.0, %v3964
      %v3966 = vpop.f32.mrb[0].mxu0
      %v3967 = vpop.f32.mrb[0].mxu0
      %v3968 = vadd.f32 0.0, %v3967
      %v3969 = vpop.f32.mrb[0].mxu0
      %3970 = vmatprep.mubr.bf16.mxu0 0
      %3971 = vmatmul.mubr.bf16.gmra.mrb[0].mxu0 %v3855
      %v3972 = vpop.f32.mrb[0].mxu0
      %v3973 = vadd.f32 0.0, %v3972
      %v3974 = vpop.f32.mrb[0].mxu0
      %v3975 = vpop.f32.mrb[0].mxu0
      %v3976 = vadd.f32 0.0, %v3975
      %v3977 = vpop.f32.mrb[0].mxu0
      %3978 = vmatprep.mubr.bf16.mxu0 0
      %3979 = vmatmul.mubr.bf16.gmra.mrb[0].mxu0 %v3857
      %v3980 = vpop.f32.mrb[0].mxu0
      %v3981 = vadd.f32 0.0, %v3980
      %v3982 = vpop.f32.mrb[0].mxu0
      %v3983 = vpop.f32.mrb[0].mxu0
      %v3984 = vadd.f32 0.0, %v3983
      %v3985 = vpop.f32.mrb[0].mxu0
      %3986 = vmatprep.mubr.bf16.mxu0 0
      %3987 = vmatmul.mubr.bf16.gmra.mrb[0].mxu0 %v3859
      %v3988 = vpop.f32.mrb[0].mxu0
      %v3989 = vadd.f32 0.0, %v3988
      %v3990 = vpop.f32.mrb[0].mxu0
      %v3991 = vpop.f32.mrb[0].mxu0
      %v3992 = vadd.f32 0.0, %v3991
      %v3993 = vpop.f32.mrb[0].mxu0
      %3994 = vdwg.mxu0
      %v3995 = vadd.f32 %v3815, %v3949
      %v3996 = vadd.f32 %v3816, %v3952
      %v3997 = vadd.f32 %v3817, %v3957
      %v3998 = vadd.f32 %v3818, %v3960
      %v3999 = vadd.f32 %v3819, %v3965
      %v4000 = vadd.f32 %v3820, %v3968
      %v4001 = vadd.f32 %v3821, %v3973
      %v4002 = vadd.f32 %v3822, %v3976
      %v4003 = vadd.f32 %v3823, %v3981
      %v4004 = vadd.f32 %v3824, %v3984
      %v4005 = vadd.f32 %v3825, %v3989
      %v4006 = vadd.f32 %v3826, %v3992
      %v4007 = vadd.f32 %v3995, %v2115
      %v4008 = vadd.f32 %v3996, %v2115
      %v4009 = vadd.f32 %v3997, %v2115
      %v4010 = vadd.f32 %v3998, %v2115
      %v4011 = vadd.f32 %v3999, %v2115
      %v4012 = vadd.f32 %v4000, %v2115
      %v4013 = vadd.f32 %v4001, %v2115
      %v4014 = vadd.f32 %v4002, %v2115
      %v4015 = vadd.f32 %v4003, %v2115
      %v4016 = vadd.f32 %v4004, %v2115
      %v4017 = vadd.f32 %v4005, %v2115
      %v4018 = vadd.f32 %v4006, %v2115
      %v4019 = vmul.f32 %v4007, 0.1
      %v4020 = vmul.f32 %v4008, 0.1
      %v4021 = vmul.f32 %v4009, 0.1
      %v4022 = vmul.f32 %v4010, 0.1
      %v4023 = vmul.f32 %v4011, 0.1
      %v4024 = vmul.f32 %v4012, 0.1
      %v4025 = vmul.f32 %v4013, 0.1
      %v4026 = vmul.f32 %v4014, 0.1
      %v4027 = vmul.f32 %v4015, 0.1
      %v4028 = vmul.f32 %v4016, 0.1
      %v4029 = vmul.f32 %v4017, 0.1
      %v4030 = vmul.f32 %v4018, 0.1
      %v4031 = vmax.f32 %v4007, %v4019
      %v4032 = vmax.f32 %v4008, %v4020
      %v4033 = vmax.f32 %v4009, %v4021
      %v4034 = vmax.f32 %v4010, %v4022
      %v4035 = vmax.f32 %v4011, %v4023
      %v4036 = vmax.f32 %v4012, %v4024
      %v4037 = vmax.f32 %v4013, %v4025
      %v4038 = vmax.f32 %v4014, %v4026
      %v4039 = vmax.f32 %v4015, %v4027
      %v4040 = vmax.f32 %v4016, %v4028
      %v4041 = vmax.f32 %v4017, %v4029
      %v4042 = vmax.f32 %v4018, %v4030
      %4043 = vst [vmem:[%s252 + $0x60] sm:$0xff] %v4031
      %4044 = vst [vmem:[%s252 + $0x68] sm:$0xff] %v4032
      %4045 = vst [vmem:[%s252 + $0x70] sm:$0xff] %v4033
      %4046 = vst [vmem:[%s252 + $0x78] sm:$0xff] %v4034
      %4047 = vst [vmem:[%s252 + $0x80] sm:$0xff] %v4035
      %4048 = vst [vmem:[%s252 + $0x88] sm:$0xff] %v4036
      %4049 = vst [vmem:[%s252 + $0x90] sm:$0xff] %v4037
      %4050 = vst [vmem:[%s252 + $0x98] sm:$0xff] %v4038
      %4051 = vst [vmem:[%s252 + $0xa0] sm:$0xff] %v4039
      %4052 = vst [vmem:[%s252 + $0xa8] sm:$0xff] %v4040
      %4053 = vst [vmem:[%s252 + $0xb0] sm:$0xff] %v4041
      %4054 = vst [vmem:[%s252 + $0xb8] sm:$0xff] %v4042
      %v4055 = vld [vmem:[%s233 + $0x60] sm:$0xf]
      %v4056 = vld [vmem:[%s233 + $0x64] sm:$0xf]
      %v4057 = vld [vmem:[%s233 + $0x68] sm:$0xf]
      %v4058 = vld [vmem:[%s233 + $0x6c] sm:$0xf]
      %v4059 = vld [vmem:[%s233 + $0x70] sm:$0xf]
      %v4060 = vld [vmem:[%s233 + $0x74] sm:$0xf]
      %v4061 = vld [vmem:[%s233 + $0x78] sm:$0xf]
      %v4062 = vld [vmem:[%s233 + $0x7c] sm:$0xf]
      %v4063 = vld [vmem:[%s233 + $0x80] sm:$0xf]
      %v4064 = vld [vmem:[%s233 + $0x84] sm:$0xf]
      %v4065 = vld [vmem:[%s233 + $0x88] sm:$0xf]
      %v4066 = vld [vmem:[%s233 + $0x8c] sm:$0xf]
      %v4067 = vld [vmem:[%s237] sm:$0xf]
      %v4068 = vld [vmem:[%s237 + $0x4] sm:$0xf]
      %v4069 = vld [vmem:[%s237 + $0x8] sm:$0xf]
      %v4070 = vld [vmem:[%s237 + $0xc] sm:$0xf]
      %v4071 = vld [vmem:[%s237 + $0x10] sm:$0xf]
      %v4072 = vld [vmem:[%s237 + $0x14] sm:$0xf]
      %v4073 = vld [vmem:[%s237 + $0x18] sm:$0xf]
      %v4074 = vld [vmem:[%s237 + $0x1c] sm:$0xf]
      %v4075 = vld [vmem:[%s237 + $0x20] sm:$0xf]
      %v4076 = vld [vmem:[%s237 + $0x24] sm:$0xf]
      %v4077 = vld [vmem:[%s237 + $0x28] sm:$0xf]
      %v4078 = vld [vmem:[%s237 + $0x2c] sm:$0xf]
      %v4079 = vld [vmem:[%s237 + $0x30] sm:$0xf]
      %v4080 = vld [vmem:[%s237 + $0x34] sm:$0xf]
      %v4081 = vld [vmem:[%s237 + $0x38] sm:$0xf]
      %v4082 = vld [vmem:[%s237 + $0x3c] sm:$0xf]
      %v4083 = vld [vmem:[%s233 + $0x90] sm:$0x1]
      %v4084 = vld [vmem:[%s284] sm:$0xf]
      %v4085 = vld [vmem:[%s284 + $0x4] sm:$0xf]
      %v4086 = vld [vmem:[%s284 + $0x8] sm:$0xf]
      %v4087 = vld [vmem:[%s284 + $0xc] sm:$0xf]
      %v4088 = vld [vmem:[%s284 + $0x10] sm:$0xf]
      %v4089 = vld [vmem:[%s284 + $0x14] sm:$0xf]
      %v4090 = vld [vmem:[%s284 + $0x18] sm:$0xf]
      %v4091 = vld [vmem:[%s284 + $0x1c] sm:$0xf]
      %v4092 = vld [vmem:[%s284 + $0x20] sm:$0xf]
      %v4093 = vld [vmem:[%s284 + $0x24] sm:$0xf]
      %v4094 = vld [vmem:[%s284 + $0x28] sm:$0xf]
      %v4095 = vld [vmem:[%s284 + $0x2c] sm:$0xf]
      %v4096 = vld [vmem:[%s284 + $0x30] sm:$0xf]
      %v4097 = vld [vmem:[%s284 + $0x34] sm:$0xf]
      %v4098 = vld [vmem:[%s284 + $0x38] sm:$0xf]
      %v4099 = vld [vmem:[%s284 + $0x3c] sm:$0xf]
      %v4113 = vunpack.c.l.b16 %v4055
      %v4114 = vunpack.c.l.b16 %v4056
      %v4115 = vunpack.c.l.b16 %v4057
      %v4116 = vunpack.c.l.b16 %v4058
      %v4117 = vunpack.c.l.b16 %v4059
      %v4118 = vunpack.c.l.b16 %v4060
      %v4119 = vunpack.c.l.b16 %v4061
      %v4120 = vunpack.c.l.b16 %v4062
      %v4121 = vunpack.c.l.b16 %v4063
      %v4122 = vunpack.c.l.b16 %v4064
      %v4123 = vunpack.c.l.b16 %v4065
      %v4124 = vunpack.c.l.b16 %v4066
      %v4125 = vunpack.c.l.b16 %v4083
      %v4126 = vpack.c.b16 %v4114, %v4113
      %v4127 = vpack.c.b16 %v4116, %v4115
      %v4128 = vpack.c.b16 %v4118, %v4117
      %v4129 = vpack.c.b16 %v4120, %v4119
      %v4130 = vpack.c.b16 %v4122, %v4121
      %v4131 = vpack.c.b16 %v4124, %v4123
      %v4132 = vpack.c.b16 %v4125, %v4125
      %v4134 = vshrl.u32 %v4126, 16
      %v4136 = vshll.u32 %v4126, 16
      %v4138 = vrot.slane %v4136, 1
      %v4139 = vor.u32 %v4134, %v4138
      %v4141 = vshll.u32 %v4127, 16
      %v4143 = vrot.slane %v4141, 1
      %v4144 = vsel %vm334, %v4139, %v4143
      %v4145 = vshrl.u32 %v4127, 16
      %v4147 = vor.u32 %v4145, %v4143
      %v4149 = vshll.u32 %v4128, 16
      %v4151 = vrot.slane %v4149, 1
      %v4152 = vsel %vm334, %v4147, %v4151
      %v4153 = vshrl.u32 %v4128, 16
      %v4155 = vor.u32 %v4153, %v4151
      %v4157 = vshll.u32 %v4129, 16
      %v4159 = vrot.slane %v4157, 1
      %v4160 = vsel %vm334, %v4155, %v4159
      %v4161 = vshrl.u32 %v4129, 16
      %v4163 = vor.u32 %v4161, %v4159
      %v4165 = vshll.u32 %v4130, 16
      %v4167 = vrot.slane %v4165, 1
      %v4168 = vsel %vm334, %v4163, %v4167
      %v4169 = vshrl.u32 %v4130, 16
      %v4171 = vor.u32 %v4169, %v4167
      %v4173 = vshll.u32 %v4131, 16
      %v4175 = vrot.slane %v4173, 1
      %v4176 = vsel %vm334, %v4171, %v4175
      %v4177 = vshrl.u32 %v4131, 16
      %v4179 = vor.u32 %v4177, %v4175
      %v4181 = vshll.u32 %v4132, 16
      %v4183 = vrot.slane %v4181, 1
      %v4184 = vsel %vm334, %v4179, %v4183
      %v4207 = vunpack.c.l.b16 %v4084
      %v4208 = vunpack.c.l.b16 %v4085
      %v4209 = vunpack.c.l.b16 %v4086
      %v4210 = vunpack.c.l.b16 %v4087
      %v4211 = vunpack.c.l.b16 %v4088
      %v4212 = vunpack.c.l.b16 %v4089
      %v4213 = vunpack.c.l.b16 %v4090
      %v4214 = vunpack.c.l.b16 %v4091
      %v4215 = vunpack.c.l.b16 %v4092
      %v4216 = vunpack.c.l.b16 %v4093
      %v4217 = vunpack.c.l.b16 %v4094
      %v4218 = vunpack.c.l.b16 %v4095
      %v4219 = vunpack.c.l.b16 %v4096
      %v4220 = vunpack.c.l.b16 %v4097
      %v4221 = vunpack.c.l.b16 %v4098
      %v4222 = vunpack.c.l.b16 %v4099
      %v4223 = vpack.c.b16 %v4208, %v4207
      %v4224 = vpack.c.b16 %v4210, %v4209
      %v4225 = vpack.c.b16 %v4212, %v4211
      %v4226 = vpack.c.b16 %v4214, %v4213
      %v4227 = vpack.c.b16 %v4216, %v4215
      %v4228 = vpack.c.b16 %v4218, %v4217
      %v4229 = vpack.c.b16 %v4220, %v4219
      %v4230 = vpack.c.b16 %v4222, %v4221
      %4239 = vmatprep.subr.bf16.mxu0 0
      %4240 = vmatpush1.bf16.msra.mxu0 %v4223
      %4241 = vmatprep.subr.bf16.mxu0 0
      %4242 = vmatpush1.bf16.msra.mxu0 %v4224
      %4243 = vmatprep.subr.bf16.mxu0 0
      %4244 = vmatpush1.bf16.msra.mxu0 %v4225
      %4245 = vmatprep.subr.bf16.mxu0 0
      %4246 = vmatpush1.bf16.msra.mxu0 %v4226
      %4247 = vmatprep.subr.bf16.mxu0 0
      %4248 = vmatpush1.bf16.msra.mxu0 %v4227
      %4249 = vmatprep.subr.bf16.mxu0 0
      %4250 = vmatpush1.bf16.msra.mxu0 %v4228
      %4251 = vmatprep.subr.bf16.mxu0 0
      %4252 = vmatpush1.bf16.msra.mxu0 %v4229
      %4253 = vmatprep.subr.bf16.mxu0 0
      %4254 = vmatpush1.bf16.msra.mxu0 %v4230
      %4255 = vmatprep.subr.bf16.mxu0 0
      %4256 = vmatpush1.bf16.msra.mxu0 0
      %4257 = vmatprep.subr.bf16.mxu0 0
      %4258 = vmatpush1.bf16.msra.mxu0 0
      %4259 = vmatprep.subr.bf16.mxu0 0
      %4260 = vmatpush1.bf16.msra.mxu0 0
      %4261 = vmatprep.subr.bf16.mxu0 0
      %4262 = vmatpush1.bf16.msra.mxu0 0
      %4263 = vmatprep.subr.bf16.mxu0 0
      %4264 = vmatpush1.bf16.msra.mxu0 0
      %4265 = vmatprep.subr.bf16.mxu0 0
      %4266 = vmatpush1.bf16.msra.mxu0 0
      %4267 = vmatprep.subr.bf16.mxu0 0
      %4268 = vmatpush1.bf16.msra.mxu0 0
      %4269 = vmatprep.subr.bf16.mxu0 0
      %4270 = vmatpush1.bf16.msra.mxu0 0
      %4271 = vmatprep.mubr.bf16.mxu0 0
      %4272 = vmatmul.mubr.bf16.gmra.mrb[0].mxu0 %v4144
      %v4273 = vpop.f32.mrb[0].mxu0
      %v4274 = vadd.f32 0.0, %v4273
      %v4275 = vpop.f32.mrb[0].mxu0
      %v4276 = vpop.f32.mrb[0].mxu0
      %v4277 = vadd.f32 0.0, %v4276
      %v4278 = vpop.f32.mrb[0].mxu0
      %4279 = vmatprep.mubr.bf16.mxu0 0
      %4280 = vmatmul.mubr.bf16.gmra.mrb[0].mxu0 %v4152
      %v4281 = vpop.f32.mrb[0].mxu0
      %v4282 = vadd.f32 0.0, %v4281
      %v4283 = vpop.f32.mrb[0].mxu0
      %v4284 = vpop.f32.mrb[0].mxu0
      %v4285 = vadd.f32 0.0, %v4284
      %v4286 = vpop.f32.mrb[0].mxu0
      %4287 = vmatprep.mubr.bf16.mxu0 0
      %4288 = vmatmul.mubr.bf16.gmra.mrb[0].mxu0 %v4160
      %v4289 = vpop.f32.mrb[0].mxu0
      %v4290 = vadd.f32 0.0, %v4289
      %v4291 = vpop.f32.mrb[0].mxu0
      %v4292 = vpop.f32.mrb[0].mxu0
      %v4293 = vadd.f32 0.0, %v4292
      %v4294 = vpop.f32.mrb[0].mxu0
      %4295 = vmatprep.mubr.bf16.mxu0 0
      %4296 = vmatmul.mubr.bf16.gmra.mrb[0].mxu0 %v4168
      %v4297 = vpop.f32.mrb[0].mxu0
      %v4298 = vadd.f32 0.0, %v4297
      %v4299 = vpop.f32.mrb[0].mxu0
      %v4300 = vpop.f32.mrb[0].mxu0
      %v4301 = vadd.f32 0.0, %v4300
      %v4302 = vpop.f32.mrb[0].mxu0
      %4303 = vmatprep.mubr.bf16.mxu0 0
      %4304 = vmatmul.mubr.bf16.gmra.mrb[0].mxu0 %v4176
      %v4305 = vpop.f32.mrb[0].mxu0
      %v4306 = vadd.f32 0.0, %v4305
      %v4307 = vpop.f32.mrb[0].mxu0
      %v4308 = vpop.f32.mrb[0].mxu0
      %v4309 = vadd.f32 0.0, %v4308
      %v4310 = vpop.f32.mrb[0].mxu0
      %4311 = vmatprep.mubr.bf16.mxu0 0
      %4312 = vmatmul.mubr.bf16.gmra.mrb[0].mxu0 %v4184
      %v4313 = vpop.f32.mrb[0].mxu0
      %v4314 = vadd.f32 0.0, %v4313
      %v4315 = vpop.f32.mrb[0].mxu0
      %v4316 = vpop.f32.mrb[0].mxu0
      %v4317 = vadd.f32 0.0, %v4316
      %v4318 = vpop.f32.mrb[0].mxu0
      %4319 = vdwg.mxu0
      %v4342 = vunpack.c.l.b16 %v4067
      %v4343 = vunpack.c.l.b16 %v4068
      %v4344 = vunpack.c.l.b16 %v4069
      %v4345 = vunpack.c.l.b16 %v4070
      %v4346 = vunpack.c.l.b16 %v4071
      %v4347 = vunpack.c.l.b16 %v4072
      %v4348 = vunpack.c.l.b16 %v4073
      %v4349 = vunpack.c.l.b16 %v4074
      %v4350 = vunpack.c.l.b16 %v4075
      %v4351 = vunpack.c.l.b16 %v4076
      %v4352 = vunpack.c.l.b16 %v4077
      %v4353 = vunpack.c.l.b16 %v4078
      %v4354 = vunpack.c.l.b16 %v4079
      %v4355 = vunpack.c.l.b16 %v4080
      %v4356 = vunpack.c.l.b16 %v4081
      %v4357 = vunpack.c.l.b16 %v4082
      %v4358 = vpack.c.b16 %v4343, %v4342
      %v4359 = vpack.c.b16 %v4345, %v4344
      %v4360 = vpack.c.b16 %v4347, %v4346
      %v4361 = vpack.c.b16 %v4349, %v4348
      %v4362 = vpack.c.b16 %v4351, %v4350
      %v4363 = vpack.c.b16 %v4353, %v4352
      %v4364 = vpack.c.b16 %v4355, %v4354
      %v4365 = vpack.c.b16 %v4357, %v4356
      %4374 = vmatprep.subr.bf16.mxu0 0
      %4375 = vmatpush1.bf16.msra.mxu0 %v4358
      %4376 = vmatprep.subr.bf16.mxu0 0
      %4377 = vmatpush1.bf16.msra.mxu0 %v4359
      %4378 = vmatprep.subr.bf16.mxu0 0
      %4379 = vmatpush1.bf16.msra.mxu0 %v4360
      %4380 = vmatprep.subr.bf16.mxu0 0
      %4381 = vmatpush1.bf16.msra.mxu0 %v4361
      %4382 = vmatprep.subr.bf16.mxu0 0
      %4383 = vmatpush1.bf16.msra.mxu0 %v4362
      %4384 = vmatprep.subr.bf16.mxu0 0
      %4385 = vmatpush1.bf16.msra.mxu0 %v4363
      %4386 = vmatprep.subr.bf16.mxu0 0
      %4387 = vmatpush1.bf16.msra.mxu0 %v4364
      %4388 = vmatprep.subr.bf16.mxu0 0
      %4389 = vmatpush1.bf16.msra.mxu0 %v4365
      %4390 = vmatprep.subr.bf16.mxu0 0
      %4391 = vmatpush1.bf16.msra.mxu0 0
      %4392 = vmatprep.subr.bf16.mxu0 0
      %4393 = vmatpush1.bf16.msra.mxu0 0
      %4394 = vmatprep.subr.bf16.mxu0 0
      %4395 = vmatpush1.bf16.msra.mxu0 0
      %4396 = vmatprep.subr.bf16.mxu0 0
      %4397 = vmatpush1.bf16.msra.mxu0 0
      %4398 = vmatprep.subr.bf16.mxu0 0
      %4399 = vmatpush1.bf16.msra.mxu0 0
      %4400 = vmatprep.subr.bf16.mxu0 0
      %4401 = vmatpush1.bf16.msra.mxu0 0
      %4402 = vmatprep.subr.bf16.mxu0 0
      %4403 = vmatpush1.bf16.msra.mxu0 0
      %4404 = vmatprep.subr.bf16.mxu0 0
      %4405 = vmatpush1.bf16.msra.mxu0 0
      %4406 = vmatprep.mubr.bf16.mxu0 0
      %4407 = vmatmul.mubr.bf16.gmra.mrb[0].mxu0 %v4126
      %v4408 = vpop.f32.mrb[0].mxu0
      %v4409 = vadd.f32 %v4274, %v4408
      %v4410 = vpop.f32.mrb[0].mxu0
      %v4411 = vpop.f32.mrb[0].mxu0
      %v4412 = vadd.f32 %v4277, %v4411
      %v4413 = vpop.f32.mrb[0].mxu0
      %4414 = vmatprep.mubr.bf16.mxu0 0
      %4415 = vmatmul.mubr.bf16.gmra.mrb[0].mxu0 %v4127
      %v4416 = vpop.f32.mrb[0].mxu0
      %v4417 = vadd.f32 %v4282, %v4416
      %v4418 = vpop.f32.mrb[0].mxu0
      %v4419 = vpop.f32.mrb[0].mxu0
      %v4420 = vadd.f32 %v4285, %v4419
      %v4421 = vpop.f32.mrb[0].mxu0
      %4422 = vmatprep.mubr.bf16.mxu0 0
      %4423 = vmatmul.mubr.bf16.gmra.mrb[0].mxu0 %v4128
      %v4424 = vpop.f32.mrb[0].mxu0
      %v4425 = vadd.f32 %v4290, %v4424
      %v4426 = vpop.f32.mrb[0].mxu0
      %v4427 = vpop.f32.mrb[0].mxu0
      %v4428 = vadd.f32 %v4293, %v4427
      %v4429 = vpop.f32.mrb[0].mxu0
      %4430 = vmatprep.mubr.bf16.mxu0 0
      %4431 = vmatmul.mubr.bf16.gmra.mrb[0].mxu0 %v4129
      %v4432 = vpop.f32.mrb[0].mxu0
      %v4433 = vadd.f32 %v4298, %v4432
      %v4434 = vpop.f32.mrb[0].mxu0
      %v4435 = vpop.f32.mrb[0].mxu0
      %v4436 = vadd.f32 %v4301, %v4435
      %v4437 = vpop.f32.mrb[0].mxu0
      %4438 = vmatprep.mubr.bf16.mxu0 0
      %4439 = vmatmul.mubr.bf16.gmra.mrb[0].mxu0 %v4130
      %v4440 = vpop.f32.mrb[0].mxu0
      %v4441 = vadd.f32 %v4306, %v4440
      %v4442 = vpop.f32.mrb[0].mxu0
      %v4443 = vpop.f32.mrb[0].mxu0
      %v4444 = vadd.f32 %v4309, %v4443
      %v4445 = vpop.f32.mrb[0].mxu0
      %4446 = vmatprep.mubr.bf16.mxu0 0
      %4447 = vmatmul.mubr.bf16.gmra.mrb[0].mxu0 %v4131
      %v4448 = vpop.f32.mrb[0].mxu0
      %v4449 = vadd.f32 %v4314, %v4448
      %v4450 = vpop.f32.mrb[0].mxu0
      %v4451 = vpop.f32.mrb[0].mxu0
      %v4452 = vadd.f32 %v4317, %v4451
      %v4453 = vpop.f32.mrb[0].mxu0
      %4454 = vdwg.mxu0
      %v4455 = vld [vmem:[%s233 + $0x60] sm:$0xe]
      %v4456 = vld [vmem:[%s658] sm:$0xf]
      %v4457 = vld [vmem:[%s658 + $0x4] sm:$0xf]
      %v4458 = vld [vmem:[%s658 + $0x8] sm:$0xf]
      %v4459 = vld [vmem:[%s658 + $0xc] sm:$0xf]
      %v4460 = vld [vmem:[%s658 + $0x10] sm:$0xf]
      %v4461 = vld [vmem:[%s658 + $0x14] sm:$0xf]
      %v4462 = vld [vmem:[%s658 + $0x18] sm:$0xf]
      %v4463 = vld [vmem:[%s658 + $0x1c] sm:$0xf]
      %v4464 = vld [vmem:[%s658 + $0x20] sm:$0xf]
      %v4465 = vld [vmem:[%s658 + $0x24] sm:$0xf]
      %v4466 = vld [vmem:[%s658 + $0x28] sm:$0xf]
      %v4467 = vld [vmem:[%s658 + $0x2c] sm:$0xf]
      %v4468 = vld [vmem:[%s658 + $0x30] sm:$0xf]
      %v4469 = vld [vmem:[%s658 + $0x34] sm:$0xf]
      %v4470 = vld [vmem:[%s658 + $0x38] sm:$0xf]
      %v4471 = vld [vmem:[%s658 + $0x3c] sm:$0xf]
      %v4473 = vunpack.c.l.b16 %v4455
      %v4474 = vpack.c.b16 %v4114, %v4473
      %v4475 = vrot.slane %v4474, 1
      %v4476 = vrot.slane %v4127, 1
      %v4477 = vsel %vm678, %v4475, %v4476
      %v4478 = vrot.slane %v4128, 1
      %v4479 = vsel %vm678, %v4476, %v4478
      %v4480 = vrot.slane %v4129, 1
      %v4481 = vsel %vm678, %v4478, %v4480
      %v4482 = vrot.slane %v4130, 1
      %v4483 = vsel %vm678, %v4480, %v4482
      %v4484 = vrot.slane %v4131, 1
      %v4485 = vsel %vm678, %v4482, %v4484
      %v4486 = vrot.slane %v4132, 1
      %v4487 = vsel %vm678, %v4484, %v4486
      %v4510 = vunpack.c.l.b16 %v4456
      %v4511 = vunpack.c.l.b16 %v4457
      %v4512 = vunpack.c.l.b16 %v4458
      %v4513 = vunpack.c.l.b16 %v4459
      %v4514 = vunpack.c.l.b16 %v4460
      %v4515 = vunpack.c.l.b16 %v4461
      %v4516 = vunpack.c.l.b16 %v4462
      %v4517 = vunpack.c.l.b16 %v4463
      %v4518 = vunpack.c.l.b16 %v4464
      %v4519 = vunpack.c.l.b16 %v4465
      %v4520 = vunpack.c.l.b16 %v4466
      %v4521 = vunpack.c.l.b16 %v4467
      %v4522 = vunpack.c.l.b16 %v4468
      %v4523 = vunpack.c.l.b16 %v4469
      %v4524 = vunpack.c.l.b16 %v4470
      %v4525 = vunpack.c.l.b16 %v4471
      %v4526 = vpack.c.b16 %v4511, %v4510
      %v4527 = vpack.c.b16 %v4513, %v4512
      %v4528 = vpack.c.b16 %v4515, %v4514
      %v4529 = vpack.c.b16 %v4517, %v4516
      %v4530 = vpack.c.b16 %v4519, %v4518
      %v4531 = vpack.c.b16 %v4521, %v4520
      %v4532 = vpack.c.b16 %v4523, %v4522
      %v4533 = vpack.c.b16 %v4525, %v4524
      %4542 = vmatprep.subr.bf16.mxu0 0
      %4543 = vmatpush1.bf16.msra.mxu0 %v4526
      %4544 = vmatprep.subr.bf16.mxu0 0
      %4545 = vmatpush1.bf16.msra.mxu0 %v4527
      %4546 = vmatprep.subr.bf16.mxu0 0
      %4547 = vmatpush1.bf16.msra.mxu0 %v4528
      %4548 = vmatprep.subr.bf16.mxu0 0
      %4549 = vmatpush1.bf16.msra.mxu0 %v4529
      %4550 = vmatprep.subr.bf16.mxu0 0
      %4551 = vmatpush1.bf16.msra.mxu0 %v4530
      %4552 = vmatprep.subr.bf16.mxu0 0
      %4553 = vmatpush1.bf16.msra.mxu0 %v4531
      %4554 = vmatprep.subr.bf16.mxu0 0
      %4555 = vmatpush1.bf16.msra.mxu0 %v4532
      %4556 = vmatprep.subr.bf16.mxu0 0
      %4557 = vmatpush1.bf16.msra.mxu0 %v4533
      %4558 = vmatprep.subr.bf16.mxu0 0
      %4559 = vmatpush1.bf16.msra.mxu0 0
      %4560 = vmatprep.subr.bf16.mxu0 0
      %4561 = vmatpush1.bf16.msra.mxu0 0
      %4562 = vmatprep.subr.bf16.mxu0 0
      %4563 = vmatpush1.bf16.msra.mxu0 0
      %4564 = vmatprep.subr.bf16.mxu0 0
      %4565 = vmatpush1.bf16.msra.mxu0 0
      %4566 = vmatprep.subr.bf16.mxu0 0
      %4567 = vmatpush1.bf16.msra.mxu0 0
      %4568 = vmatprep.subr.bf16.mxu0 0
      %4569 = vmatpush1.bf16.msra.mxu0 0
      %4570 = vmatprep.subr.bf16.mxu0 0
      %4571 = vmatpush1.bf16.msra.mxu0 0
      %4572 = vmatprep.subr.bf16.mxu0 0
      %4573 = vmatpush1.bf16.msra.mxu0 0
      %4574 = vmatprep.mubr.bf16.mxu0 0
      %4575 = vmatmul.mubr.bf16.gmra.mrb[0].mxu0 %v4477
      %v4576 = vpop.f32.mrb[0].mxu0
      %v4577 = vadd.f32 0.0, %v4576
      %v4578 = vpop.f32.mrb[0].mxu0
      %v4579 = vpop.f32.mrb[0].mxu0
      %v4580 = vadd.f32 0.0, %v4579
      %v4581 = vpop.f32.mrb[0].mxu0
      %4582 = vmatprep.mubr.bf16.mxu0 0
      %4583 = vmatmul.mubr.bf16.gmra.mrb[0].mxu0 %v4479
      %v4584 = vpop.f32.mrb[0].mxu0
      %v4585 = vadd.f32 0.0, %v4584
      %v4586 = vpop.f32.mrb[0].mxu0
      %v4587 = vpop.f32.mrb[0].mxu0
      %v4588 = vadd.f32 0.0, %v4587
      %v4589 = vpop.f32.mrb[0].mxu0
      %4590 = vmatprep.mubr.bf16.mxu0 0
      %4591 = vmatmul.mubr.bf16.gmra.mrb[0].mxu0 %v4481
      %v4592 = vpop.f32.mrb[0].mxu0
      %v4593 = vadd.f32 0.0, %v4592
      %v4594 = vpop.f32.mrb[0].mxu0
      %v4595 = vpop.f32.mrb[0].mxu0
      %v4596 = vadd.f32 0.0, %v4595
      %v4597 = vpop.f32.mrb[0].mxu0
      %4598 = vmatprep.mubr.bf16.mxu0 0
      %4599 = vmatmul.mubr.bf16.gmra.mrb[0].mxu0 %v4483
      %v4600 = vpop.f32.mrb[0].mxu0
      %v4601 = vadd.f32 0.0, %v4600
      %v4602 = vpop.f32.mrb[0].mxu0
      %v4603 = vpop.f32.mrb[0].mxu0
      %v4604 = vadd.f32 0.0, %v4603
      %v4605 = vpop.f32.mrb[0].mxu0
      %4606 = vmatprep.mubr.bf16.mxu0 0
      %4607 = vmatmul.mubr.bf16.gmra.mrb[0].mxu0 %v4485
      %v4608 = vpop.f32.mrb[0].mxu0
      %v4609 = vadd.f32 0.0, %v4608
      %v4610 = vpop.f32.mrb[0].mxu0
      %v4611 = vpop.f32.mrb[0].mxu0
      %v4612 = vadd.f32 0.0, %v4611
      %v4613 = vpop.f32.mrb[0].mxu0
      %4614 = vmatprep.mubr.bf16.mxu0 0
      %4615 = vmatmul.mubr.bf16.gmra.mrb[0].mxu0 %v4487
      %v4616 = vpop.f32.mrb[0].mxu0
      %v4617 = vadd.f32 0.0, %v4616
      %v4618 = vpop.f32.mrb[0].mxu0
      %v4619 = vpop.f32.mrb[0].mxu0
      %v4620 = vadd.f32 0.0, %v4619
      %v4621 = vpop.f32.mrb[0].mxu0
      %4622 = vdwg.mxu0
      %v4623 = vadd.f32 %v4409, %v4577
      %v4624 = vadd.f32 %v4412, %v4580
      %v4625 = vadd.f32 %v4417, %v4585
      %v4626 = vadd.f32 %v4420, %v4588
      %v4627 = vadd.f32 %v4425, %v4593
      %v4628 = vadd.f32 %v4428, %v4596
      %v4629 = vadd.f32 %v4433, %v4601
      %v4630 = vadd.f32 %v4436, %v4604
      %v4631 = vadd.f32 %v4441, %v4609
      %v4632 = vadd.f32 %v4444, %v4612
      %v4633 = vadd.f32 %v4449, %v4617
      %v4634 = vadd.f32 %v4452, %v4620
      %v4635 = vld [vmem:[%s233 + $0x68] sm:$0xe]
      %v4636 = vld [vmem:[%s233 + $0x6c] sm:$0xf]
      %v4637 = vld [vmem:[%s233 + $0x70] sm:$0xf]
      %v4638 = vld [vmem:[%s233 + $0x74] sm:$0xf]
      %v4639 = vld [vmem:[%s233 + $0x78] sm:$0xf]
      %v4640 = vld [vmem:[%s233 + $0x7c] sm:$0xf]
      %v4641 = vld [vmem:[%s233 + $0x80] sm:$0xf]
      %v4642 = vld [vmem:[%s233 + $0x84] sm:$0xf]
      %v4643 = vld [vmem:[%s233 + $0x88] sm:$0xf]
      %v4644 = vld [vmem:[%s233 + $0x8c] sm:$0xf]
      %v4645 = vld [vmem:[%s233 + $0x90] sm:$0xf]
      %v4646 = vld [vmem:[%s233 + $0x94] sm:$0xf]
      %v4647 = vld [vmem:[%s233 + $0x98] sm:$0x1]
      %v4648 = vld [vmem:[%s852] sm:$0xf]
      %v4649 = vld [vmem:[%s852 + $0x4] sm:$0xf]
      %v4650 = vld [vmem:[%s852 + $0x8] sm:$0xf]
      %v4651 = vld [vmem:[%s852 + $0xc] sm:$0xf]
      %v4652 = vld [vmem:[%s852 + $0x10] sm:$0xf]
      %v4653 = vld [vmem:[%s852 + $0x14] sm:$0xf]
      %v4654 = vld [vmem:[%s852 + $0x18] sm:$0xf]
      %v4655 = vld [vmem:[%s852 + $0x1c] sm:$0xf]
      %v4656 = vld [vmem:[%s852 + $0x20] sm:$0xf]
      %v4657 = vld [vmem:[%s852 + $0x24] sm:$0xf]
      %v4658 = vld [vmem:[%s852 + $0x28] sm:$0xf]
      %v4659 = vld [vmem:[%s852 + $0x2c] sm:$0xf]
      %v4660 = vld [vmem:[%s852 + $0x30] sm:$0xf]
      %v4661 = vld [vmem:[%s852 + $0x34] sm:$0xf]
      %v4662 = vld [vmem:[%s852 + $0x38] sm:$0xf]
      %v4663 = vld [vmem:[%s852 + $0x3c] sm:$0xf]
      %v4677 = vunpack.c.l.b16 %v4635
      %v4678 = vunpack.c.l.b16 %v4636
      %v4679 = vunpack.c.l.b16 %v4637
      %v4680 = vunpack.c.l.b16 %v4638
      %v4681 = vunpack.c.l.b16 %v4639
      %v4682 = vunpack.c.l.b16 %v4640
      %v4683 = vunpack.c.l.b16 %v4641
      %v4684 = vunpack.c.l.b16 %v4642
      %v4685 = vunpack.c.l.b16 %v4643
      %v4686 = vunpack.c.l.b16 %v4644
      %v4687 = vunpack.c.l.b16 %v4645
      %v4688 = vunpack.c.l.b16 %v4646
      %v4689 = vunpack.c.l.b16 %v4647
      %v4690 = vpack.c.b16 %v4678, %v4677
      %v4691 = vpack.c.b16 %v4680, %v4679
      %v4692 = vpack.c.b16 %v4682, %v4681
      %v4693 = vpack.c.b16 %v4684, %v4683
      %v4694 = vpack.c.b16 %v4686, %v4685
      %v4695 = vpack.c.b16 %v4688, %v4687
      %v4696 = vpack.c.b16 %v4689, %v4689
      %v4697 = vrot.slane %v4690, 1
      %v4698 = vrot.slane %v4691, 1
      %v4699 = vsel %vm678, %v4697, %v4698
      %v4700 = vrot.slane %v4692, 1
      %v4701 = vsel %vm678, %v4698, %v4700
      %v4702 = vrot.slane %v4693, 1
      %v4703 = vsel %vm678, %v4700, %v4702
      %v4704 = vrot.slane %v4694, 1
      %v4705 = vsel %vm678, %v4702, %v4704
      %v4706 = vrot.slane %v4695, 1
      %v4707 = vsel %vm678, %v4704, %v4706
      %v4708 = vrot.slane %v4696, 1
      %v4709 = vsel %vm678, %v4706, %v4708
      %v4732 = vunpack.c.l.b16 %v4648
      %v4733 = vunpack.c.l.b16 %v4649
      %v4734 = vunpack.c.l.b16 %v4650
      %v4735 = vunpack.c.l.b16 %v4651
      %v4736 = vunpack.c.l.b16 %v4652
      %v4737 = vunpack.c.l.b16 %v4653
      %v4738 = vunpack.c.l.b16 %v4654
      %v4739 = vunpack.c.l.b16 %v4655
      %v4740 = vunpack.c.l.b16 %v4656
      %v4741 = vunpack.c.l.b16 %v4657
      %v4742 = vunpack.c.l.b16 %v4658
      %v4743 = vunpack.c.l.b16 %v4659
      %v4744 = vunpack.c.l.b16 %v4660
      %v4745 = vunpack.c.l.b16 %v4661
      %v4746 = vunpack.c.l.b16 %v4662
      %v4747 = vunpack.c.l.b16 %v4663
      %v4748 = vpack.c.b16 %v4733, %v4732
      %v4749 = vpack.c.b16 %v4735, %v4734
      %v4750 = vpack.c.b16 %v4737, %v4736
      %v4751 = vpack.c.b16 %v4739, %v4738
      %v4752 = vpack.c.b16 %v4741, %v4740
      %v4753 = vpack.c.b16 %v4743, %v4742
      %v4754 = vpack.c.b16 %v4745, %v4744
      %v4755 = vpack.c.b16 %v4747, %v4746
      %4764 = vmatprep.subr.bf16.mxu0 0
      %4765 = vmatpush1.bf16.msra.mxu0 %v4748
      %4766 = vmatprep.subr.bf16.mxu0 0
      %4767 = vmatpush1.bf16.msra.mxu0 %v4749
      %4768 = vmatprep.subr.bf16.mxu0 0
      %4769 = vmatpush1.bf16.msra.mxu0 %v4750
      %4770 = vmatprep.subr.bf16.mxu0 0
      %4771 = vmatpush1.bf16.msra.mxu0 %v4751
      %4772 = vmatprep.subr.bf16.mxu0 0
      %4773 = vmatpush1.bf16.msra.mxu0 %v4752
      %4774 = vmatprep.subr.bf16.mxu0 0
      %4775 = vmatpush1.bf16.msra.mxu0 %v4753
      %4776 = vmatprep.subr.bf16.mxu0 0
      %4777 = vmatpush1.bf16.msra.mxu0 %v4754
      %4778 = vmatprep.subr.bf16.mxu0 0
      %4779 = vmatpush1.bf16.msra.mxu0 %v4755
      %4780 = vmatprep.subr.bf16.mxu0 0
      %4781 = vmatpush1.bf16.msra.mxu0 0
      %4782 = vmatprep.subr.bf16.mxu0 0
      %4783 = vmatpush1.bf16.msra.mxu0 0
      %4784 = vmatprep.subr.bf16.mxu0 0
      %4785 = vmatpush1.bf16.msra.mxu0 0
      %4786 = vmatprep.subr.bf16.mxu0 0
      %4787 = vmatpush1.bf16.msra.mxu0 0
      %4788 = vmatprep.subr.bf16.mxu0 0
      %4789 = vmatpush1.bf16.msra.mxu0 0
      %4790 = vmatprep.subr.bf16.mxu0 0
      %4791 = vmatpush1.bf16.msra.mxu0 0
      %4792 = vmatprep.subr.bf16.mxu0 0
      %4793 = vmatpush1.bf16.msra.mxu0 0
      %4794 = vmatprep.subr.bf16.mxu0 0
      %4795 = vmatpush1.bf16.msra.mxu0 0
      %4796 = vmatprep.mubr.bf16.mxu0 0
      %4797 = vmatmul.mubr.bf16.gmra.mrb[0].mxu0 %v4699
      %v4798 = vpop.f32.mrb[0].mxu0
      %v4799 = vadd.f32 0.0, %v4798
      %v4800 = vpop.f32.mrb[0].mxu0
      %v4801 = vpop.f32.mrb[0].mxu0
      %v4802 = vadd.f32 0.0, %v4801
      %v4803 = vpop.f32.mrb[0].mxu0
      %4804 = vmatprep.mubr.bf16.mxu0 0
      %4805 = vmatmul.mubr.bf16.gmra.mrb[0].mxu0 %v4701
      %v4806 = vpop.f32.mrb[0].mxu0
      %v4807 = vadd.f32 0.0, %v4806
      %v4808 = vpop.f32.mrb[0].mxu0
      %v4809 = vpop.f32.mrb[0].mxu0
      %v4810 = vadd.f32 0.0, %v4809
      %v4811 = vpop.f32.mrb[0].mxu0
      %4812 = vmatprep.mubr.bf16.mxu0 0
      %4813 = vmatmul.mubr.bf16.gmra.mrb[0].mxu0 %v4703
      %v4814 = vpop.f32.mrb[0].mxu0
      %v4815 = vadd.f32 0.0, %v4814
      %v4816 = vpop.f32.mrb[0].mxu0
      %v4817 = vpop.f32.mrb[0].mxu0
      %v4818 = vadd.f32 0.0, %v4817
      %v4819 = vpop.f32.mrb[0].mxu0
      %4820 = vmatprep.mubr.bf16.mxu0 0
      %4821 = vmatmul.mubr.bf16.gmra.mrb[0].mxu0 %v4705
      %v4822 = vpop.f32.mrb[0].mxu0
      %v4823 = vadd.f32 0.0, %v4822
      %v4824 = vpop.f32.mrb[0].mxu0
      %v4825 = vpop.f32.mrb[0].mxu0
      %v4826 = vadd.f32 0.0, %v4825
      %v4827 = vpop.f32.mrb[0].mxu0
      %4828 = vmatprep.mubr.bf16.mxu0 0
      %4829 = vmatmul.mubr.bf16.gmra.mrb[0].mxu0 %v4707
      %v4830 = vpop.f32.mrb[0].mxu0
      %v4831 = vadd.f32 0.0, %v4830
      %v4832 = vpop.f32.mrb[0].mxu0
      %v4833 = vpop.f32.mrb[0].mxu0
      %v4834 = vadd.f32 0.0, %v4833
      %v4835 = vpop.f32.mrb[0].mxu0
      %4836 = vmatprep.mubr.bf16.mxu0 0
      %4837 = vmatmul.mubr.bf16.gmra.mrb[0].mxu0 %v4709
      %v4838 = vpop.f32.mrb[0].mxu0
      %v4839 = vadd.f32 0.0, %v4838
      %v4840 = vpop.f32.mrb[0].mxu0
      %v4841 = vpop.f32.mrb[0].mxu0
      %v4842 = vadd.f32 0.0, %v4841
      %v4843 = vpop.f32.mrb[0].mxu0
      %4844 = vdwg.mxu0
      %v4845 = vadd.f32 %v4623, %v4799
      %v4846 = vadd.f32 %v4624, %v4802
      %v4847 = vadd.f32 %v4625, %v4807
      %v4848 = vadd.f32 %v4626, %v4810
      %v4849 = vadd.f32 %v4627, %v4815
      %v4850 = vadd.f32 %v4628, %v4818
      %v4851 = vadd.f32 %v4629, %v4823
      %v4852 = vadd.f32 %v4630, %v4826
      %v4853 = vadd.f32 %v4631, %v4831
      %v4854 = vadd.f32 %v4632, %v4834
      %v4855 = vadd.f32 %v4633, %v4839
      %v4856 = vadd.f32 %v4634, %v4842
      %v4857 = vld [vmem:[%s233 + $0x98] sm:$0x3]
      %v4858 = vld [vmem:[%s1063] sm:$0xf]
      %v4859 = vld [vmem:[%s1063 + $0x4] sm:$0xf]
      %v4860 = vld [vmem:[%s1063 + $0x8] sm:$0xf]
      %v4861 = vld [vmem:[%s1063 + $0xc] sm:$0xf]
      %v4862 = vld [vmem:[%s1063 + $0x10] sm:$0xf]
      %v4863 = vld [vmem:[%s1063 + $0x14] sm:$0xf]
      %v4864 = vld [vmem:[%s1063 + $0x18] sm:$0xf]
      %v4865 = vld [vmem:[%s1063 + $0x1c] sm:$0xf]
      %v4866 = vld [vmem:[%s1063 + $0x20] sm:$0xf]
      %v4867 = vld [vmem:[%s1063 + $0x24] sm:$0xf]
      %v4868 = vld [vmem:[%s1063 + $0x28] sm:$0xf]
      %v4869 = vld [vmem:[%s1063 + $0x2c] sm:$0xf]
      %v4870 = vld [vmem:[%s1063 + $0x30] sm:$0xf]
      %v4871 = vld [vmem:[%s1063 + $0x34] sm:$0xf]
      %v4872 = vld [vmem:[%s1063 + $0x38] sm:$0xf]
      %v4873 = vld [vmem:[%s1063 + $0x3c] sm:$0xf]
      %v4875 = vunpack.c.l.b16 %v4857
      %v4876 = vpack.c.b16 %v4875, %v4875
      %v4878 = vshrl.u32 %v4690, 16
      %v4880 = vrot.slane %v4878, 1
      %v4881 = vshll.u32 %v4690, 16
      %v4883 = vrot.slane %v4881, 2
      %v4884 = vor.u32 %v4880, %v4883
      %v4886 = vshrl.u32 %v4691, 16
      %v4888 = vrot.slane %v4886, 1
      %v4889 = vshll.u32 %v4691, 16
      %v4891 = vrot.slane %v4889, 2
      %v4892 = vor.u32 %v4888, %v4891
      %v4893 = vsel %vm1083, %v4884, %v4892
      %v4895 = vshrl.u32 %v4692, 16
      %v4897 = vrot.slane %v4895, 1
      %v4898 = vshll.u32 %v4692, 16
      %v4900 = vrot.slane %v4898, 2
      %v4901 = vor.u32 %v4897, %v4900
      %v4902 = vsel %vm1083, %v4892, %v4901
      %v4904 = vshrl.u32 %v4693, 16
      %v4906 = vrot.slane %v4904, 1
      %v4907 = vshll.u32 %v4693, 16
      %v4909 = vrot.slane %v4907, 2
      %v4910 = vor.u32 %v4906, %v4909
      %v4911 = vsel %vm1083, %v4901, %v4910
      %v4913 = vshrl.u32 %v4694, 16
      %v4915 = vrot.slane %v4913, 1
      %v4916 = vshll.u32 %v4694, 16
      %v4918 = vrot.slane %v4916, 2
      %v4919 = vor.u32 %v4915, %v4918
      %v4920 = vsel %vm1083, %v4910, %v4919
      %v4922 = vshrl.u32 %v4695, 16
      %v4924 = vrot.slane %v4922, 1
      %v4925 = vshll.u32 %v4695, 16
      %v4927 = vrot.slane %v4925, 2
      %v4928 = vor.u32 %v4924, %v4927
      %v4929 = vsel %vm1083, %v4919, %v4928
      %v4931 = vshrl.u32 %v4876, 16
      %v4933 = vrot.slane %v4931, 1
      %v4934 = vshll.u32 %v4876, 16
      %v4936 = vrot.slane %v4934, 2
      %v4937 = vor.u32 %v4933, %v4936
      %v4938 = vsel %vm1083, %v4928, %v4937
      %v4961 = vunpack.c.l.b16 %v4858
      %v4962 = vunpack.c.l.b16 %v4859
      %v4963 = vunpack.c.l.b16 %v4860
      %v4964 = vunpack.c.l.b16 %v4861
      %v4965 = vunpack.c.l.b16 %v4862
      %v4966 = vunpack.c.l.b16 %v4863
      %v4967 = vunpack.c.l.b16 %v4864
      %v4968 = vunpack.c.l.b16 %v4865
      %v4969 = vunpack.c.l.b16 %v4866
      %v4970 = vunpack.c.l.b16 %v4867
      %v4971 = vunpack.c.l.b16 %v4868
      %v4972 = vunpack.c.l.b16 %v4869
      %v4973 = vunpack.c.l.b16 %v4870
      %v4974 = vunpack.c.l.b16 %v4871
      %v4975 = vunpack.c.l.b16 %v4872
      %v4976 = vunpack.c.l.b16 %v4873
      %v4977 = vpack.c.b16 %v4962, %v4961
      %v4978 = vpack.c.b16 %v4964, %v4963
      %v4979 = vpack.c.b16 %v4966, %v4965
      %v4980 = vpack.c.b16 %v4968, %v4967
      %v4981 = vpack.c.b16 %v4970, %v4969
      %v4982 = vpack.c.b16 %v4972, %v4971
      %v4983 = vpack.c.b16 %v4974, %v4973
      %v4984 = vpack.c.b16 %v4976, %v4975
      %4993 = vmatprep.subr.bf16.mxu0 0
      %4994 = vmatpush1.bf16.msra.mxu0 %v4977
      %4995 = vmatprep.subr.bf16.mxu0 0
      %4996 = vmatpush1.bf16.msra.mxu0 %v4978
      %4997 = vmatprep.subr.bf16.mxu0 0
      %4998 = vmatpush1.bf16.msra.mxu0 %v4979
      %4999 = vmatprep.subr.bf16.mxu0 0
      %5000 = vmatpush1.bf16.msra.mxu0 %v4980
      %5001 = vmatprep.subr.bf16.mxu0 0
      %5002 = vmatpush1.bf16.msra.mxu0 %v4981
      %5003 = vmatprep.subr.bf16.mxu0 0
      %5004 = vmatpush1.bf16.msra.mxu0 %v4982
      %5005 = vmatprep.subr.bf16.mxu0 0
      %5006 = vmatpush1.bf16.msra.mxu0 %v4983
      %5007 = vmatprep.subr.bf16.mxu0 0
      %5008 = vmatpush1.bf16.msra.mxu0 %v4984
      %5009 = vmatprep.subr.bf16.mxu0 0
      %5010 = vmatpush1.bf16.msra.mxu0 0
      %5011 = vmatprep.subr.bf16.mxu0 0
      %5012 = vmatpush1.bf16.msra.mxu0 0
      %5013 = vmatprep.subr.bf16.mxu0 0
      %5014 = vmatpush1.bf16.msra.mxu0 0
      %5015 = vmatprep.subr.bf16.mxu0 0
      %5016 = vmatpush1.bf16.msra.mxu0 0
      %5017 = vmatprep.subr.bf16.mxu0 0
      %5018 = vmatpush1.bf16.msra.mxu0 0
      %5019 = vmatprep.subr.bf16.mxu0 0
      %5020 = vmatpush1.bf16.msra.mxu0 0
      %5021 = vmatprep.subr.bf16.mxu0 0
      %5022 = vmatpush1.bf16.msra.mxu0 0
      %5023 = vmatprep.subr.bf16.mxu0 0
      %5024 = vmatpush1.bf16.msra.mxu0 0
      %5025 = vmatprep.mubr.bf16.mxu0 0
      %5026 = vmatmul.mubr.bf16.gmra.mrb[0].mxu0 %v4893
      %v5027 = vpop.f32.mrb[0].mxu0
      %v5028 = vadd.f32 0.0, %v5027
      %v5029 = vpop.f32.mrb[0].mxu0
      %v5030 = vpop.f32.mrb[0].mxu0
      %v5031 = vadd.f32 0.0, %v5030
      %v5032 = vpop.f32.mrb[0].mxu0
      %5033 = vmatprep.mubr.bf16.mxu0 0
      %5034 = vmatmul.mubr.bf16.gmra.mrb[0].mxu0 %v4902
      %v5035 = vpop.f32.mrb[0].mxu0
      %v5036 = vadd.f32 0.0, %v5035
      %v5037 = vpop.f32.mrb[0].mxu0
      %v5038 = vpop.f32.mrb[0].mxu0
      %v5039 = vadd.f32 0.0, %v5038
      %v5040 = vpop.f32.mrb[0].mxu0
      %5041 = vmatprep.mubr.bf16.mxu0 0
      %5042 = vmatmul.mubr.bf16.gmra.mrb[0].mxu0 %v4911
      %v5043 = vpop.f32.mrb[0].mxu0
      %v5044 = vadd.f32 0.0, %v5043
      %v5045 = vpop.f32.mrb[0].mxu0
      %v5046 = vpop.f32.mrb[0].mxu0
      %v5047 = vadd.f32 0.0, %v5046
      %v5048 = vpop.f32.mrb[0].mxu0
      %5049 = vmatprep.mubr.bf16.mxu0 0
      %5050 = vmatmul.mubr.bf16.gmra.mrb[0].mxu0 %v4920
      %v5051 = vpop.f32.mrb[0].mxu0
      %v5052 = vadd.f32 0.0, %v5051
      %v5053 = vpop.f32.mrb[0].mxu0
      %v5054 = vpop.f32.mrb[0].mxu0
      %v5055 = vadd.f32 0.0, %v5054
      %v5056 = vpop.f32.mrb[0].mxu0
      %5057 = vmatprep.mubr.bf16.mxu0 0
      %5058 = vmatmul.mubr.bf16.gmra.mrb[0].mxu0 %v4929
      %v5059 = vpop.f32.mrb[0].mxu0
      %v5060 = vadd.f32 0.0, %v5059
      %v5061 = vpop.f32.mrb[0].mxu0
      %v5062 = vpop.f32.mrb[0].mxu0
      %v5063 = vadd.f32 0.0, %v5062
      %v5064 = vpop.f32.mrb[0].mxu0
      %5065 = vmatprep.mubr.bf16.mxu0 0
      %5066 = vmatmul.mubr.bf16.gmra.mrb[0].mxu0 %v4938
      %v5067 = vpop.f32.mrb[0].mxu0
      %v5068 = vadd.f32 0.0, %v5067
      %v5069 = vpop.f32.mrb[0].mxu0
      %v5070 = vpop.f32.mrb[0].mxu0
      %v5071 = vadd.f32 0.0, %v5070
      %v5072 = vpop.f32.mrb[0].mxu0
      %5073 = vdwg.mxu0
      %v5074 = vadd.f32 %v4845, %v5028
      %v5075 = vadd.f32 %v4846, %v5031
      %v5076 = vadd.f32 %v4847, %v5036
      %v5077 = vadd.f32 %v4848, %v5039
      %v5078 = vadd.f32 %v4849, %v5044
      %v5079 = vadd.f32 %v4850, %v5047
      %v5080 = vadd.f32 %v4851, %v5052
      %v5081 = vadd.f32 %v4852, %v5055
      %v5082 = vadd.f32 %v4853, %v5060
      %v5083 = vadd.f32 %v4854, %v5063
      %v5084 = vadd.f32 %v4855, %v5068
      %v5085 = vadd.f32 %v4856, %v5071
      %v5086 = vld [vmem:[%s233 + $0x68] sm:$0xc]
      %v5087 = vld [vmem:[%s1294] sm:$0xf]
      %v5088 = vld [vmem:[%s1294 + $0x4] sm:$0xf]
      %v5089 = vld [vmem:[%s1294 + $0x8] sm:$0xf]
      %v5090 = vld [vmem:[%s1294 + $0xc] sm:$0xf]
      %v5091 = vld [vmem:[%s1294 + $0x10] sm:$0xf]
      %v5092 = vld [vmem:[%s1294 + $0x14] sm:$0xf]
      %v5093 = vld [vmem:[%s1294 + $0x18] sm:$0xf]
      %v5094 = vld [vmem:[%s1294 + $0x1c] sm:$0xf]
      %v5095 = vld [vmem:[%s1294 + $0x20] sm:$0xf]
      %v5096 = vld [vmem:[%s1294 + $0x24] sm:$0xf]
      %v5097 = vld [vmem:[%s1294 + $0x28] sm:$0xf]
      %v5098 = vld [vmem:[%s1294 + $0x2c] sm:$0xf]
      %v5099 = vld [vmem:[%s1294 + $0x30] sm:$0xf]
      %v5100 = vld [vmem:[%s1294 + $0x34] sm:$0xf]
      %v5101 = vld [vmem:[%s1294 + $0x38] sm:$0xf]
      %v5102 = vld [vmem:[%s1294 + $0x3c] sm:$0xf]
      %v5104 = vunpack.c.l.b16 %v5086
      %v5105 = vpack.c.b16 %v4678, %v5104
      %v5106 = vrot.slane %v5105, 2
      %v5107 = vrot.slane %v4691, 2
      %v5108 = vsel %vm1314, %v5106, %v5107
      %v5109 = vrot.slane %v4692, 2
      %v5110 = vsel %vm1314, %v5107, %v5109
      %v5111 = vrot.slane %v4693, 2
      %v5112 = vsel %vm1314, %v5109, %v5111
      %v5113 = vrot.slane %v4694, 2
      %v5114 = vsel %vm1314, %v5111, %v5113
      %v5115 = vrot.slane %v4695, 2
      %v5116 = vsel %vm1314, %v5113, %v5115
      %v5117 = vrot.slane %v4876, 2
      %v5118 = vsel %vm1314, %v5115, %v5117
      %v5141 = vunpack.c.l.b16 %v5087
      %v5142 = vunpack.c.l.b16 %v5088
      %v5143 = vunpack.c.l.b16 %v5089
      %v5144 = vunpack.c.l.b16 %v5090
      %v5145 = vunpack.c.l.b16 %v5091
      %v5146 = vunpack.c.l.b16 %v5092
      %v5147 = vunpack.c.l.b16 %v5093
      %v5148 = vunpack.c.l.b16 %v5094
      %v5149 = vunpack.c.l.b16 %v5095
      %v5150 = vunpack.c.l.b16 %v5096
      %v5151 = vunpack.c.l.b16 %v5097
      %v5152 = vunpack.c.l.b16 %v5098
      %v5153 = vunpack.c.l.b16 %v5099
      %v5154 = vunpack.c.l.b16 %v5100
      %v5155 = vunpack.c.l.b16 %v5101
      %v5156 = vunpack.c.l.b16 %v5102
      %v5157 = vpack.c.b16 %v5142, %v5141
      %v5158 = vpack.c.b16 %v5144, %v5143
      %v5159 = vpack.c.b16 %v5146, %v5145
      %v5160 = vpack.c.b16 %v5148, %v5147
      %v5161 = vpack.c.b16 %v5150, %v5149
      %v5162 = vpack.c.b16 %v5152, %v5151
      %v5163 = vpack.c.b16 %v5154, %v5153
      %v5164 = vpack.c.b16 %v5156, %v5155
      %5173 = vmatprep.subr.bf16.mxu0 0
      %5174 = vmatpush1.bf16.msra.mxu0 %v5157
      %5175 = vmatprep.subr.bf16.mxu0 0
      %5176 = vmatpush1.bf16.msra.mxu0 %v5158
      %5177 = vmatprep.subr.bf16.mxu0 0
      %5178 = vmatpush1.bf16.msra.mxu0 %v5159
      %5179 = vmatprep.subr.bf16.mxu0 0
      %5180 = vmatpush1.bf16.msra.mxu0 %v5160
      %5181 = vmatprep.subr.bf16.mxu0 0
      %5182 = vmatpush1.bf16.msra.mxu0 %v5161
      %5183 = vmatprep.subr.bf16.mxu0 0
      %5184 = vmatpush1.bf16.msra.mxu0 %v5162
      %5185 = vmatprep.subr.bf16.mxu0 0
      %5186 = vmatpush1.bf16.msra.mxu0 %v5163
      %5187 = vmatprep.subr.bf16.mxu0 0
      %5188 = vmatpush1.bf16.msra.mxu0 %v5164
      %5189 = vmatprep.subr.bf16.mxu0 0
      %5190 = vmatpush1.bf16.msra.mxu0 0
      %5191 = vmatprep.subr.bf16.mxu0 0
      %5192 = vmatpush1.bf16.msra.mxu0 0
      %5193 = vmatprep.subr.bf16.mxu0 0
      %5194 = vmatpush1.bf16.msra.mxu0 0
      %5195 = vmatprep.subr.bf16.mxu0 0
      %5196 = vmatpush1.bf16.msra.mxu0 0
      %5197 = vmatprep.subr.bf16.mxu0 0
      %5198 = vmatpush1.bf16.msra.mxu0 0
      %5199 = vmatprep.subr.bf16.mxu0 0
      %5200 = vmatpush1.bf16.msra.mxu0 0
      %5201 = vmatprep.subr.bf16.mxu0 0
      %5202 = vmatpush1.bf16.msra.mxu0 0
      %5203 = vmatprep.subr.bf16.mxu0 0
      %5204 = vmatpush1.bf16.msra.mxu0 0
      %5205 = vmatprep.mubr.bf16.mxu0 0
      %5206 = vmatmul.mubr.bf16.gmra.mrb[0].mxu0 %v5108
      %v5207 = vpop.f32.mrb[0].mxu0
      %v5208 = vadd.f32 0.0, %v5207
      %v5209 = vpop.f32.mrb[0].mxu0
      %v5210 = vpop.f32.mrb[0].mxu0
      %v5211 = vadd.f32 0.0, %v5210
      %v5212 = vpop.f32.mrb[0].mxu0
      %5213 = vmatprep.mubr.bf16.mxu0 0
      %5214 = vmatmul.mubr.bf16.gmra.mrb[0].mxu0 %v5110
      %v5215 = vpop.f32.mrb[0].mxu0
      %v5216 = vadd.f32 0.0, %v5215
      %v5217 = vpop.f32.mrb[0].mxu0
      %v5218 = vpop.f32.mrb[0].mxu0
      %v5219 = vadd.f32 0.0, %v5218
      %v5220 = vpop.f32.mrb[0].mxu0
      %5221 = vmatprep.mubr.bf16.mxu0 0
      %5222 = vmatmul.mubr.bf16.gmra.mrb[0].mxu0 %v5112
      %v5223 = vpop.f32.mrb[0].mxu0
      %v5224 = vadd.f32 0.0, %v5223
      %v5225 = vpop.f32.mrb[0].mxu0
      %v5226 = vpop.f32.mrb[0].mxu0
      %v5227 = vadd.f32 0.0, %v5226
      %v5228 = vpop.f32.mrb[0].mxu0
      %5229 = vmatprep.mubr.bf16.mxu0 0
      %5230 = vmatmul.mubr.bf16.gmra.mrb[0].mxu0 %v5114
      %v5231 = vpop.f32.mrb[0].mxu0
      %v5232 = vadd.f32 0.0, %v5231
      %v5233 = vpop.f32.mrb[0].mxu0
      %v5234 = vpop.f32.mrb[0].mxu0
      %v5235 = vadd.f32 0.0, %v5234
      %v5236 = vpop.f32.mrb[0].mxu0
      %5237 = vmatprep.mubr.bf16.mxu0 0
      %5238 = vmatmul.mubr.bf16.gmra.mrb[0].mxu0 %v5116
      %v5239 = vpop.f32.mrb[0].mxu0
      %v5240 = vadd.f32 0.0, %v5239
      %v5241 = vpop.f32.mrb[0].mxu0
      %v5242 = vpop.f32.mrb[0].mxu0
      %v5243 = vadd.f32 0.0, %v5242
      %v5244 = vpop.f32.mrb[0].mxu0
      %5245 = vmatprep.mubr.bf16.mxu0 0
      %5246 = vmatmul.mubr.bf16.gmra.mrb[0].mxu0 %v5118
      %v5247 = vpop.f32.mrb[0].mxu0
      %v5248 = vadd.f32 0.0, %v5247
      %v5249 = vpop.f32.mrb[0].mxu0
      %v5250 = vpop.f32.mrb[0].mxu0
      %v5251 = vadd.f32 0.0, %v5250
      %v5252 = vpop.f32.mrb[0].mxu0
      %5253 = vdwg.mxu0
      %v5254 = vadd.f32 %v5074, %v5208
      %v5255 = vadd.f32 %v5075, %v5211
      %v5256 = vadd.f32 %v5076, %v5216
      %v5257 = vadd.f32 %v5077, %v5219
      %v5258 = vadd.f32 %v5078, %v5224
      %v5259 = vadd.f32 %v5079, %v5227
      %v5260 = vadd.f32 %v5080, %v5232
      %v5261 = vadd.f32 %v5081, %v5235
      %v5262 = vadd.f32 %v5082, %v5240
      %v5263 = vadd.f32 %v5083, %v5243
      %v5264 = vadd.f32 %v5084, %v5248
      %v5265 = vadd.f32 %v5085, %v5251
      %v5266 = vld [vmem:[%s233 + $0x70] sm:$0xc]
      %v5267 = vld [vmem:[%s233 + $0x74] sm:$0xf]
      %v5268 = vld [vmem:[%s233 + $0x78] sm:$0xf]
      %v5269 = vld [vmem:[%s233 + $0x7c] sm:$0xf]
      %v5270 = vld [vmem:[%s233 + $0x80] sm:$0xf]
      %v5271 = vld [vmem:[%s233 + $0x84] sm:$0xf]
      %v5272 = vld [vmem:[%s233 + $0x88] sm:$0xf]
      %v5273 = vld [vmem:[%s233 + $0x8c] sm:$0xf]
      %v5274 = vld [vmem:[%s233 + $0x90] sm:$0xf]
      %v5275 = vld [vmem:[%s233 + $0x94] sm:$0xf]
      %v5276 = vld [vmem:[%s233 + $0x98] sm:$0xf]
      %v5277 = vld [vmem:[%s233 + $0x9c] sm:$0xf]
      %v5278 = vld [vmem:[%s233 + $0xa0] sm:$0x3]
      %v5279 = vld [vmem:[%s1488] sm:$0xf]
      %v5280 = vld [vmem:[%s1488 + $0x4] sm:$0xf]
      %v5281 = vld [vmem:[%s1488 + $0x8] sm:$0xf]
      %v5282 = vld [vmem:[%s1488 + $0xc] sm:$0xf]
      %v5283 = vld [vmem:[%s1488 + $0x10] sm:$0xf]
      %v5284 = vld [vmem:[%s1488 + $0x14] sm:$0xf]
      %v5285 = vld [vmem:[%s1488 + $0x18] sm:$0xf]
      %v5286 = vld [vmem:[%s1488 + $0x1c] sm:$0xf]
      %v5287 = vld [vmem:[%s1488 + $0x20] sm:$0xf]
      %v5288 = vld [vmem:[%s1488 + $0x24] sm:$0xf]
      %v5289 = vld [vmem:[%s1488 + $0x28] sm:$0xf]
      %v5290 = vld [vmem:[%s1488 + $0x2c] sm:$0xf]
      %v5291 = vld [vmem:[%s1488 + $0x30] sm:$0xf]
      %v5292 = vld [vmem:[%s1488 + $0x34] sm:$0xf]
      %v5293 = vld [vmem:[%s1488 + $0x38] sm:$0xf]
      %v5294 = vld [vmem:[%s1488 + $0x3c] sm:$0xf]
      %v5308 = vunpack.c.l.b16 %v5266
      %v5309 = vunpack.c.l.b16 %v5267
      %v5310 = vunpack.c.l.b16 %v5268
      %v5311 = vunpack.c.l.b16 %v5269
      %v5312 = vunpack.c.l.b16 %v5270
      %v5313 = vunpack.c.l.b16 %v5271
      %v5314 = vunpack.c.l.b16 %v5272
      %v5315 = vunpack.c.l.b16 %v5273
      %v5316 = vunpack.c.l.b16 %v5274
      %v5317 = vunpack.c.l.b16 %v5275
      %v5318 = vunpack.c.l.b16 %v5276
      %v5319 = vunpack.c.l.b16 %v5277
      %v5320 = vunpack.c.l.b16 %v5278
      %v5321 = vpack.c.b16 %v5309, %v5308
      %v5322 = vpack.c.b16 %v5311, %v5310
      %v5323 = vpack.c.b16 %v5313, %v5312
      %v5324 = vpack.c.b16 %v5315, %v5314
      %v5325 = vpack.c.b16 %v5317, %v5316
      %v5326 = vpack.c.b16 %v5319, %v5318
      %v5327 = vpack.c.b16 %v5320, %v5320
      %v5328 = vrot.slane %v5321, 2
      %v5329 = vrot.slane %v5322, 2
      %v5330 = vsel %vm1314, %v5328, %v5329
      %v5331 = vrot.slane %v5323, 2
      %v5332 = vsel %vm1314, %v5329, %v5331
      %v5333 = vrot.slane %v5324, 2
      %v5334 = vsel %vm1314, %v5331, %v5333
      %v5335 = vrot.slane %v5325, 2
      %v5336 = vsel %vm1314, %v5333, %v5335
      %v5337 = vrot.slane %v5326, 2
      %v5338 = vsel %vm1314, %v5335, %v5337
      %v5339 = vrot.slane %v5327, 2
      %v5340 = vsel %vm1314, %v5337, %v5339
      %v5363 = vunpack.c.l.b16 %v5279
      %v5364 = vunpack.c.l.b16 %v5280
      %v5365 = vunpack.c.l.b16 %v5281
      %v5366 = vunpack.c.l.b16 %v5282
      %v5367 = vunpack.c.l.b16 %v5283
      %v5368 = vunpack.c.l.b16 %v5284
      %v5369 = vunpack.c.l.b16 %v5285
      %v5370 = vunpack.c.l.b16 %v5286
      %v5371 = vunpack.c.l.b16 %v5287
      %v5372 = vunpack.c.l.b16 %v5288
      %v5373 = vunpack.c.l.b16 %v5289
      %v5374 = vunpack.c.l.b16 %v5290
      %v5375 = vunpack.c.l.b16 %v5291
      %v5376 = vunpack.c.l.b16 %v5292
      %v5377 = vunpack.c.l.b16 %v5293
      %v5378 = vunpack.c.l.b16 %v5294
      %v5379 = vpack.c.b16 %v5364, %v5363
      %v5380 = vpack.c.b16 %v5366, %v5365
      %v5381 = vpack.c.b16 %v5368, %v5367
      %v5382 = vpack.c.b16 %v5370, %v5369
      %v5383 = vpack.c.b16 %v5372, %v5371
      %v5384 = vpack.c.b16 %v5374, %v5373
      %v5385 = vpack.c.b16 %v5376, %v5375
      %v5386 = vpack.c.b16 %v5378, %v5377
      %5395 = vmatprep.subr.bf16.mxu0 0
      %5396 = vmatpush1.bf16.msra.mxu0 %v5379
      %5397 = vmatprep.subr.bf16.mxu0 0
      %5398 = vmatpush1.bf16.msra.mxu0 %v5380
      %5399 = vmatprep.subr.bf16.mxu0 0
      %5400 = vmatpush1.bf16.msra.mxu0 %v5381
      %5401 = vmatprep.subr.bf16.mxu0 0
      %5402 = vmatpush1.bf16.msra.mxu0 %v5382
      %5403 = vmatprep.subr.bf16.mxu0 0
      %5404 = vmatpush1.bf16.msra.mxu0 %v5383
      %5405 = vmatprep.subr.bf16.mxu0 0
      %5406 = vmatpush1.bf16.msra.mxu0 %v5384
      %5407 = vmatprep.subr.bf16.mxu0 0
      %5408 = vmatpush1.bf16.msra.mxu0 %v5385
      %5409 = vmatprep.subr.bf16.mxu0 0
      %5410 = vmatpush1.bf16.msra.mxu0 %v5386
      %5411 = vmatprep.subr.bf16.mxu0 0
      %5412 = vmatpush1.bf16.msra.mxu0 0
      %5413 = vmatprep.subr.bf16.mxu0 0
      %5414 = vmatpush1.bf16.msra.mxu0 0
      %5415 = vmatprep.subr.bf16.mxu0 0
      %5416 = vmatpush1.bf16.msra.mxu0 0
      %5417 = vmatprep.subr.bf16.mxu0 0
      %5418 = vmatpush1.bf16.msra.mxu0 0
      %5419 = vmatprep.subr.bf16.mxu0 0
      %5420 = vmatpush1.bf16.msra.mxu0 0
      %5421 = vmatprep.subr.bf16.mxu0 0
      %5422 = vmatpush1.bf16.msra.mxu0 0
      %5423 = vmatprep.subr.bf16.mxu0 0
      %5424 = vmatpush1.bf16.msra.mxu0 0
      %5425 = vmatprep.subr.bf16.mxu0 0
      %5426 = vmatpush1.bf16.msra.mxu0 0
      %5427 = vmatprep.mubr.bf16.mxu0 0
      %5428 = vmatmul.mubr.bf16.gmra.mrb[0].mxu0 %v5330
      %v5429 = vpop.f32.mrb[0].mxu0
      %v5430 = vadd.f32 0.0, %v5429
      %v5431 = vpop.f32.mrb[0].mxu0
      %v5432 = vpop.f32.mrb[0].mxu0
      %v5433 = vadd.f32 0.0, %v5432
      %v5434 = vpop.f32.mrb[0].mxu0
      %5435 = vmatprep.mubr.bf16.mxu0 0
      %5436 = vmatmul.mubr.bf16.gmra.mrb[0].mxu0 %v5332
      %v5437 = vpop.f32.mrb[0].mxu0
      %v5438 = vadd.f32 0.0, %v5437
      %v5439 = vpop.f32.mrb[0].mxu0
      %v5440 = vpop.f32.mrb[0].mxu0
      %v5441 = vadd.f32 0.0, %v5440
      %v5442 = vpop.f32.mrb[0].mxu0
      %5443 = vmatprep.mubr.bf16.mxu0 0
      %5444 = vmatmul.mubr.bf16.gmra.mrb[0].mxu0 %v5334
      %v5445 = vpop.f32.mrb[0].mxu0
      %v5446 = vadd.f32 0.0, %v5445
      %v5447 = vpop.f32.mrb[0].mxu0
      %v5448 = vpop.f32.mrb[0].mxu0
      %v5449 = vadd.f32 0.0, %v5448
      %v5450 = vpop.f32.mrb[0].mxu0
      %5451 = vmatprep.mubr.bf16.mxu0 0
      %5452 = vmatmul.mubr.bf16.gmra.mrb[0].mxu0 %v5336
      %v5453 = vpop.f32.mrb[0].mxu0
      %v5454 = vadd.f32 0.0, %v5453
      %v5455 = vpop.f32.mrb[0].mxu0
      %v5456 = vpop.f32.mrb[0].mxu0
      %v5457 = vadd.f32 0.0, %v5456
      %v5458 = vpop.f32.mrb[0].mxu0
      %5459 = vmatprep.mubr.bf16.mxu0 0
      %5460 = vmatmul.mubr.bf16.gmra.mrb[0].mxu0 %v5338
      %v5461 = vpop.f32.mrb[0].mxu0
      %v5462 = vadd.f32 0.0, %v5461
      %v5463 = vpop.f32.mrb[0].mxu0
      %v5464 = vpop.f32.mrb[0].mxu0
      %v5465 = vadd.f32 0.0, %v5464
      %v5466 = vpop.f32.mrb[0].mxu0
      %5467 = vmatprep.mubr.bf16.mxu0 0
      %5468 = vmatmul.mubr.bf16.gmra.mrb[0].mxu0 %v5340
      %v5469 = vpop.f32.mrb[0].mxu0
      %v5470 = vadd.f32 0.0, %v5469
      %v5471 = vpop.f32.mrb[0].mxu0
      %v5472 = vpop.f32.mrb[0].mxu0
      %v5473 = vadd.f32 0.0, %v5472
      %v5474 = vpop.f32.mrb[0].mxu0
      %5475 = vdwg.mxu0
      %v5476 = vadd.f32 %v5254, %v5430
      %v5477 = vadd.f32 %v5255, %v5433
      %v5478 = vadd.f32 %v5256, %v5438
      %v5479 = vadd.f32 %v5257, %v5441
      %v5480 = vadd.f32 %v5258, %v5446
      %v5481 = vadd.f32 %v5259, %v5449
      %v5482 = vadd.f32 %v5260, %v5454
      %v5483 = vadd.f32 %v5261, %v5457
      %v5484 = vadd.f32 %v5262, %v5462
      %v5485 = vadd.f32 %v5263, %v5465
      %v5486 = vadd.f32 %v5264, %v5470
      %v5487 = vadd.f32 %v5265, %v5473
      %v5488 = vld [vmem:[%s233 + $0xa0] sm:$0x7]
      %v5489 = vld [vmem:[%s1699] sm:$0xf]
      %v5490 = vld [vmem:[%s1699 + $0x4] sm:$0xf]
      %v5491 = vld [vmem:[%s1699 + $0x8] sm:$0xf]
      %v5492 = vld [vmem:[%s1699 + $0xc] sm:$0xf]
      %v5493 = vld [vmem:[%s1699 + $0x10] sm:$0xf]
      %v5494 = vld [vmem:[%s1699 + $0x14] sm:$0xf]
      %v5495 = vld [vmem:[%s1699 + $0x18] sm:$0xf]
      %v5496 = vld [vmem:[%s1699 + $0x1c] sm:$0xf]
      %v5497 = vld [vmem:[%s1699 + $0x20] sm:$0xf]
      %v5498 = vld [vmem:[%s1699 + $0x24] sm:$0xf]
      %v5499 = vld [vmem:[%s1699 + $0x28] sm:$0xf]
      %v5500 = vld [vmem:[%s1699 + $0x2c] sm:$0xf]
      %v5501 = vld [vmem:[%s1699 + $0x30] sm:$0xf]
      %v5502 = vld [vmem:[%s1699 + $0x34] sm:$0xf]
      %v5503 = vld [vmem:[%s1699 + $0x38] sm:$0xf]
      %v5504 = vld [vmem:[%s1699 + $0x3c] sm:$0xf]
      %v5506 = vunpack.c.l.b16 %v5488
      %v5507 = vpack.c.b16 %v5506, %v5506
      %v5509 = vshrl.u32 %v5321, 16
      %v5511 = vrot.slane %v5509, 2
      %v5512 = vshll.u32 %v5321, 16
      %v5514 = vrot.slane %v5512, 3
      %v5515 = vor.u32 %v5511, %v5514
      %v5517 = vshrl.u32 %v5322, 16
      %v5519 = vrot.slane %v5517, 2
      %v5520 = vshll.u32 %v5322, 16
      %v5522 = vrot.slane %v5520, 3
      %v5523 = vor.u32 %v5519, %v5522
      %v5524 = vsel %vm1719, %v5515, %v5523
      %v5526 = vshrl.u32 %v5323, 16
      %v5528 = vrot.slane %v5526, 2
      %v5529 = vshll.u32 %v5323, 16
      %v5531 = vrot.slane %v5529, 3
      %v5532 = vor.u32 %v5528, %v5531
      %v5533 = vsel %vm1719, %v5523, %v5532
      %v5535 = vshrl.u32 %v5324, 16
      %v5537 = vrot.slane %v5535, 2
      %v5538 = vshll.u32 %v5324, 16
      %v5540 = vrot.slane %v5538, 3
      %v5541 = vor.u32 %v5537, %v5540
      %v5542 = vsel %vm1719, %v5532, %v5541
      %v5544 = vshrl.u32 %v5325, 16
      %v5546 = vrot.slane %v5544, 2
      %v5547 = vshll.u32 %v5325, 16
      %v5549 = vrot.slane %v5547, 3
      %v5550 = vor.u32 %v5546, %v5549
      %v5551 = vsel %vm1719, %v5541, %v5550
      %v5553 = vshrl.u32 %v5326, 16
      %v5555 = vrot.slane %v5553, 2
      %v5556 = vshll.u32 %v5326, 16
      %v5558 = vrot.slane %v5556, 3
      %v5559 = vor.u32 %v5555, %v5558
      %v5560 = vsel %vm1719, %v5550, %v5559
      %v5562 = vshrl.u32 %v5507, 16
      %v5564 = vrot.slane %v5562, 2
      %v5565 = vshll.u32 %v5507, 16
      %v5567 = vrot.slane %v5565, 3
      %v5568 = vor.u32 %v5564, %v5567
      %v5569 = vsel %vm1719, %v5559, %v5568
      %v5592 = vunpack.c.l.b16 %v5489
      %v5593 = vunpack.c.l.b16 %v5490
      %v5594 = vunpack.c.l.b16 %v5491
      %v5595 = vunpack.c.l.b16 %v5492
      %v5596 = vunpack.c.l.b16 %v5493
      %v5597 = vunpack.c.l.b16 %v5494
      %v5598 = vunpack.c.l.b16 %v5495
      %v5599 = vunpack.c.l.b16 %v5496
      %v5600 = vunpack.c.l.b16 %v5497
      %v5601 = vunpack.c.l.b16 %v5498
      %v5602 = vunpack.c.l.b16 %v5499
      %v5603 = vunpack.c.l.b16 %v5500
      %v5604 = vunpack.c.l.b16 %v5501
      %v5605 = vunpack.c.l.b16 %v5502
      %v5606 = vunpack.c.l.b16 %v5503
      %v5607 = vunpack.c.l.b16 %v5504
      %v5608 = vpack.c.b16 %v5593, %v5592
      %v5609 = vpack.c.b16 %v5595, %v5594
      %v5610 = vpack.c.b16 %v5597, %v5596
      %v5611 = vpack.c.b16 %v5599, %v5598
      %v5612 = vpack.c.b16 %v5601, %v5600
      %v5613 = vpack.c.b16 %v5603, %v5602
      %v5614 = vpack.c.b16 %v5605, %v5604
      %v5615 = vpack.c.b16 %v5607, %v5606
      %5624 = vmatprep.subr.bf16.mxu0 0
      %5625 = vmatpush1.bf16.msra.mxu0 %v5608
      %5626 = vmatprep.subr.bf16.mxu0 0
      %5627 = vmatpush1.bf16.msra.mxu0 %v5609
      %5628 = vmatprep.subr.bf16.mxu0 0
      %5629 = vmatpush1.bf16.msra.mxu0 %v5610
      %5630 = vmatprep.subr.bf16.mxu0 0
      %5631 = vmatpush1.bf16.msra.mxu0 %v5611
      %5632 = vmatprep.subr.bf16.mxu0 0
      %5633 = vmatpush1.bf16.msra.mxu0 %v5612
      %5634 = vmatprep.subr.bf16.mxu0 0
      %5635 = vmatpush1.bf16.msra.mxu0 %v5613
      %5636 = vmatprep.subr.bf16.mxu0 0
      %5637 = vmatpush1.bf16.msra.mxu0 %v5614
      %5638 = vmatprep.subr.bf16.mxu0 0
      %5639 = vmatpush1.bf16.msra.mxu0 %v5615
      %5640 = vmatprep.subr.bf16.mxu0 0
      %5641 = vmatpush1.bf16.msra.mxu0 0
      %5642 = vmatprep.subr.bf16.mxu0 0
      %5643 = vmatpush1.bf16.msra.mxu0 0
      %5644 = vmatprep.subr.bf16.mxu0 0
      %5645 = vmatpush1.bf16.msra.mxu0 0
      %5646 = vmatprep.subr.bf16.mxu0 0
      %5647 = vmatpush1.bf16.msra.mxu0 0
      %5648 = vmatprep.subr.bf16.mxu0 0
      %5649 = vmatpush1.bf16.msra.mxu0 0
      %5650 = vmatprep.subr.bf16.mxu0 0
      %5651 = vmatpush1.bf16.msra.mxu0 0
      %5652 = vmatprep.subr.bf16.mxu0 0
      %5653 = vmatpush1.bf16.msra.mxu0 0
      %5654 = vmatprep.subr.bf16.mxu0 0
      %5655 = vmatpush1.bf16.msra.mxu0 0
      %5656 = vmatprep.mubr.bf16.mxu0 0
      %5657 = vmatmul.mubr.bf16.gmra.mrb[0].mxu0 %v5524
      %v5658 = vpop.f32.mrb[0].mxu0
      %v5659 = vadd.f32 0.0, %v5658
      %v5660 = vpop.f32.mrb[0].mxu0
      %v5661 = vpop.f32.mrb[0].mxu0
      %v5662 = vadd.f32 0.0, %v5661
      %v5663 = vpop.f32.mrb[0].mxu0
      %5664 = vmatprep.mubr.bf16.mxu0 0
      %5665 = vmatmul.mubr.bf16.gmra.mrb[0].mxu0 %v5533
      %v5666 = vpop.f32.mrb[0].mxu0
      %v5667 = vadd.f32 0.0, %v5666
      %v5668 = vpop.f32.mrb[0].mxu0
      %v5669 = vpop.f32.mrb[0].mxu0
      %v5670 = vadd.f32 0.0, %v5669
      %v5671 = vpop.f32.mrb[0].mxu0
      %5672 = vmatprep.mubr.bf16.mxu0 0
      %5673 = vmatmul.mubr.bf16.gmra.mrb[0].mxu0 %v5542
      %v5674 = vpop.f32.mrb[0].mxu0
      %v5675 = vadd.f32 0.0, %v5674
      %v5676 = vpop.f32.mrb[0].mxu0
      %v5677 = vpop.f32.mrb[0].mxu0
      %v5678 = vadd.f32 0.0, %v5677
      %v5679 = vpop.f32.mrb[0].mxu0
      %5680 = vmatprep.mubr.bf16.mxu0 0
      %5681 = vmatmul.mubr.bf16.gmra.mrb[0].mxu0 %v5551
      %v5682 = vpop.f32.mrb[0].mxu0
      %v5683 = vadd.f32 0.0, %v5682
      %v5684 = vpop.f32.mrb[0].mxu0
      %v5685 = vpop.f32.mrb[0].mxu0
      %v5686 = vadd.f32 0.0, %v5685
      %v5687 = vpop.f32.mrb[0].mxu0
      %5688 = vmatprep.mubr.bf16.mxu0 0
      %5689 = vmatmul.mubr.bf16.gmra.mrb[0].mxu0 %v5560
      %v5690 = vpop.f32.mrb[0].mxu0
      %v5691 = vadd.f32 0.0, %v5690
      %v5692 = vpop.f32.mrb[0].mxu0
      %v5693 = vpop.f32.mrb[0].mxu0
      %v5694 = vadd.f32 0.0, %v5693
      %v5695 = vpop.f32.mrb[0].mxu0
      %5696 = vmatprep.mubr.bf16.mxu0 0
      %5697 = vmatmul.mubr.bf16.gmra.mrb[0].mxu0 %v5569
      %v5698 = vpop.f32.mrb[0].mxu0
      %v5699 = vadd.f32 0.0, %v5698
      %v5700 = vpop.f32.mrb[0].mxu0
      %v5701 = vpop.f32.mrb[0].mxu0
      %v5702 = vadd.f32 0.0, %v5701
      %v5703 = vpop.f32.mrb[0].mxu0
      %5704 = vdwg.mxu0
      %v5705 = vadd.f32 %v5476, %v5659
      %v5706 = vadd.f32 %v5477, %v5662
      %v5707 = vadd.f32 %v5478, %v5667
      %v5708 = vadd.f32 %v5479, %v5670
      %v5709 = vadd.f32 %v5480, %v5675
      %v5710 = vadd.f32 %v5481, %v5678
      %v5711 = vadd.f32 %v5482, %v5683
      %v5712 = vadd.f32 %v5483, %v5686
      %v5713 = vadd.f32 %v5484, %v5691
      %v5714 = vadd.f32 %v5485, %v5694
      %v5715 = vadd.f32 %v5486, %v5699
      %v5716 = vadd.f32 %v5487, %v5702
      %v5717 = vld [vmem:[%s233 + $0x70] sm:$0x8]
      %v5718 = vld [vmem:[%s1930] sm:$0xf]
      %v5719 = vld [vmem:[%s1930 + $0x4] sm:$0xf]
      %v5720 = vld [vmem:[%s1930 + $0x8] sm:$0xf]
      %v5721 = vld [vmem:[%s1930 + $0xc] sm:$0xf]
      %v5722 = vld [vmem:[%s1930 + $0x10] sm:$0xf]
      %v5723 = vld [vmem:[%s1930 + $0x14] sm:$0xf]
      %v5724 = vld [vmem:[%s1930 + $0x18] sm:$0xf]
      %v5725 = vld [vmem:[%s1930 + $0x1c] sm:$0xf]
      %v5726 = vld [vmem:[%s1930 + $0x20] sm:$0xf]
      %v5727 = vld [vmem:[%s1930 + $0x24] sm:$0xf]
      %v5728 = vld [vmem:[%s1930 + $0x28] sm:$0xf]
      %v5729 = vld [vmem:[%s1930 + $0x2c] sm:$0xf]
      %v5730 = vld [vmem:[%s1930 + $0x30] sm:$0xf]
      %v5731 = vld [vmem:[%s1930 + $0x34] sm:$0xf]
      %v5732 = vld [vmem:[%s1930 + $0x38] sm:$0xf]
      %v5733 = vld [vmem:[%s1930 + $0x3c] sm:$0xf]
      %v5735 = vunpack.c.l.b16 %v5717
      %v5736 = vpack.c.b16 %v5309, %v5735
      %v5737 = vrot.slane %v5736, 3
      %v5738 = vrot.slane %v5322, 3
      %v5739 = vsel %vm1950, %v5737, %v5738
      %v5740 = vrot.slane %v5323, 3
      %v5741 = vsel %vm1950, %v5738, %v5740
      %v5742 = vrot.slane %v5324, 3
      %v5743 = vsel %vm1950, %v5740, %v5742
      %v5744 = vrot.slane %v5325, 3
      %v5745 = vsel %vm1950, %v5742, %v5744
      %v5746 = vrot.slane %v5326, 3
      %v5747 = vsel %vm1950, %v5744, %v5746
      %v5748 = vrot.slane %v5507, 3
      %v5749 = vsel %vm1950, %v5746, %v5748
      %v5772 = vunpack.c.l.b16 %v5718
      %v5773 = vunpack.c.l.b16 %v5719
      %v5774 = vunpack.c.l.b16 %v5720
      %v5775 = vunpack.c.l.b16 %v5721
      %v5776 = vunpack.c.l.b16 %v5722
      %v5777 = vunpack.c.l.b16 %v5723
      %v5778 = vunpack.c.l.b16 %v5724
      %v5779 = vunpack.c.l.b16 %v5725
      %v5780 = vunpack.c.l.b16 %v5726
      %v5781 = vunpack.c.l.b16 %v5727
      %v5782 = vunpack.c.l.b16 %v5728
      %v5783 = vunpack.c.l.b16 %v5729
      %v5784 = vunpack.c.l.b16 %v5730
      %v5785 = vunpack.c.l.b16 %v5731
      %v5786 = vunpack.c.l.b16 %v5732
      %v5787 = vunpack.c.l.b16 %v5733
      %v5788 = vpack.c.b16 %v5773, %v5772
      %v5789 = vpack.c.b16 %v5775, %v5774
      %v5790 = vpack.c.b16 %v5777, %v5776
      %v5791 = vpack.c.b16 %v5779, %v5778
      %v5792 = vpack.c.b16 %v5781, %v5780
      %v5793 = vpack.c.b16 %v5783, %v5782
      %v5794 = vpack.c.b16 %v5785, %v5784
      %v5795 = vpack.c.b16 %v5787, %v5786
      %5804 = vmatprep.subr.bf16.mxu0 0
      %5805 = vmatpush1.bf16.msra.mxu0 %v5788
      %5806 = vmatprep.subr.bf16.mxu0 0
      %5807 = vmatpush1.bf16.msra.mxu0 %v5789
      %5808 = vmatprep.subr.bf16.mxu0 0
      %5809 = vmatpush1.bf16.msra.mxu0 %v5790
      %5810 = vmatprep.subr.bf16.mxu0 0
      %5811 = vmatpush1.bf16.msra.mxu0 %v5791
      %5812 = vmatprep.subr.bf16.mxu0 0
      %5813 = vmatpush1.bf16.msra.mxu0 %v5792
      %5814 = vmatprep.subr.bf16.mxu0 0
      %5815 = vmatpush1.bf16.msra.mxu0 %v5793
      %5816 = vmatprep.subr.bf16.mxu0 0
      %5817 = vmatpush1.bf16.msra.mxu0 %v5794
      %5818 = vmatprep.subr.bf16.mxu0 0
      %5819 = vmatpush1.bf16.msra.mxu0 %v5795
      %5820 = vmatprep.subr.bf16.mxu0 0
      %5821 = vmatpush1.bf16.msra.mxu0 0
      %5822 = vmatprep.subr.bf16.mxu0 0
      %5823 = vmatpush1.bf16.msra.mxu0 0
      %5824 = vmatprep.subr.bf16.mxu0 0
      %5825 = vmatpush1.bf16.msra.mxu0 0
      %5826 = vmatprep.subr.bf16.mxu0 0
      %5827 = vmatpush1.bf16.msra.mxu0 0
      %5828 = vmatprep.subr.bf16.mxu0 0
      %5829 = vmatpush1.bf16.msra.mxu0 0
      %5830 = vmatprep.subr.bf16.mxu0 0
      %5831 = vmatpush1.bf16.msra.mxu0 0
      %5832 = vmatprep.subr.bf16.mxu0 0
      %5833 = vmatpush1.bf16.msra.mxu0 0
      %5834 = vmatprep.subr.bf16.mxu0 0
      %5835 = vmatpush1.bf16.msra.mxu0 0
      %5836 = vmatprep.mubr.bf16.mxu0 0
      %5837 = vmatmul.mubr.bf16.gmra.mrb[0].mxu0 %v5739
      %v5838 = vpop.f32.mrb[0].mxu0
      %v5839 = vadd.f32 0.0, %v5838
      %v5840 = vpop.f32.mrb[0].mxu0
      %v5841 = vpop.f32.mrb[0].mxu0
      %v5842 = vadd.f32 0.0, %v5841
      %v5843 = vpop.f32.mrb[0].mxu0
      %5844 = vmatprep.mubr.bf16.mxu0 0
      %5845 = vmatmul.mubr.bf16.gmra.mrb[0].mxu0 %v5741
      %v5846 = vpop.f32.mrb[0].mxu0
      %v5847 = vadd.f32 0.0, %v5846
      %v5848 = vpop.f32.mrb[0].mxu0
      %v5849 = vpop.f32.mrb[0].mxu0
      %v5850 = vadd.f32 0.0, %v5849
      %v5851 = vpop.f32.mrb[0].mxu0
      %5852 = vmatprep.mubr.bf16.mxu0 0
      %5853 = vmatmul.mubr.bf16.gmra.mrb[0].mxu0 %v5743
      %v5854 = vpop.f32.mrb[0].mxu0
      %v5855 = vadd.f32 0.0, %v5854
      %v5856 = vpop.f32.mrb[0].mxu0
      %v5857 = vpop.f32.mrb[0].mxu0
      %v5858 = vadd.f32 0.0, %v5857
      %v5859 = vpop.f32.mrb[0].mxu0
      %5860 = vmatprep.mubr.bf16.mxu0 0
      %5861 = vmatmul.mubr.bf16.gmra.mrb[0].mxu0 %v5745
      %v5862 = vpop.f32.mrb[0].mxu0
      %v5863 = vadd.f32 0.0, %v5862
      %v5864 = vpop.f32.mrb[0].mxu0
      %v5865 = vpop.f32.mrb[0].mxu0
      %v5866 = vadd.f32 0.0, %v5865
      %v5867 = vpop.f32.mrb[0].mxu0
      %5868 = vmatprep.mubr.bf16.mxu0 0
      %5869 = vmatmul.mubr.bf16.gmra.mrb[0].mxu0 %v5747
      %v5870 = vpop.f32.mrb[0].mxu0
      %v5871 = vadd.f32 0.0, %v5870
      %v5872 = vpop.f32.mrb[0].mxu0
      %v5873 = vpop.f32.mrb[0].mxu0
      %v5874 = vadd.f32 0.0, %v5873
      %v5875 = vpop.f32.mrb[0].mxu0
      %5876 = vmatprep.mubr.bf16.mxu0 0
      %5877 = vmatmul.mubr.bf16.gmra.mrb[0].mxu0 %v5749
      %v5878 = vpop.f32.mrb[0].mxu0
      %v5879 = vadd.f32 0.0, %v5878
      %v5880 = vpop.f32.mrb[0].mxu0
      %v5881 = vpop.f32.mrb[0].mxu0
      %v5882 = vadd.f32 0.0, %v5881
      %v5883 = vpop.f32.mrb[0].mxu0
      %5884 = vdwg.mxu0
      %v5885 = vadd.f32 %v5705, %v5839
      %v5886 = vadd.f32 %v5706, %v5842
      %v5887 = vadd.f32 %v5707, %v5847
      %v5888 = vadd.f32 %v5708, %v5850
      %v5889 = vadd.f32 %v5709, %v5855
      %v5890 = vadd.f32 %v5710, %v5858
      %v5891 = vadd.f32 %v5711, %v5863
      %v5892 = vadd.f32 %v5712, %v5866
      %v5893 = vadd.f32 %v5713, %v5871
      %v5894 = vadd.f32 %v5714, %v5874
      %v5895 = vadd.f32 %v5715, %v5879
      %v5896 = vadd.f32 %v5716, %v5882
      %v5897 = vadd.f32 %v5885, %v2115
      %v5898 = vadd.f32 %v5886, %v2115
      %v5899 = vadd.f32 %v5887, %v2115
      %v5900 = vadd.f32 %v5888, %v2115
      %v5901 = vadd.f32 %v5889, %v2115
      %v5902 = vadd.f32 %v5890, %v2115
      %v5903 = vadd.f32 %v5891, %v2115
      %v5904 = vadd.f32 %v5892, %v2115
      %v5905 = vadd.f32 %v5893, %v2115
      %v5906 = vadd.f32 %v5894, %v2115
      %v5907 = vadd.f32 %v5895, %v2115
      %v5908 = vadd.f32 %v5896, %v2115
      %v5909 = vmul.f32 %v5897, 0.1
      %v5910 = vmul.f32 %v5898, 0.1
      %v5911 = vmul.f32 %v5899, 0.1
      %v5912 = vmul.f32 %v5900, 0.1
      %v5913 = vmul.f32 %v5901, 0.1
      %v5914 = vmul.f32 %v5902, 0.1
      %v5915 = vmul.f32 %v5903, 0.1
      %v5916 = vmul.f32 %v5904, 0.1
      %v5917 = vmul.f32 %v5905, 0.1
      %v5918 = vmul.f32 %v5906, 0.1
      %v5919 = vmul.f32 %v5907, 0.1
      %v5920 = vmul.f32 %v5908, 0.1
      %v5921 = vmax.f32 %v5897, %v5909
      %v5922 = vmax.f32 %v5898, %v5910
      %v5923 = vmax.f32 %v5899, %v5911
      %v5924 = vmax.f32 %v5900, %v5912
      %v5925 = vmax.f32 %v5901, %v5913
      %v5926 = vmax.f32 %v5902, %v5914
      %v5927 = vmax.f32 %v5903, %v5915
      %v5928 = vmax.f32 %v5904, %v5916
      %v5929 = vmax.f32 %v5905, %v5917
      %v5930 = vmax.f32 %v5906, %v5918
      %v5931 = vmax.f32 %v5907, %v5919
      %v5932 = vmax.f32 %v5908, %v5920
      %5933 = vst [vmem:[%s252 + $0xc0] sm:$0xff] %v5921
      %5934 = vst [vmem:[%s252 + $0xc8] sm:$0xff] %v5922
      %5935 = vst [vmem:[%s252 + $0xd0] sm:$0xff] %v5923
      %5936 = vst [vmem:[%s252 + $0xd8] sm:$0xff] %v5924
      %5937 = vst [vmem:[%s252 + $0xe0] sm:$0xff] %v5925
      %5938 = vst [vmem:[%s252 + $0xe8] sm:$0xff] %v5926
      %5939 = vst [vmem:[%s252 + $0xf0] sm:$0xff] %v5927
      %5940 = vst [vmem:[%s252 + $0xf8] sm:$0xff] %v5928
      %5941 = vst [vmem:[%s252 + $0x100] sm:$0xff] %v5929
      %5942 = vst [vmem:[%s252 + $0x108] sm:$0xff] %v5930
      %5943 = vst [vmem:[%s252 + $0x110] sm:$0xff] %v5931
      %5944 = vst [vmem:[%s252 + $0x118] sm:$0xff] %v5932
      %p5945 = scmp.lt.s32.totalorder %s19, 1
      %s5946 = scalar_select %p5945, %s19, 1
      %p5947 = scmp.lt.s32.totalorder %s20, 0
      %s5948 = scalar_select %p5947, %s20, 0
      %p5949 = scmp.lt.s32.totalorder %s21, 0
      %s5950 = scalar_select %p5949, %s21, 0
      %s5951 = smul.addr %s5948, 36
      %s5952 = sadd.s32 %s5950, %s5951
      %s5953 = smul.addr %s5946, 36
      %s5954 = sadd.s32 %s5952, %s5953
      %s5955 = smul.addr %s5954, 8
      %s5956 = scalar_lea.vmem %s3, %s5955
      // Predicated region
      $region33: #{pcb_forward.1} parent=31 // pred_check
        %p5957 = pneg %p135
      $region34: #{pcb_forward.1} parent=31 // pred_check_branch
        %5959 = sbr.rel (%p5957) target = $region36
      $region35: #{pcb_forward.1} parent=31 // pred_region
        _
      $region36: #{pcb_forward.1} parent=31 // pred_fallthru
        _
    $region32: #{pcb_forward.1} parent=5 // pred_fallthru
      _
    %p5960 = scmp.le.s32.totalorder 2, %s9
    // Predicated region
    $region37: #{pcb_forward.1} parent=5 // pred_check
      %p5961 = pneg %p5960
    $region38: #{pcb_forward.1} parent=5 // pred_check_branch
      %5963 = sbr.rel (%p5961) target = $region40
    $region39: #{pcb_forward.1} parent=5 // pred_region
      %s5964 = ssub.s32 %s9, 2
      // Predicated region
      $region41: #{pcb_forward.1} parent=39 // pred_check
        %p5965 = pneg %p141
      $region42: #{pcb_forward.1} parent=39 // pred_check_branch
        %5967 = sbr.rel (%p5965) target = $region44
      $region43: #{pcb_forward.1} parent=39 // pred_region
        %p5968 = scmp.lt.s32.totalorder %s22, 1
        %s5969 = scalar_select %p5968, %s22, 1
        %p5970 = scmp.lt.s32.totalorder %s23, 0
        %s5971 = scalar_select %p5970, %s23, 0
        %p5972 = scmp.lt.s32.totalorder %s24, 0
        %s5973 = scalar_select %p5972, %s24, 0
        %s5974 = smul.addr %s5971, 36
        %s5975 = sadd.s32 %s5973, %s5974
        %s5976 = smul.addr %s5969, 36
        %s5977 = sadd.s32 %s5975, %s5976
        %s5978 = smul.addr %s5977, 8
        %s5979 = scalar_lea.vmem %s3, %s5978
      $region44: #{pcb_forward.1} parent=39 // pred_fallthru
        _
    $region40: #{pcb_forward.1} parent=5 // pred_fallthru
      _
  $region6: #{pcb_forward.1} parent=0 // loop_footer
    %s13 = sadd.s32 1, %s9
  $region7: #{pcb_forward.1} parent=0 // loop_footer_branch
    %8 = sbr.rel target = $region3
  $region8: #{pcb_forward.1} parent=0 // loop_exit
    _

</llo_original>
